<compile_context>
chip_gen: v7x
topology: tpu7x:2x2x1
jax: 0.10.0
libtpu: 0.0.40
codegen_flags: <defaults>
</compile_context>

<pallas_src>
import jax
import jax.numpy as jnp
from jax import lax
from jax.experimental import pallas as pl
from jax.experimental.pallas import tpu as pltpu

_VMEM_LIMIT = 32 * 1024 * 1024  # safe scoped-VMEM limit on v5e / v6e / v7x


def _full_specs(*arrays):
    """Full-array BlockSpecs for a grid=(1,) pallas_call."""
    return [pl.BlockSpec(a.shape, lambda i, nd=a.ndim: (0,) * nd) for a in arrays]


def _pick_block_rows(n, target=512):
    """Largest multiple-of-8 divisor of n that is <= target (else n itself)."""
    if n <= target:
        return n
    best = 0
    for bn in range(8, target + 1, 8):
        if n % bn == 0:
            best = bn
    return best if best else n


# ----------------------------------------------------------------------------
# Kernel 1: residual Conv1d(k=3, pad=1) + LeakyReLU(0.01) + global max pool
#           (im2col -> single bf16 MXU matmul, boundaries masked in-kernel)
# ----------------------------------------------------------------------------
def conv_pool_kernel(x_ref, w_ref, b_ref, out_ref):
    # x  : (bn, T, E)   w: (3E, E) rows = [tap0 | tap1 | tap2], (in, out) per tap
    # b  : (1, E)       out: (bn, E) = max over T of (x + LeakyReLU(conv(x)))
    bn, T, E = x_ref.shape
    x = x_ref[...]

    zrow = jnp.zeros((bn, 1, E), jnp.float32)
    left = jnp.concatenate([zrow, x[:, :T - 1, :]], axis=1)   # x[t-1] (zero at t=0)
    right = jnp.concatenate([x[:, 1:, :], zrow], axis=1)      # x[t+1] (zero at t=T-1)
    win = jnp.concatenate([left, x, right], axis=-1)          # (bn, T, 3E) im2col

    conv = jnp.dot(win.reshape(bn * T, 3 * E).astype(jnp.bfloat16),
                   w_ref[...].astype(jnp.bfloat16),
                   preferred_element_type=jnp.float32)        # (bn*T, E) f32 acc
    conv = conv.reshape(bn, T, E) + b_ref[...][None, :, :]
    act = jnp.where(conv >= 0, conv, 0.01 * conv)             # LeakyReLU(0.01)
    out_ref[...] = jnp.max(x + act, axis=1)                   # residual + max pool


def conv_pool(x, w, b):
    # x: (N, T, E) f32  ->  (N, E)
    N, T, E = x.shape
    bn = _pick_block_rows(N)
    return pl.pallas_call(
        conv_pool_kernel,
        out_shape=jax.ShapeDtypeStruct((N, E), jnp.float32),
        grid=(N // bn,),
        in_specs=[pl.BlockSpec((bn, T, E), lambda i: (i, 0, 0)),
                  pl.BlockSpec(w.shape, lambda i: (0, 0)),
                  pl.BlockSpec(b.shape, lambda i: (0, 0))],
        out_specs=pl.BlockSpec((bn, E), lambda i: (i, 0)),
        compiler_params=pltpu.CompilerParams(
            dimension_semantics=("parallel",),
            vmem_limit_bytes=_VMEM_LIMIT),
    )(x, w, b)


# ----------------------------------------------------------------------------
# Kernel 2: fused bidirectional GRU layer (PyTorch gate equations r/z/n)
#           - fused gate weights  (I,3H)/(H,3H)
#           - hoisted input projection (one big matmul per direction)
#           - fwd + bwd in one kernel, no flips / concats in HBM
# ----------------------------------------------------------------------------
def _bigru_body(x_ref, wihf_ref, whhf_ref, bihf_ref, bhhf_ref,
                wihb_ref, whhb_ref, bihb_ref, bhhb_ref,
                y_ref, gif_s, gib_s):
    L, Nb, I = x_ref.shape
    H3 = whhf_ref.shape[-1]
    H = H3 // 3

    # ---- hoisted input projections: one (L*Nb, I) x (I, 3H) matmul each ----
    x2 = x_ref[...].reshape(L * Nb, I).astype(jnp.bfloat16)
    gif_s[...] = (jnp.dot(x2, wihf_ref[...].astype(jnp.bfloat16),
                          preferred_element_type=jnp.float32)
                  + bihf_ref[...]).reshape(L, Nb, H3)
    gib_s[...] = (jnp.dot(x2, wihb_ref[...].astype(jnp.bfloat16),
                          preferred_element_type=jnp.float32)
                  + bihb_ref[...]).reshape(L, Nb, H3)

    # hoisted: bf16 recurrent weights + pre-broadcast recurrent biases
    whhf = whhf_ref[...].astype(jnp.bfloat16)
    whhb = whhb_ref[...].astype(jnp.bfloat16)
    bhhf = jnp.broadcast_to(bhhf_ref[...], (Nb, H3))
    bhhb = jnp.broadcast_to(bhhb_ref[...], (Nb, H3))

    def gru_step(gi, h, whh, bhh):
        # gi already contains x_t @ W_ih + b_ih
        gh = jnp.dot(h.astype(jnp.bfloat16), whh,
                     preferred_element_type=jnp.float32) + bhh   # (Nb, 3H)
        r = jax.nn.sigmoid(gi[:, :H] + gh[:, :H])
        z = jax.nn.sigmoid(gi[:, H:2 * H] + gh[:, H:2 * H])
        n = jnp.tanh(gi[:, 2 * H:] + r * gh[:, 2 * H:])          # r applied to W_hn.h + b_hn
        return (1.0 - z) * n + z * h

    def step(t, carry):
        h_f, h_b = carry
        tb = L - 1 - t
        h_f = gru_step(gif_s[t], h_f, whhf, bhhf)
        h_b = gru_step(gib_s[tb], h_b, whhb, bhhb)
        y_ref[t, :, :H] = h_f
        y_ref[tb, :, H:] = h_b
        return (h_f, h_b)

    h0 = jnp.zeros((Nb, H), jnp.float32)
    lax.fori_loop(0, L, step, (h0, h0))


def bigru_layer_kernel(x_ref, wihf, whhf, bihf, bhhf, wihb, whhb, bihb, bhhb,
                       y_ref, gif_s, gib_s):
    _bigru_body(x_ref, wihf, whhf, bihf, bhhf, wihb, whhb, bihb, bhhb,
                y_ref, gif_s, gib_s)


def bigru_last_kernel(x_ref, wihf, whhf, bihf, bhhf, wihb, whhb, bihb, bhhb,
                      wout_ref, bout_ref, logits_ref, gif_s, gib_s, y_s):
    _bigru_body(x_ref, wihf, whhf, bihf, bhhf, wihb, whhb, bihb, bhhb,
                y_s, gif_s, gib_s)
    # fused output Linear (lane-dense, labels padded to a multiple of 128)
    L, Nb, H2 = y_s.shape
    LPAD = logits_ref.shape[-1]
    y2 = y_s[...].reshape(L * Nb, H2).astype(jnp.bfloat16)
    logits = jnp.dot(y2, wout_ref[...].astype(jnp.bfloat16),
                     preferred_element_type=jnp.float32) + bout_ref[...]
    logits_ref[...] = logits.reshape(L, Nb, LPAD)


def bigru_layer(x, p):
    L, Nb, _ = x.shape
    H3 = p['fwd'][1].shape[-1]
    H = H3 // 3
    return pl.pallas_call(
        bigru_layer_kernel,
        out_shape=jax.ShapeDtypeStruct((L, Nb, 2 * H), jnp.float32),
        grid=(1,),
        in_specs=_full_specs(x, *p['fwd'], *p['bwd']),
        out_specs=pl.BlockSpec((L, Nb, 2 * H), lambda i: (0, 0, 0)),
        scratch_shapes=[pltpu.VMEM((L, Nb, H3), jnp.float32),
                        pltpu.VMEM((L, Nb, H3), jnp.float32)],
        compiler_params=pltpu.CompilerParams(
            dimension_semantics=("arbitrary",),
            vmem_limit_bytes=_VMEM_LIMIT),
    )(x, *p['fwd'], *p['bwd'])


def bigru_last_layer(x, p, w_out_pad, b_out_pad):
    L, Nb, _ = x.shape
    H3 = p['fwd'][1].shape[-1]
    H = H3 // 3
    LPAD = w_out_pad.shape[-1]
    return pl.pallas_call(
        bigru_last_kernel,
        out_shape=jax.ShapeDtypeStruct((L, Nb, LPAD), jnp.float32),
        grid=(1,),
        in_specs=_full_specs(x, *p['fwd'], *p['bwd'], w_out_pad, b_out_pad),
        out_specs=pl.BlockSpec((L, Nb, LPAD), lambda i: (0, 0, 0)),
        scratch_shapes=[pltpu.VMEM((L, Nb, H3), jnp.float32),
                        pltpu.VMEM((L, Nb, H3), jnp.float32),
                        pltpu.VMEM((L, Nb, 2 * H), jnp.float32)],
        compiler_params=pltpu.CompilerParams(
            dimension_semantics=("arbitrary",),
            vmem_limit_bytes=_VMEM_LIMIT),
    )(x, *p['fwd'], *p['bwd'], w_out_pad, b_out_pad)


# ----------------------------------------------------------------------------
# Parameters & forward
# ----------------------------------------------------------------------------
def init_params(key, vocab_size, E, H, rnn_layers, labels_num):
    keys = iter(jax.random.split(key, 64))
    nrm = lambda shp, s=0.1: (s * jax.random.normal(next(keys), shp)).astype(jnp.float32)

    emb = nrm((vocab_size + 1, E))
    emb = emb.at[0].set(0.0)                          # padding_idx=0

    params = {
        'emb': emb,
        'conv_w': nrm((3 * E, E)),                    # im2col weight [tap0|tap1|tap2]
        'conv_b': nrm((1, E)),
        'out_w': nrm((2 * H, labels_num)),
        'out_b': nrm((1, labels_num)),
        'gru': [],
    }
    for layer in range(rnn_layers):
        in_size = E if layer == 0 else 2 * H
        layer_p = {}
        for d in ('fwd', 'bwd'):
            layer_p[d] = (nrm((in_size, 3 * H)),      # W_ih fused (r|z|n)
                          nrm((H, 3 * H)),            # W_hh fused (r|z|n)
                          nrm((1, 3 * H)),            # b_ih
                          nrm((1, 3 * H)))            # b_hh
        params['gru'].append(layer_p)
    return params


def cnn_rnn_crf_forward(tokens, params):
    B, S, T = tokens.shape
    E = params['emb'].shape[1]
    Lnum = params['out_w'].shape[-1]

    tok_flat = tokens.reshape(B * S, T)
    char_emb = params['emb'][tok_flat]                         # (N, T, E) gather (glue)
    # dropout / bn1: eval-mode identity / unused in forward()
    token_feats = conv_pool(char_emb, params['conv_w'], params['conv_b'])   # (N, E)
    token_feats = token_feats.reshape(B, S, E)

    # GRU with batch_first=False receives (B, S, E): time axis = B (reference quirk).
    LPAD = ((Lnum + 127) // 128) * 128
    w_pad = jnp.zeros((params['out_w'].shape[0], LPAD), jnp.float32)
    w_pad = w_pad.at[:, :Lnum].set(params['out_w'])
    b_pad = jnp.zeros((1, LPAD), jnp.float32).at[:, :Lnum].set(params['out_b'])

    h = token_feats
    n_layers = len(params['gru'])
    logits_pad = None
    for li, layer in enumerate(params['gru']):
        if li < n_layers - 1:
            h = bigru_layer(h, layer)                          # (B, S, 2H)
        else:
            logits_pad = bigru_last_layer(h, layer, w_pad, b_pad)  # (B, S, LPAD)

    logits = logits_pad[:, :, :Lnum]                           # (B, S, labels)
    return jnp.transpose(logits, (0, 2, 1))                    # (B, labels, S)


if __name__ == "__main__":
    VOCAB = 50
    B, S, T = 2, 8, 16
    E, H, LABELS, RNN_LAYERS = 32, 128, 9, 2      # H = module default rnn_hidden_size

    key = jax.random.PRNGKey(0)
    k_tok, k_par = jax.random.split(key)
    tokens = jax.random.randint(k_tok, (B, S, T), 0, VOCAB + 1, dtype=jnp.int32)
    params = init_params(k_par, VOCAB, E, H, RNN_LAYERS, LABELS)

    logits = jax.jit(cnn_rnn_crf_forward)(tokens, params)
    jax.block_until_ready(logits)
    assert logits.shape == (B, LABELS, S), logits.shape
    assert bool(jnp.all(jnp.isfinite(logits)))
    print("KERNEL_OK")
</pallas_src>

<mosaic_0001>
module attributes {stable_mosaic.version = 11 : i64} {
  func.func @conv_pool_kernel(%arg0: i32, %arg1: memref<16x16x32xf32, #tpu.memory_space<vmem>>, %arg2: memref<96x32xf32, #tpu.memory_space<vmem>>, %arg3: memref<1x32xf32, #tpu.memory_space<vmem>>, %arg4: memref<16x32xf32, #tpu.memory_space<vmem>>) attributes {dimension_semantics = [#tpu.dimension_semantics<parallel>], iteration_bounds = array<i64: 1>, scalar_prefetch = 0 : i64, scratch_operands = 0 : i64, tpu.core_type = #tpu.core_type<tc>, window_params = [{transform_indices = @transform_0, window_bounds = array<i64: 16, 16, 32>}, {pipeline_mode = #tpu.pipeline_mode<synchronous>, transform_indices = @transform_1, window_bounds = array<i64: 96, 32>}, {pipeline_mode = #tpu.pipeline_mode<synchronous>, transform_indices = @transform_2, window_bounds = array<i64: 1, 32>}, {transform_indices = @transform_3, window_bounds = array<i64: 16, 32>}]} {
    %c0 = arith.constant 0 : index
    %c0_0 = arith.constant 0 : index
    %c0_1 = arith.constant 0 : index
    %0 = vector.load %arg1[%c0, %c0_0, %c0_1] : memref<16x16x32xf32, #tpu.memory_space<vmem>>, vector<16x16x32xf32>
    %cst = arith.constant 0.000000e+00 : f32
    %1 = vector.broadcast %cst : f32 to vector<16x1x32xf32>
    %2 = vector.extract_strided_slice %0 {offsets = [0, 0, 0], sizes = [16, 15, 32], strides = [1, 1, 1]} : vector<16x16x32xf32> to vector<16x15x32xf32>
    %3 = tpu.concatenate %1, %2 in 1 : vector<16x1x32xf32>, vector<16x15x32xf32> -> vector<16x16x32xf32>
    %4 = vector.extract_strided_slice %0 {offsets = [0, 1, 0], sizes = [16, 15, 32], strides = [1, 1, 1]} : vector<16x16x32xf32> to vector<16x15x32xf32>
    %5 = tpu.concatenate %4, %1 in 1 : vector<16x15x32xf32>, vector<16x1x32xf32> -> vector<16x16x32xf32>
    %6 = tpu.concatenate %3, %0, %5 in 2 : vector<16x16x32xf32>, vector<16x16x32xf32>, vector<16x16x32xf32> -> vector<16x16x96xf32>
    %7 = vector.shape_cast %6 : vector<16x16x96xf32> to vector<256x96xf32>
    %8 = arith.truncf %7 : vector<256x96xf32> to vector<256x96xbf16>
    %c0_2 = arith.constant 0 : index
    %c0_3 = arith.constant 0 : index
    %9 = vector.load %arg2[%c0_2, %c0_3] : memref<96x32xf32, #tpu.memory_space<vmem>>, vector<96x32xf32>
    %10 = arith.truncf %9 : vector<96x32xf32> to vector<96x32xbf16>
    %cst_4 = arith.constant dense<0.000000e+00> : vector<256x32xf32>
    %11 = tpu.matmul %8, %10, %cst_4 {dimension_numbers = #tpu.dot_dimension_numbers<[1], [0], [0], [1], [0, 0, 1, 1], [], []>} : vector<256x96xbf16>, vector<96x32xbf16>, vector<256x32xf32> -> vector<256x32xf32>
    %12 = vector.shape_cast %11 : vector<256x32xf32> to vector<16x16x32xf32>
    %c0_5 = arith.constant 0 : index
    %c0_6 = arith.constant 0 : index
    %13 = vector.load %arg3[%c0_5, %c0_6] : memref<1x32xf32, #tpu.memory_space<vmem>>, vector<1x32xf32>
    %14 = vector.shape_cast %13 : vector<1x32xf32> to vector<1x1x32xf32>
    %15 = vector.broadcast %14 : vector<1x1x32xf32> to vector<16x16x32xf32>
    %16 = arith.addf %12, %15 : vector<16x16x32xf32>
    %cst_7 = arith.constant 0.000000e+00 : f32
    %17 = vector.broadcast %cst_7 : f32 to vector<16x16x32xf32>
    %18 = arith.cmpf oge, %16, %17 : vector<16x16x32xf32>
    %cst_8 = arith.constant 0.00999999977 : f32
    %19 = vector.broadcast %cst_8 : f32 to vector<16x16x32xf32>
    %20 = arith.mulf %19, %16 : vector<16x16x32xf32>
    %21 = arith.select %18, %16, %20 : vector<16x16x32xi1>, vector<16x16x32xf32>
    %22 = arith.addf %0, %21 : vector<16x16x32xf32>
    %cst_9 = arith.constant dense<0xFF800000> : vector<16x32xf32>
    %23 = vector.multi_reduction <maximumf>, %22, %cst_9 [1] : vector<16x16x32xf32> to vector<16x32xf32>
    %c0_10 = arith.constant 0 : index
    %c0_11 = arith.constant 0 : index
    %24 = vector.load %arg4[%c0_10, %c0_11] : memref<16x32xf32, #tpu.memory_space<vmem>>, vector<16x32xf32>
    tpu.vector_store %arg4[%c0_10, %c0_11], %23 {strides = array<i32>} : memref<16x32xf32, #tpu.memory_space<vmem>>, vector<16x32xf32>,
    return
  }
  func.func @transform_0(%arg0: i32) -> (i32, i32, i32) {
    %c0_i32 = arith.constant 0 : i32
    %c0_i32_0 = arith.constant 0 : i32
    %c0_i32_1 = arith.constant 0 : i32
    return %arg0, %c0_i32, %c0_i32_0 : i32, i32, i32
  }
  func.func @transform_1(%arg0: i32) -> (i32, i32) {
    %c0_i32 = arith.constant 0 : i32
    %c0_i32_0 = arith.constant 0 : i32
    %c0_i32_1 = arith.constant 0 : i32
    return %c0_i32, %c0_i32_0 : i32, i32
  }
  func.func @transform_2(%arg0: i32) -> (i32, i32) {
    %c0_i32 = arith.constant 0 : i32
    %c0_i32_0 = arith.constant 0 : i32
    %c0_i32_1 = arith.constant 0 : i32
    return %c0_i32, %c0_i32_0 : i32, i32
  }
  func.func @transform_3(%arg0: i32) -> (i32, i32) {
    %c0_i32 = arith.constant 0 : i32
    %c0_i32_0 = arith.constant 0 : i32
    return %arg0, %c0_i32 : i32, i32
  }
}

module attributes {stable_mosaic.version = 11 : i64} {
  func.func @bigru_layer_kernel(%arg0: i32, %arg1: memref<2x8x32xf32, #tpu.memory_space<vmem>>, %arg2: memref<32x384xf32, #tpu.memory_space<vmem>>, %arg3: memref<128x384xf32, #tpu.memory_space<vmem>>, %arg4: memref<1x384xf32, #tpu.memory_space<vmem>>, %arg5: memref<1x384xf32, #tpu.memory_space<vmem>>, %arg6: memref<32x384xf32, #tpu.memory_space<vmem>>, %arg7: memref<128x384xf32, #tpu.memory_space<vmem>>, %arg8: memref<1x384xf32, #tpu.memory_space<vmem>>, %arg9: memref<1x384xf32, #tpu.memory_space<vmem>>, %arg10: memref<2x8x256xf32, #tpu.memory_space<vmem>>, %arg11: memref<2x8x384xf32, #tpu.memory_space<vmem>>, %arg12: memref<2x8x384xf32, #tpu.memory_space<vmem>>) attributes {dimension_semantics = [#tpu.dimension_semantics<arbitrary>], iteration_bounds = array<i64: 1>, scalar_prefetch = 0 : i64, scratch_operands = 2 : i64, tpu.core_type = #tpu.core_type<tc>, window_params = [{pipeline_mode = #tpu.pipeline_mode<synchronous>, transform_indices = @transform_0, window_bounds = array<i64: 2, 8, 32>}, {pipeline_mode = #tpu.pipeline_mode<synchronous>, transform_indices = @transform_1, window_bounds = array<i64: 32, 384>}, {pipeline_mode = #tpu.pipeline_mode<synchronous>, transform_indices = @transform_2, window_bounds = array<i64: 128, 384>}, {pipeline_mode = #tpu.pipeline_mode<synchronous>, transform_indices = @transform_3, window_bounds = array<i64: 1, 384>}, {pipeline_mode = #tpu.pipeline_mode<synchronous>, transform_indices = @transform_4, window_bounds = array<i64: 1, 384>}, {pipeline_mode = #tpu.pipeline_mode<synchronous>, transform_indices = @transform_5, window_bounds = array<i64: 32, 384>}, {pipeline_mode = #tpu.pipeline_mode<synchronous>, transform_indices = @transform_6, window_bounds = array<i64: 128, 384>}, {pipeline_mode = #tpu.pipeline_mode<synchronous>, transform_indices = @transform_7, window_bounds = array<i64: 1, 384>}, {pipeline_mode = #tpu.pipeline_mode<synchronous>, transform_indices = @transform_8, window_bounds = array<i64: 1, 384>}, {pipeline_mode = #tpu.pipeline_mode<synchronous>, transform_indices = @transform_9, window_bounds = array<i64: 2, 8, 256>}]} {
    %c0 = arith.constant 0 : index
    %c0_0 = arith.constant 0 : index
    %c0_1 = arith.constant 0 : index
    %0 = vector.load %arg1[%c0, %c0_0, %c0_1] : memref<2x8x32xf32, #tpu.memory_space<vmem>>, vector<2x8x32xf32>
    %1 = vector.shape_cast %0 : vector<2x8x32xf32> to vector<16x32xf32>
    %2 = arith.truncf %1 : vector<16x32xf32> to vector<16x32xbf16>
    %c0_2 = arith.constant 0 : index
    %c0_3 = arith.constant 0 : index
    %3 = vector.load %arg2[%c0_2, %c0_3] : memref<32x384xf32, #tpu.memory_space<vmem>>, vector<32x384xf32>
    %4 = arith.truncf %3 : vector<32x384xf32> to vector<32x384xbf16>
    %cst = arith.constant dense<0.000000e+00> : vector<16x384xf32>
    %5 = tpu.matmul %2, %4, %cst {dimension_numbers = #tpu.dot_dimension_numbers<[1], [0], [0], [1], [0, 0, 1, 1], [], []>} : vector<16x32xbf16>, vector<32x384xbf16>, vector<16x384xf32> -> vector<16x384xf32>
    %c0_4 = arith.constant 0 : index
    %c0_5 = arith.constant 0 : index
    %6 = vector.load %arg4[%c0_4, %c0_5] : memref<1x384xf32, #tpu.memory_space<vmem>>, vector<1x384xf32>
    %7 = vector.broadcast %6 : vector<1x384xf32> to vector<16x384xf32>
    %8 = arith.addf %5, %7 : vector<16x384xf32>
    %9 = vector.shape_cast %8 : vector<16x384xf32> to vector<2x8x384xf32>
    %c0_6 = arith.constant 0 : index
    %c0_7 = arith.constant 0 : index
    %c0_8 = arith.constant 0 : index
    %10 = vector.load %arg11[%c0_6, %c0_7, %c0_8] : memref<2x8x384xf32, #tpu.memory_space<vmem>>, vector<2x8x384xf32>
    tpu.vector_store %arg11[%c0_6, %c0_7, %c0_8], %9 {strides = array<i32>} : memref<2x8x384xf32, #tpu.memory_space<vmem>>, vector<2x8x384xf32>,
    %c0_9 = arith.constant 0 : index
    %c0_10 = arith.constant 0 : index
    %11 = vector.load %arg6[%c0_9, %c0_10] : memref<32x384xf32, #tpu.memory_space<vmem>>, vector<32x384xf32>
    %12 = arith.truncf %11 : vector<32x384xf32> to vector<32x384xbf16>
    %cst_11 = arith.constant dense<0.000000e+00> : vector<16x384xf32>
    %13 = tpu.matmul %2, %12, %cst_11 {dimension_numbers = #tpu.dot_dimension_numbers<[1], [0], [0], [1], [0, 0, 1, 1], [], []>} : vector<16x32xbf16>, vector<32x384xbf16>, vector<16x384xf32> -> vector<16x384xf32>
    %c0_12 = arith.constant 0 : index
    %c0_13 = arith.constant 0 : index
    %14 = vector.load %arg8[%c0_12, %c0_13] : memref<1x384xf32, #tpu.memory_space<vmem>>, vector<1x384xf32>
    %15 = vector.broadcast %14 : vector<1x384xf32> to vector<16x384xf32>
    %16 = arith.addf %13, %15 : vector<16x384xf32>
    %17 = vector.shape_cast %16 : vector<16x384xf32> to vector<2x8x384xf32>
    %c0_14 = arith.constant 0 : index
    %c0_15 = arith.constant 0 : index
    %c0_16 = arith.constant 0 : index
    %18 = vector.load %arg12[%c0_14, %c0_15, %c0_16] : memref<2x8x384xf32, #tpu.memory_space<vmem>>, vector<2x8x384xf32>
    tpu.vector_store %arg12[%c0_14, %c0_15, %c0_16], %17 {strides = array<i32>} : memref<2x8x384xf32, #tpu.memory_space<vmem>>, vector<2x8x384xf32>,
    %c0_17 = arith.constant 0 : index
    %c0_18 = arith.constant 0 : index
    %19 = vector.load %arg3[%c0_17, %c0_18] : memref<128x384xf32, #tpu.memory_space<vmem>>, vector<128x384xf32>
    %20 = arith.truncf %19 : vector<128x384xf32> to vector<128x384xbf16>
    %c0_19 = arith.constant 0 : index
    %c0_20 = arith.constant 0 : index
    %21 = vector.load %arg7[%c0_19, %c0_20] : memref<128x384xf32, #tpu.memory_space<vmem>>, vector<128x384xf32>
    %22 = arith.truncf %21 : vector<128x384xf32> to vector<128x384xbf16>
    %c0_21 = arith.constant 0 : index
    %c0_22 = arith.constant 0 : index
    %23 = vector.load %arg5[%c0_21, %c0_22] : memref<1x384xf32, #tpu.memory_space<vmem>>, vector<1x384xf32>
    %24 = vector.shape_cast %23 : vector<1x384xf32> to vector<1x384xf32>
    %25 = vector.broadcast %24 : vector<1x384xf32> to vector<8x384xf32>
    %c0_23 = arith.constant 0 : index
    %c0_24 = arith.constant 0 : index
    %26 = vector.load %arg9[%c0_23, %c0_24] : memref<1x384xf32, #tpu.memory_space<vmem>>, vector<1x384xf32>
    %27 = vector.shape_cast %26 : vector<1x384xf32> to vector<1x384xf32>
    %28 = vector.broadcast %27 : vector<1x384xf32> to vector<8x384xf32>
    %cst_25 = arith.constant 0.000000e+00 : f32
    %29 = vector.broadcast %cst_25 : f32 to vector<8x128xf32>
    %c0_i32 = arith.constant 0 : i32
    %c2_i32 = arith.constant 2 : i32
    %30 = arith.addi %c0_i32, %c2_i32 : i32
    %c1_i32 = arith.constant 1 : i32
    %31:2 = scf.for %arg13 = %c0_i32 to %30 step %c1_i32 iter_args(%arg14 = %29, %arg15 = %29) -> (vector<8x128xf32>, vector<8x128xf32>)  : i32 {
      %c1_i32_27 = arith.constant 1 : i32
      %32 = arith.subi %c1_i32_27, %arg13 : i32
      %33 = arith.index_cast %arg13 : i32 to index
      %c0_28 = arith.constant 0 : index
      %c0_29 = arith.constant 0 : index
      %34 = vector.load %arg11[%33, %c0_28, %c0_29] : memref<2x8x384xf32, #tpu.memory_space<vmem>>, vector<1x8x384xf32>
      %35 = vector.shape_cast %34 : vector<1x8x384xf32> to vector<8x384xf32>
      %36 = arith.truncf %arg14 : vector<8x128xf32> to vector<8x128xbf16>
      %cst_30 = arith.constant dense<0.000000e+00> : vector<8x384xf32>
      %37 = tpu.matmul %36, %20, %cst_30 {dimension_numbers = #tpu.dot_dimension_numbers<[1], [0], [0], [1], [0, 0, 1, 1], [], []>} : vector<8x128xbf16>, vector<128x384xbf16>, vector<8x384xf32> -> vector<8x384xf32>
      %38 = arith.addf %37, %25 : vector<8x384xf32>
      %39 = vector.extract_strided_slice %35 {offsets = [0, 0], sizes = [8, 128], strides = [1, 1]} : vector<8x384xf32> to vector<8x128xf32>
      %40 = vector.extract_strided_slice %38 {offsets = [0, 0], sizes = [8, 128], strides = [1, 1]} : vector<8x384xf32> to vector<8x128xf32>
      %41 = arith.addf %39, %40 : vector<8x128xf32>
      %42 = arith.negf %41 : vector<8x128xf32>
      %43 = math.exp %42 : vector<8x128xf32>
      %cst_31 = arith.constant 1.000000e+00 : f32
      %44 = vector.broadcast %cst_31 : f32 to vector<8x128xf32>
      %45 = arith.addf %44, %43 : vector<8x128xf32>
      %46 = arith.divf %44, %45 : vector<8x128xf32>
      %47 = vector.extract_strided_slice %35 {offsets = [0, 128], sizes = [8, 128], strides = [1, 1]} : vector<8x384xf32> to vector<8x128xf32>
      %48 = vector.extract_strided_slice %38 {offsets = [0, 128], sizes = [8, 128], strides = [1, 1]} : vector<8x384xf32> to vector<8x128xf32>
      %49 = arith.addf %47, %48 : vector<8x128xf32>
      %50 = arith.negf %49 : vector<8x128xf32>
      %51 = math.exp %50 : vector<8x128xf32>
      %cst_32 = arith.constant 1.000000e+00 : f32
      %52 = vector.broadcast %cst_32 : f32 to vector<8x128xf32>
      %53 = arith.addf %52, %51 : vector<8x128xf32>
      %54 = arith.divf %52, %53 : vector<8x128xf32>
      %55 = vector.extract_strided_slice %35 {offsets = [0, 256], sizes = [8, 128], strides = [1, 1]} : vector<8x384xf32> to vector<8x128xf32>
      %56 = vector.extract_strided_slice %38 {offsets = [0, 256], sizes = [8, 128], strides = [1, 1]} : vector<8x384xf32> to vector<8x128xf32>
      %57 = arith.mulf %46, %56 : vector<8x128xf32>
      %58 = arith.addf %55, %57 : vector<8x128xf32>
      %59 = math.tanh %58 : vector<8x128xf32>
      %cst_33 = arith.constant 1.000000e+00 : f32
      %60 = vector.broadcast %cst_33 : f32 to vector<8x128xf32>
      %61 = arith.subf %60, %54 : vector<8x128xf32>
      %62 = arith.mulf %61, %59 : vector<8x128xf32>
      %63 = arith.mulf %54, %arg14 : vector<8x128xf32>
      %64 = arith.addf %62, %63 : vector<8x128xf32>
      %65 = arith.index_cast %32 : i32 to index
      %c0_34 = arith.constant 0 : index
      %c0_35 = arith.constant 0 : index
      %66 = vector.load %arg12[%65, %c0_34, %c0_35] : memref<2x8x384xf32, #tpu.memory_space<vmem>>, vector<1x8x384xf32>
      %67 = vector.shape_cast %66 : vector<1x8x384xf32> to vector<8x384xf32>
      %68 = arith.truncf %arg15 : vector<8x128xf32> to vector<8x128xbf16>
      %cst_36 = arith.constant dense<0.000000e+00> : vector<8x384xf32>
      %69 = tpu.matmul %68, %22, %cst_36 {dimension_numbers = #tpu.dot_dimension_numbers<[1], [0], [0], [1], [0, 0, 1, 1], [], []>} : vector<8x128xbf16>, vector<128x384xbf16>, vector<8x384xf32> -> vector<8x384xf32>
      %70 = arith.addf %69, %28 : vector<8x384xf32>
      %71 = vector.extract_strided_slice %67 {offsets = [0, 0], sizes = [8, 128], strides = [1, 1]} : vector<8x384xf32> to vector<8x128xf32>
      %72 = vector.extract_strided_slice %70 {offsets = [0, 0], sizes = [8, 128], strides = [1, 1]} : vector<8x384xf32> to vector<8x128xf32>
      %73 = arith.addf %71, %72 : vector<8x128xf32>
      %74 = arith.negf %73 : vector<8x128xf32>
      %75 = math.exp %74 : vector<8x128xf32>
      %cst_37 = arith.constant 1.000000e+00 : f32
      %76 = vector.broadcast %cst_37 : f32 to vector<8x128xf32>
      %77 = arith.addf %76, %75 : vector<8x128xf32>
      %78 = arith.divf %76, %77 : vector<8x128xf32>
      %79 = vector.extract_strided_slice %67 {offsets = [0, 128], sizes = [8, 128], strides = [1, 1]} : vector<8x384xf32> to vector<8x128xf32>
      %80 = vector.extract_strided_slice %70 {offsets = [0, 128], sizes = [8, 128], strides = [1, 1]} : vector<8x384xf32> to vector<8x128xf32>
      %81 = arith.addf %79, %80 : vector<8x128xf32>
      %82 = arith.negf %81 : vector<8x128xf32>
      %83 = math.exp %82 : vector<8x128xf32>
      %cst_38 = arith.constant 1.000000e+00 : f32
      %84 = vector.broadcast %cst_38 : f32 to vector<8x128xf32>
      %85 = arith.addf %84, %83 : vector<8x128xf32>
      %86 = arith.divf %84, %85 : vector<8x128xf32>
      %87 = vector.extract_strided_slice %67 {offsets = [0, 256], sizes = [8, 128], strides = [1, 1]} : vector<8x384xf32> to vector<8x128xf32>
      %88 = vector.extract_strided_slice %70 {offsets = [0, 256], sizes = [8, 128], strides = [1, 1]} : vector<8x384xf32> to vector<8x128xf32>
      %89 = arith.mulf %78, %88 : vector<8x128xf32>
      %90 = arith.addf %87, %89 : vector<8x128xf32>
      %91 = math.tanh %90 : vector<8x128xf32>
      %cst_39 = arith.constant 1.000000e+00 : f32
      %92 = vector.broadcast %cst_39 : f32 to vector<8x128xf32>
      %93 = arith.subf %92, %86 : vector<8x128xf32>
      %94 = arith.mulf %93, %91 : vector<8x128xf32>
      %95 = arith.mulf %86, %arg15 : vector<8x128xf32>
      %96 = arith.addf %94, %95 : vector<8x128xf32>
      %97 = arith.index_cast %arg13 : i32 to index
      %c0_40 = arith.constant 0 : index
      %c0_41 = arith.constant 0 : index
      %98 = vector.load %arg10[%97, %c0_40, %c0_41] : memref<2x8x256xf32, #tpu.memory_space<vmem>>, vector<1x8x128xf32>
      %99 = vector.shape_cast %98 : vector<1x8x128xf32> to vector<8x128xf32>
      %100 = vector.shape_cast %64 : vector<8x128xf32> to vector<1x8x128xf32>
      tpu.vector_store %arg10[%97, %c0_40, %c0_41], %100 {strides = array<i32>} : memref<2x8x256xf32, #tpu.memory_space<vmem>>, vector<1x8x128xf32>,
      %101 = arith.index_cast %32 : i32 to index
      %c0_42 = arith.constant 0 : index
      %c128 = arith.constant 128 : index
      %102 = vector.load %arg10[%101, %c0_42, %c128] : memref<2x8x256xf32, #tpu.memory_space<vmem>>, vector<1x8x128xf32>
      %103 = vector.shape_cast %102 : vector<1x8x128xf32> to vector<8x128xf32>
      %104 = vector.shape_cast %96 : vector<8x128xf32> to vector<1x8x128xf32>
      tpu.vector_store %arg10[%101, %c0_42, %c128], %104 {strides = array<i32>} : memref<2x8x256xf32, #tpu.memory_space<vmem>>, vector<1x8x128xf32>,
      scf.yield %64, %96 : vector<8x128xf32>, vector<8x128xf32>
    }
    %c2_i32_26 = arith.constant 2 : i32
    return
  }
  func.func @transform_0(%arg0: i32) -> (i32, i32, i32) {
    %c0_i32 = arith.constant 0 : i32
    %c0_i32_0 = arith.constant 0 : i32
    %c0_i32_1 = arith.constant 0 : i32
    %c0_i32_2 = arith.constant 0 : i32
    return %c0_i32, %c0_i32_0, %c0_i32_1 : i32, i32, i32
  }
  func.func @transform_1(%arg0: i32) -> (i32, i32) {
    %c0_i32 = arith.constant 0 : i32
    %c0_i32_0 = arith.constant 0 : i32
    %c0_i32_1 = arith.constant 0 : i32
    return %c0_i32, %c0_i32_0 : i32, i32
  }
  func.func @transform_2(%arg0: i32) -> (i32, i32) {
    %c0_i32 = arith.constant 0 : i32
    %c0_i32_0 = arith.constant 0 : i32
    %c0_i32_1 = arith.constant 0 : i32
    return %c0_i32, %c0_i32_0 : i32, i32
  }
  func.func @transform_3(%arg0: i32) -> (i32, i32) {
    %c0_i32 = arith.constant 0 : i32
    %c0_i32_0 = arith.constant 0 : i32
    %c0_i32_1 = arith.constant 0 : i32
    return %c0_i32, %c0_i32_0 : i32, i32
  }
  func.func @transform_4(%arg0: i32) -> (i32, i32) {
    %c0_i32 = arith.constant 0 : i32
    %c0_i32_0 = arith.constant 0 : i32
    %c0_i32_1 = arith.constant 0 : i32
    return %c0_i32, %c0_i32_0 : i32, i32
  }
  func.func @transform_5(%arg0: i32) -> (i32, i32) {
    %c0_i32 = arith.constant 0 : i32
    %c0_i32_0 = arith.constant 0 : i32
    %c0_i32_1 = arith.constant 0 : i32
    return %c0_i32, %c0_i32_0 : i32, i32
  }
  func.func @transform_6(%arg0: i32) -> (i32, i32) {
    %c0_i32 = arith.constant 0 : i32
    %c0_i32_0 = arith.constant 0 : i32
    %c0_i32_1 = arith.constant 0 : i32
    return %c0_i32, %c0_i32_0 : i32, i32
  }
  func.func @transform_7(%arg0: i32) -> (i32, i32) {
    %c0_i32 = arith.constant 0 : i32
    %c0_i32_0 = arith.constant 0 : i32
    %c0_i32_1 = arith.constant 0 : i32
    return %c0_i32, %c0_i32_0 : i32, i32
  }
  func.func @transform_8(%arg0: i32) -> (i32, i32) {
    %c0_i32 = arith.constant 0 : i32
    %c0_i32_0 = arith.constant 0 : i32
    %c0_i32_1 = arith.constant 0 : i32
    return %c0_i32, %c0_i32_0 : i32, i32
  }
  func.func @transform_9(%arg0: i32) -> (i32, i32, i32) {
    %c0_i32 = arith.constant 0 : i32
    %c0_i32_0 = arith.constant 0 : i32
    %c0_i32_1 = arith.constant 0 : i32
    %c0_i32_2 = arith.constant 0 : i32
    return %c0_i32, %c0_i32_0, %c0_i32_1 : i32, i32, i32
  }
}

module attributes {stable_mosaic.version = 11 : i64} {
  func.func @bigru_last_kernel(%arg0: i32, %arg1: memref<2x8x256xf32, #tpu.memory_space<vmem>>, %arg2: memref<256x384xf32, #tpu.memory_space<vmem>>, %arg3: memref<128x384xf32, #tpu.memory_space<vmem>>, %arg4: memref<1x384xf32, #tpu.memory_space<vmem>>, %arg5: memref<1x384xf32, #tpu.memory_space<vmem>>, %arg6: memref<256x384xf32, #tpu.memory_space<vmem>>, %arg7: memref<128x384xf32, #tpu.memory_space<vmem>>, %arg8: memref<1x384xf32, #tpu.memory_space<vmem>>, %arg9: memref<1x384xf32, #tpu.memory_space<vmem>>, %arg10: memref<256x128xf32, #tpu.memory_space<vmem>>, %arg11: memref<1x128xf32, #tpu.memory_space<vmem>>, %arg12: memref<2x8x128xf32, #tpu.memory_space<vmem>>, %arg13: memref<2x8x384xf32, #tpu.memory_space<vmem>>, %arg14: memref<2x8x384xf32, #tpu.memory_space<vmem>>, %arg15: memref<2x8x256xf32, #tpu.memory_space<vmem>>) attributes {dimension_semantics = [#tpu.dimension_semantics<arbitrary>], iteration_bounds = array<i64: 1>, scalar_prefetch = 0 : i64, scratch_operands = 3 : i64, tpu.core_type = #tpu.core_type<tc>, window_params = [{pipeline_mode = #tpu.pipeline_mode<synchronous>, transform_indices = @transform_0, window_bounds = array<i64: 2, 8, 256>}, {pipeline_mode = #tpu.pipeline_mode<synchronous>, transform_indices = @transform_1, window_bounds = array<i64: 256, 384>}, {pipeline_mode = #tpu.pipeline_mode<synchronous>, transform_indices = @transform_2, window_bounds = array<i64: 128, 384>}, {pipeline_mode = #tpu.pipeline_mode<synchronous>, transform_indices = @transform_3, window_bounds = array<i64: 1, 384>}, {pipeline_mode = #tpu.pipeline_mode<synchronous>, transform_indices = @transform_4, window_bounds = array<i64: 1, 384>}, {pipeline_mode = #tpu.pipeline_mode<synchronous>, transform_indices = @transform_5, window_bounds = array<i64: 256, 384>}, {pipeline_mode = #tpu.pipeline_mode<synchronous>, transform_indices = @transform_6, window_bounds = array<i64: 128, 384>}, {pipeline_mode = #tpu.pipeline_mode<synchronous>, transform_indices = @transform_7, window_bounds = array<i64: 1, 384>}, {pipeline_mode = #tpu.pipeline_mode<synchronous>, transform_indices = @transform_8, window_bounds = array<i64: 1, 384>}, {pipeline_mode = #tpu.pipeline_mode<synchronous>, transform_indices = @transform_9, window_bounds = array<i64: 256, 128>}, {pipeline_mode = #tpu.pipeline_mode<synchronous>, transform_indices = @transform_10, window_bounds = array<i64: 1, 128>}, {pipeline_mode = #tpu.pipeline_mode<synchronous>, transform_indices = @transform_11, window_bounds = array<i64: 2, 8, 128>}]} {
    %c0 = arith.constant 0 : index
    %c0_0 = arith.constant 0 : index
    %c0_1 = arith.constant 0 : index
    %0 = vector.load %arg1[%c0, %c0_0, %c0_1] : memref<2x8x256xf32, #tpu.memory_space<vmem>>, vector<2x8x256xf32>
    %1 = vector.shape_cast %0 : vector<2x8x256xf32> to vector<16x256xf32>
    %2 = arith.truncf %1 : vector<16x256xf32> to vector<16x256xbf16>
    %c0_2 = arith.constant 0 : index
    %c0_3 = arith.constant 0 : index
    %3 = vector.load %arg2[%c0_2, %c0_3] : memref<256x384xf32, #tpu.memory_space<vmem>>, vector<256x384xf32>
    %4 = arith.truncf %3 : vector<256x384xf32> to vector<256x384xbf16>
    %cst = arith.constant dense<0.000000e+00> : vector<16x384xf32>
    %5 = tpu.matmul %2, %4, %cst {dimension_numbers = #tpu.dot_dimension_numbers<[1], [0], [0], [1], [0, 0, 1, 1], [], []>} : vector<16x256xbf16>, vector<256x384xbf16>, vector<16x384xf32> -> vector<16x384xf32>
    %c0_4 = arith.constant 0 : index
    %c0_5 = arith.constant 0 : index
    %6 = vector.load %arg4[%c0_4, %c0_5] : memref<1x384xf32, #tpu.memory_space<vmem>>, vector<1x384xf32>
    %7 = vector.broadcast %6 : vector<1x384xf32> to vector<16x384xf32>
    %8 = arith.addf %5, %7 : vector<16x384xf32>
    %9 = vector.shape_cast %8 : vector<16x384xf32> to vector<2x8x384xf32>
    %c0_6 = arith.constant 0 : index
    %c0_7 = arith.constant 0 : index
    %c0_8 = arith.constant 0 : index
    %10 = vector.load %arg13[%c0_6, %c0_7, %c0_8] : memref<2x8x384xf32, #tpu.memory_space<vmem>>, vector<2x8x384xf32>
    tpu.vector_store %arg13[%c0_6, %c0_7, %c0_8], %9 {strides = array<i32>} : memref<2x8x384xf32, #tpu.memory_space<vmem>>, vector<2x8x384xf32>,
    %c0_9 = arith.constant 0 : index
    %c0_10 = arith.constant 0 : index
    %11 = vector.load %arg6[%c0_9, %c0_10] : memref<256x384xf32, #tpu.memory_space<vmem>>, vector<256x384xf32>
    %12 = arith.truncf %11 : vector<256x384xf32> to vector<256x384xbf16>
    %cst_11 = arith.constant dense<0.000000e+00> : vector<16x384xf32>
    %13 = tpu.matmul %2, %12, %cst_11 {dimension_numbers = #tpu.dot_dimension_numbers<[1], [0], [0], [1], [0, 0, 1, 1], [], []>} : vector<16x256xbf16>, vector<256x384xbf16>, vector<16x384xf32> -> vector<16x384xf32>
    %c0_12 = arith.constant 0 : index
    %c0_13 = arith.constant 0 : index
    %14 = vector.load %arg8[%c0_12, %c0_13] : memref<1x384xf32, #tpu.memory_space<vmem>>, vector<1x384xf32>
    %15 = vector.broadcast %14 : vector<1x384xf32> to vector<16x384xf32>
    %16 = arith.addf %13, %15 : vector<16x384xf32>
    %17 = vector.shape_cast %16 : vector<16x384xf32> to vector<2x8x384xf32>
    %c0_14 = arith.constant 0 : index
    %c0_15 = arith.constant 0 : index
    %c0_16 = arith.constant 0 : index
    %18 = vector.load %arg14[%c0_14, %c0_15, %c0_16] : memref<2x8x384xf32, #tpu.memory_space<vmem>>, vector<2x8x384xf32>
    tpu.vector_store %arg14[%c0_14, %c0_15, %c0_16], %17 {strides = array<i32>} : memref<2x8x384xf32, #tpu.memory_space<vmem>>, vector<2x8x384xf32>,
    %c0_17 = arith.constant 0 : index
    %c0_18 = arith.constant 0 : index
    %19 = vector.load %arg3[%c0_17, %c0_18] : memref<128x384xf32, #tpu.memory_space<vmem>>, vector<128x384xf32>
    %20 = arith.truncf %19 : vector<128x384xf32> to vector<128x384xbf16>
    %c0_19 = arith.constant 0 : index
    %c0_20 = arith.constant 0 : index
    %21 = vector.load %arg7[%c0_19, %c0_20] : memref<128x384xf32, #tpu.memory_space<vmem>>, vector<128x384xf32>
    %22 = arith.truncf %21 : vector<128x384xf32> to vector<128x384xbf16>
    %c0_21 = arith.constant 0 : index
    %c0_22 = arith.constant 0 : index
    %23 = vector.load %arg5[%c0_21, %c0_22] : memref<1x384xf32, #tpu.memory_space<vmem>>, vector<1x384xf32>
    %24 = vector.shape_cast %23 : vector<1x384xf32> to vector<1x384xf32>
    %25 = vector.broadcast %24 : vector<1x384xf32> to vector<8x384xf32>
    %c0_23 = arith.constant 0 : index
    %c0_24 = arith.constant 0 : index
    %26 = vector.load %arg9[%c0_23, %c0_24] : memref<1x384xf32, #tpu.memory_space<vmem>>, vector<1x384xf32>
    %27 = vector.shape_cast %26 : vector<1x384xf32> to vector<1x384xf32>
    %28 = vector.broadcast %27 : vector<1x384xf32> to vector<8x384xf32>
    %cst_25 = arith.constant 0.000000e+00 : f32
    %29 = vector.broadcast %cst_25 : f32 to vector<8x128xf32>
    %c0_i32 = arith.constant 0 : i32
    %c2_i32 = arith.constant 2 : i32
    %30 = arith.addi %c0_i32, %c2_i32 : i32
    %c1_i32 = arith.constant 1 : i32
    %31:2 = scf.for %arg16 = %c0_i32 to %30 step %c1_i32 iter_args(%arg17 = %29, %arg18 = %29) -> (vector<8x128xf32>, vector<8x128xf32>)  : i32 {
      %c1_i32_38 = arith.constant 1 : i32
      %43 = arith.subi %c1_i32_38, %arg16 : i32
      %44 = arith.index_cast %arg16 : i32 to index
      %c0_39 = arith.constant 0 : index
      %c0_40 = arith.constant 0 : index
      %45 = vector.load %arg13[%44, %c0_39, %c0_40] : memref<2x8x384xf32, #tpu.memory_space<vmem>>, vector<1x8x384xf32>
      %46 = vector.shape_cast %45 : vector<1x8x384xf32> to vector<8x384xf32>
      %47 = arith.truncf %arg17 : vector<8x128xf32> to vector<8x128xbf16>
      %cst_41 = arith.constant dense<0.000000e+00> : vector<8x384xf32>
      %48 = tpu.matmul %47, %20, %cst_41 {dimension_numbers = #tpu.dot_dimension_numbers<[1], [0], [0], [1], [0, 0, 1, 1], [], []>} : vector<8x128xbf16>, vector<128x384xbf16>, vector<8x384xf32> -> vector<8x384xf32>
      %49 = arith.addf %48, %25 : vector<8x384xf32>
      %50 = vector.extract_strided_slice %46 {offsets = [0, 0], sizes = [8, 128], strides = [1, 1]} : vector<8x384xf32> to vector<8x128xf32>
      %51 = vector.extract_strided_slice %49 {offsets = [0, 0], sizes = [8, 128], strides = [1, 1]} : vector<8x384xf32> to vector<8x128xf32>
      %52 = arith.addf %50, %51 : vector<8x128xf32>
      %53 = arith.negf %52 : vector<8x128xf32>
      %54 = math.exp %53 : vector<8x128xf32>
      %cst_42 = arith.constant 1.000000e+00 : f32
      %55 = vector.broadcast %cst_42 : f32 to vector<8x128xf32>
      %56 = arith.addf %55, %54 : vector<8x128xf32>
      %57 = arith.divf %55, %56 : vector<8x128xf32>
      %58 = vector.extract_strided_slice %46 {offsets = [0, 128], sizes = [8, 128], strides = [1, 1]} : vector<8x384xf32> to vector<8x128xf32>
      %59 = vector.extract_strided_slice %49 {offsets = [0, 128], sizes = [8, 128], strides = [1, 1]} : vector<8x384xf32> to vector<8x128xf32>
      %60 = arith.addf %58, %59 : vector<8x128xf32>
      %61 = arith.negf %60 : vector<8x128xf32>
      %62 = math.exp %61 : vector<8x128xf32>
      %cst_43 = arith.constant 1.000000e+00 : f32
      %63 = vector.broadcast %cst_43 : f32 to vector<8x128xf32>
      %64 = arith.addf %63, %62 : vector<8x128xf32>
      %65 = arith.divf %63, %64 : vector<8x128xf32>
      %66 = vector.extract_strided_slice %46 {offsets = [0, 256], sizes = [8, 128], strides = [1, 1]} : vector<8x384xf32> to vector<8x128xf32>
      %67 = vector.extract_strided_slice %49 {offsets = [0, 256], sizes = [8, 128], strides = [1, 1]} : vector<8x384xf32> to vector<8x128xf32>
      %68 = arith.mulf %57, %67 : vector<8x128xf32>
      %69 = arith.addf %66, %68 : vector<8x128xf32>
      %70 = math.tanh %69 : vector<8x128xf32>
      %cst_44 = arith.constant 1.000000e+00 : f32
      %71 = vector.broadcast %cst_44 : f32 to vector<8x128xf32>
      %72 = arith.subf %71, %65 : vector<8x128xf32>
      %73 = arith.mulf %72, %70 : vector<8x128xf32>
      %74 = arith.mulf %65, %arg17 : vector<8x128xf32>
      %75 = arith.addf %73, %74 : vector<8x128xf32>
      %76 = arith.index_cast %43 : i32 to index
      %c0_45 = arith.constant 0 : index
      %c0_46 = arith.constant 0 : index
      %77 = vector.load %arg14[%76, %c0_45, %c0_46] : memref<2x8x384xf32, #tpu.memory_space<vmem>>, vector<1x8x384xf32>
      %78 = vector.shape_cast %77 : vector<1x8x384xf32> to vector<8x384xf32>
      %79 = arith.truncf %arg18 : vector<8x128xf32> to vector<8x128xbf16>
      %cst_47 = arith.constant dense<0.000000e+00> : vector<8x384xf32>
      %80 = tpu.matmul %79, %22, %cst_47 {dimension_numbers = #tpu.dot_dimension_numbers<[1], [0], [0], [1], [0, 0, 1, 1], [], []>} : vector<8x128xbf16>, vector<128x384xbf16>, vector<8x384xf32> -> vector<8x384xf32>
      %81 = arith.addf %80, %28 : vector<8x384xf32>
      %82 = vector.extract_strided_slice %78 {offsets = [0, 0], sizes = [8, 128], strides = [1, 1]} : vector<8x384xf32> to vector<8x128xf32>
      %83 = vector.extract_strided_slice %81 {offsets = [0, 0], sizes = [8, 128], strides = [1, 1]} : vector<8x384xf32> to vector<8x128xf32>
      %84 = arith.addf %82, %83 : vector<8x128xf32>
      %85 = arith.negf %84 : vector<8x128xf32>
      %86 = math.exp %85 : vector<8x128xf32>
      %cst_48 = arith.constant 1.000000e+00 : f32
      %87 = vector.broadcast %cst_48 : f32 to vector<8x128xf32>
      %88 = arith.addf %87, %86 : vector<8x128xf32>
      %89 = arith.divf %87, %88 : vector<8x128xf32>
      %90 = vector.extract_strided_slice %78 {offsets = [0, 128], sizes = [8, 128], strides = [1, 1]} : vector<8x384xf32> to vector<8x128xf32>
      %91 = vector.extract_strided_slice %81 {offsets = [0, 128], sizes = [8, 128], strides = [1, 1]} : vector<8x384xf32> to vector<8x128xf32>
      %92 = arith.addf %90, %91 : vector<8x128xf32>
      %93 = arith.negf %92 : vector<8x128xf32>
      %94 = math.exp %93 : vector<8x128xf32>
      %cst_49 = arith.constant 1.000000e+00 : f32
      %95 = vector.broadcast %cst_49 : f32 to vector<8x128xf32>
      %96 = arith.addf %95, %94 : vector<8x128xf32>
      %97 = arith.divf %95, %96 : vector<8x128xf32>
      %98 = vector.extract_strided_slice %78 {offsets = [0, 256], sizes = [8, 128], strides = [1, 1]} : vector<8x384xf32> to vector<8x128xf32>
      %99 = vector.extract_strided_slice %81 {offsets = [0, 256], sizes = [8, 128], strides = [1, 1]} : vector<8x384xf32> to vector<8x128xf32>
      %100 = arith.mulf %89, %99 : vector<8x128xf32>
      %101 = arith.addf %98, %100 : vector<8x128xf32>
      %102 = math.tanh %101 : vector<8x128xf32>
      %cst_50 = arith.constant 1.000000e+00 : f32
      %103 = vector.broadcast %cst_50 : f32 to vector<8x128xf32>
      %104 = arith.subf %103, %97 : vector<8x128xf32>
      %105 = arith.mulf %104, %102 : vector<8x128xf32>
      %106 = arith.mulf %97, %arg18 : vector<8x128xf32>
      %107 = arith.addf %105, %106 : vector<8x128xf32>
      %108 = arith.index_cast %arg16 : i32 to index
      %c0_51 = arith.constant 0 : index
      %c0_52 = arith.constant 0 : index
      %109 = vector.load %arg15[%108, %c0_51, %c0_52] : memref<2x8x256xf32, #tpu.memory_space<vmem>>, vector<1x8x128xf32>
      %110 = vector.shape_cast %109 : vector<1x8x128xf32> to vector<8x128xf32>
      %111 = vector.shape_cast %75 : vector<8x128xf32> to vector<1x8x128xf32>
      tpu.vector_store %arg15[%108, %c0_51, %c0_52], %111 {strides = array<i32>} : memref<2x8x256xf32, #tpu.memory_space<vmem>>, vector<1x8x128xf32>,
      %112 = arith.index_cast %43 : i32 to index
      %c0_53 = arith.constant 0 : index
      %c128 = arith.constant 128 : index
      %113 = vector.load %arg15[%112, %c0_53, %c128] : memref<2x8x256xf32, #tpu.memory_space<vmem>>, vector<1x8x128xf32>
      %114 = vector.shape_cast %113 : vector<1x8x128xf32> to vector<8x128xf32>
      %115 = vector.shape_cast %107 : vector<8x128xf32> to vector<1x8x128xf32>
      tpu.vector_store %arg15[%112, %c0_53, %c128], %115 {strides = array<i32>} : memref<2x8x256xf32, #tpu.memory_space<vmem>>, vector<1x8x128xf32>,
      scf.yield %75, %107 : vector<8x128xf32>, vector<8x128xf32>
    }
    %c2_i32_26 = arith.constant 2 : i32
    %c0_27 = arith.constant 0 : index
    %c0_28 = arith.constant 0 : index
    %c0_29 = arith.constant 0 : index
    %32 = vector.load %arg15[%c0_27, %c0_28, %c0_29] : memref<2x8x256xf32, #tpu.memory_space<vmem>>, vector<2x8x256xf32>
    %33 = vector.shape_cast %32 : vector<2x8x256xf32> to vector<16x256xf32>
    %34 = arith.truncf %33 : vector<16x256xf32> to vector<16x256xbf16>
    %c0_30 = arith.constant 0 : index
    %c0_31 = arith.constant 0 : index
    %35 = vector.load %arg10[%c0_30, %c0_31] : memref<256x128xf32, #tpu.memory_space<vmem>>, vector<256x128xf32>
    %36 = arith.truncf %35 : vector<256x128xf32> to vector<256x128xbf16>
    %cst_32 = arith.constant dense<0.000000e+00> : vector<16x128xf32>
    %37 = tpu.matmul %34, %36, %cst_32 {dimension_numbers = #tpu.dot_dimension_numbers<[1], [0], [0], [1], [0, 0, 1, 1], [], []>} : vector<16x256xbf16>, vector<256x128xbf16>, vector<16x128xf32> -> vector<16x128xf32>
    %c0_33 = arith.constant 0 : index
    %c0_34 = arith.constant 0 : index
    %38 = vector.load %arg11[%c0_33, %c0_34] : memref<1x128xf32, #tpu.memory_space<vmem>>, vector<1x128xf32>
    %39 = vector.broadcast %38 : vector<1x128xf32> to vector<16x128xf32>
    %40 = arith.addf %37, %39 : vector<16x128xf32>
    %41 = vector.shape_cast %40 : vector<16x128xf32> to vector<2x8x128xf32>
    %c0_35 = arith.constant 0 : index
    %c0_36 = arith.constant 0 : index
    %c0_37 = arith.constant 0 : index
    %42 = vector.load %arg12[%c0_35, %c0_36, %c0_37] : memref<2x8x128xf32, #tpu.memory_space<vmem>>, vector<2x8x128xf32>
    tpu.vector_store %arg12[%c0_35, %c0_36, %c0_37], %41 {strides = array<i32>} : memref<2x8x128xf32, #tpu.memory_space<vmem>>, vector<2x8x128xf32>,
    return
  }
  func.func @transform_0(%arg0: i32) -> (i32, i32, i32) {
    %c0_i32 = arith.constant 0 : i32
    %c0_i32_0 = arith.constant 0 : i32
    %c0_i32_1 = arith.constant 0 : i32
    %c0_i32_2 = arith.constant 0 : i32
    return %c0_i32, %c0_i32_0, %c0_i32_1 : i32, i32, i32
  }
  func.func @transform_1(%arg0: i32) -> (i32, i32) {
    %c0_i32 = arith.constant 0 : i32
    %c0_i32_0 = arith.constant 0 : i32
    %c0_i32_1 = arith.constant 0 : i32
    return %c0_i32, %c0_i32_0 : i32, i32
  }
  func.func @transform_2(%arg0: i32) -> (i32, i32) {
    %c0_i32 = arith.constant 0 : i32
    %c0_i32_0 = arith.constant 0 : i32
    %c0_i32_1 = arith.constant 0 : i32
    return %c0_i32, %c0_i32_0 : i32, i32
  }
  func.func @transform_3(%arg0: i32) -> (i32, i32) {
    %c0_i32 = arith.constant 0 : i32
    %c0_i32_0 = arith.constant 0 : i32
    %c0_i32_1 = arith.constant 0 : i32
    return %c0_i32, %c0_i32_0 : i32, i32
  }
  func.func @transform_4(%arg0: i32) -> (i32, i32) {
    %c0_i32 = arith.constant 0 : i32
    %c0_i32_0 = arith.constant 0 : i32
    %c0_i32_1 = arith.constant 0 : i32
    return %c0_i32, %c0_i32_0 : i32, i32
  }
  func.func @transform_5(%arg0: i32) -> (i32, i32) {
    %c0_i32 = arith.constant 0 : i32
    %c0_i32_0 = arith.constant 0 : i32
    %c0_i32_1 = arith.constant 0 : i32
    return %c0_i32, %c0_i32_0 : i32, i32
  }
  func.func @transform_6(%arg0: i32) -> (i32, i32) {
    %c0_i32 = arith.constant 0 : i32
    %c0_i32_0 = arith.constant 0 : i32
    %c0_i32_1 = arith.constant 0 : i32
    return %c0_i32, %c0_i32_0 : i32, i32
  }
  func.func @transform_7(%arg0: i32) -> (i32, i32) {
    %c0_i32 = arith.constant 0 : i32
    %c0_i32_0 = arith.constant 0 : i32
    %c0_i32_1 = arith.constant 0 : i32
    return %c0_i32, %c0_i32_0 : i32, i32
  }
  func.func @transform_8(%arg0: i32) -> (i32, i32) {
    %c0_i32 = arith.constant 0 : i32
    %c0_i32_0 = arith.constant 0 : i32
    %c0_i32_1 = arith.constant 0 : i32
    return %c0_i32, %c0_i32_0 : i32, i32
  }
  func.func @transform_9(%arg0: i32) -> (i32, i32) {
    %c0_i32 = arith.constant 0 : i32
    %c0_i32_0 = arith.constant 0 : i32
    %c0_i32_1 = arith.constant 0 : i32
    return %c0_i32, %c0_i32_0 : i32, i32
  }
  func.func @transform_10(%arg0: i32) -> (i32, i32) {
    %c0_i32 = arith.constant 0 : i32
    %c0_i32_0 = arith.constant 0 : i32
    %c0_i32_1 = arith.constant 0 : i32
    return %c0_i32, %c0_i32_0 : i32, i32
  }
  func.func @transform_11(%arg0: i32) -> (i32, i32, i32) {
    %c0_i32 = arith.constant 0 : i32
    %c0_i32_0 = arith.constant 0 : i32
    %c0_i32_1 = arith.constant 0 : i32
    %c0_i32_2 = arith.constant 0 : i32
    return %c0_i32, %c0_i32_0, %c0_i32_1 : i32, i32, i32
  }
}

</mosaic_0001>

<llo_original>
// kernel: cnn_rnn_crf_forward.3
$region0: #{cnn_rnn_crf_forward.3}
  #allocation0 [shape = 'u32[]', space=smem, size = 0x4, offset = 0x4, fixed_abs, tag = 'smem constant byte address 0x4 - core index']
  #allocation1 [shape = 'u32[144,128]{1,0:T(1,128)}', space=vmem, size = 0x12000, scoped, tag = 'internal scratch']
  %s0 = inlined_call_operand.vmem [shape: f32[16,16,32], index: 0, kind: input, shape index: {}]
  %s1 = inlined_call_operand.vmem [shape: f32[96,32], index: 1, kind: input, shape index: {}]
  %s2 = inlined_call_operand.vmem [shape: f32[1,32], index: 2, kind: input, shape index: {}]
  %s3 = inlined_call_operand.vmem [shape: f32[16,32], index: 3, kind: output, shape index: {}]
  %s4 = sld [smem:[#allocation0]]
  $region22: #{cnn_rnn_crf_forward.3} parent=0
    _
  %s6 = ssub.s32 1, %s4
  %s7 = scalar_select 0, %s6, %s4
  // Predicated region
  $region2: #{cnn_rnn_crf_forward.3} parent=0 // pred_check
    _
  $region3: #{cnn_rnn_crf_forward.3} parent=0 // pred_check_branch
    %9 = sbr.rel (0) target = $region5
  $region4: #{cnn_rnn_crf_forward.3} parent=0 // pred_region
    _
  $region5: #{cnn_rnn_crf_forward.3} parent=0 // pred_fallthru
    _
  // Predicated region
  $region6: #{cnn_rnn_crf_forward.3} parent=0 // pred_check
    _
  $region7: #{cnn_rnn_crf_forward.3} parent=0 // pred_check_branch
    %11 = sbr.rel (0) target = $region9
  $region8: #{cnn_rnn_crf_forward.3} parent=0 // pred_region
    _
  $region9: #{cnn_rnn_crf_forward.3} parent=0 // pred_fallthru
    _
  // Predicated region
  $region10: #{cnn_rnn_crf_forward.3} parent=0 // pred_check
    _
  $region11: #{cnn_rnn_crf_forward.3} parent=0 // pred_check_branch
    %13 = sbr.rel (0) target = $region13
  $region12: #{cnn_rnn_crf_forward.3} parent=0 // pred_region
    _
  $region13: #{cnn_rnn_crf_forward.3} parent=0 // pred_fallthru
    _
  %v15 = vld [vmem:[%s0] sm:$0xff]
  %v16 = vld [vmem:[%s0 + $0x8] sm:$0xff]
  %v17 = vld [vmem:[%s0 + $0x10] sm:$0xff]
  %v18 = vld [vmem:[%s0 + $0x18] sm:$0xff]
  %v19 = vld [vmem:[%s0 + $0x20] sm:$0xff]
  %v20 = vld [vmem:[%s0 + $0x28] sm:$0xff]
  %v21 = vld [vmem:[%s0 + $0x30] sm:$0xff]
  %v22 = vld [vmem:[%s0 + $0x38] sm:$0xff]
  %v23 = vld [vmem:[%s0 + $0x40] sm:$0xff]
  %v24 = vld [vmem:[%s0 + $0x48] sm:$0xff]
  %v25 = vld [vmem:[%s0 + $0x50] sm:$0xff]
  %v26 = vld [vmem:[%s0 + $0x58] sm:$0xff]
  %v27 = vld [vmem:[%s0 + $0x60] sm:$0xff]
  %v28 = vld [vmem:[%s0 + $0x68] sm:$0xff]
  %v29 = vld [vmem:[%s0 + $0x70] sm:$0xff]
  %v30 = vld [vmem:[%s0 + $0x78] sm:$0xff]
  %v31 = vld [vmem:[%s0 + $0x80] sm:$0xff]
  %v32 = vld [vmem:[%s0 + $0x88] sm:$0xff]
  %v33 = vld [vmem:[%s0 + $0x90] sm:$0xff]
  %v34 = vld [vmem:[%s0 + $0x98] sm:$0xff]
  %v35 = vld [vmem:[%s0 + $0xa0] sm:$0xff]
  %v36 = vld [vmem:[%s0 + $0xa8] sm:$0xff]
  %v37 = vld [vmem:[%s0 + $0xb0] sm:$0xff]
  %v38 = vld [vmem:[%s0 + $0xb8] sm:$0xff]
  %v39 = vld [vmem:[%s0 + $0xc0] sm:$0xff]
  %v40 = vld [vmem:[%s0 + $0xc8] sm:$0xff]
  %v41 = vld [vmem:[%s0 + $0xd0] sm:$0xff]
  %v42 = vld [vmem:[%s0 + $0xd8] sm:$0xff]
  %v43 = vld [vmem:[%s0 + $0xe0] sm:$0xff]
  %v44 = vld [vmem:[%s0 + $0xe8] sm:$0xff]
  %v45 = vld [vmem:[%s0 + $0xf0] sm:$0xff]
  %v46 = vld [vmem:[%s0 + $0xf8] sm:$0xff]
  %vm79 = vcmask 1040384
  %v80 = vrot.slane %v15, 7
  %v81 = vrot.slane %v16, 7
  %v82 = vsel %vm79, %v80, %v81
  %v83 = vrot.slane %v17, 7
  %v84 = vrot.slane %v18, 7
  %v85 = vsel %vm79, %v83, %v84
  %v86 = vrot.slane %v19, 7
  %v87 = vrot.slane %v20, 7
  %v88 = vsel %vm79, %v86, %v87
  %v89 = vrot.slane %v21, 7
  %v90 = vrot.slane %v22, 7
  %v91 = vsel %vm79, %v89, %v90
  %v92 = vrot.slane %v23, 7
  %v93 = vrot.slane %v24, 7
  %v94 = vsel %vm79, %v92, %v93
  %v95 = vrot.slane %v25, 7
  %v96 = vrot.slane %v26, 7
  %v97 = vsel %vm79, %v95, %v96
  %v98 = vrot.slane %v27, 7
  %v99 = vrot.slane %v28, 7
  %v100 = vsel %vm79, %v98, %v99
  %v101 = vrot.slane %v29, 7
  %v102 = vrot.slane %v30, 7
  %v103 = vsel %vm79, %v101, %v102
  %v104 = vrot.slane %v31, 7
  %v105 = vrot.slane %v32, 7
  %v106 = vsel %vm79, %v104, %v105
  %v107 = vrot.slane %v33, 7
  %v108 = vrot.slane %v34, 7
  %v109 = vsel %vm79, %v107, %v108
  %v110 = vrot.slane %v35, 7
  %v111 = vrot.slane %v36, 7
  %v112 = vsel %vm79, %v110, %v111
  %v113 = vrot.slane %v37, 7
  %v114 = vrot.slane %v38, 7
  %v115 = vsel %vm79, %v113, %v114
  %v116 = vrot.slane %v39, 7
  %v117 = vrot.slane %v40, 7
  %v118 = vsel %vm79, %v116, %v117
  %v119 = vrot.slane %v41, 7
  %v120 = vrot.slane %v42, 7
  %v121 = vsel %vm79, %v119, %v120
  %v122 = vrot.slane %v43, 7
  %v123 = vrot.slane %v44, 7
  %v124 = vsel %vm79, %v122, %v123
  %v125 = vrot.slane %v45, 7
  %v126 = vrot.slane %v46, 7
  %v127 = vsel %vm79, %v125, %v126
  %v160 = vsel %vm79, 0.0, %v80
  %v161 = vsel %vm79, 0.0, %v83
  %v162 = vsel %vm79, 0.0, %v86
  %v163 = vsel %vm79, 0.0, %v89
  %v164 = vsel %vm79, 0.0, %v92
  %v165 = vsel %vm79, 0.0, %v95
  %v166 = vsel %vm79, 0.0, %v98
  %v167 = vsel %vm79, 0.0, %v101
  %v168 = vsel %vm79, 0.0, %v104
  %v169 = vsel %vm79, 0.0, %v107
  %v170 = vsel %vm79, 0.0, %v110
  %v171 = vsel %vm79, 0.0, %v113
  %v172 = vsel %vm79, 0.0, %v116
  %v173 = vsel %vm79, 0.0, %v119
  %v174 = vsel %vm79, 0.0, %v122
  %v175 = vsel %vm79, 0.0, %v125
  %vm176 = vcmask 1046528
  %v177 = vrot.slane %v15, 1
  %v178 = vrot.slane %v16, 1
  %v179 = vsel %vm176, %v177, %v178
  %v180 = vrot.slane %v17, 1
  %v181 = vrot.slane %v18, 1
  %v182 = vsel %vm176, %v180, %v181
  %v183 = vrot.slane %v19, 1
  %v184 = vrot.slane %v20, 1
  %v185 = vsel %vm176, %v183, %v184
  %v186 = vrot.slane %v21, 1
  %v187 = vrot.slane %v22, 1
  %v188 = vsel %vm176, %v186, %v187
  %v189 = vrot.slane %v23, 1
  %v190 = vrot.slane %v24, 1
  %v191 = vsel %vm176, %v189, %v190
  %v192 = vrot.slane %v25, 1
  %v193 = vrot.slane %v26, 1
  %v194 = vsel %vm176, %v192, %v193
  %v195 = vrot.slane %v27, 1
  %v196 = vrot.slane %v28, 1
  %v197 = vsel %vm176, %v195, %v196
  %v198 = vrot.slane %v29, 1
  %v199 = vrot.slane %v30, 1
  %v200 = vsel %vm176, %v198, %v199
  %v201 = vrot.slane %v31, 1
  %v202 = vrot.slane %v32, 1
  %v203 = vsel %vm176, %v201, %v202
  %v204 = vrot.slane %v33, 1
  %v205 = vrot.slane %v34, 1
  %v206 = vsel %vm176, %v204, %v205
  %v207 = vrot.slane %v35, 1
  %v208 = vrot.slane %v36, 1
  %v209 = vsel %vm176, %v207, %v208
  %v210 = vrot.slane %v37, 1
  %v211 = vrot.slane %v38, 1
  %v212 = vsel %vm176, %v210, %v211
  %v213 = vrot.slane %v39, 1
  %v214 = vrot.slane %v40, 1
  %v215 = vsel %vm176, %v213, %v214
  %v216 = vrot.slane %v41, 1
  %v217 = vrot.slane %v42, 1
  %v218 = vsel %vm176, %v216, %v217
  %v219 = vrot.slane %v43, 1
  %v220 = vrot.slane %v44, 1
  %v221 = vsel %vm176, %v219, %v220
  %v222 = vrot.slane %v45, 1
  %v223 = vrot.slane %v46, 1
  %v224 = vsel %vm176, %v222, %v223
  %v241 = vsel %vm176, %v178, 0.0
  %v242 = vsel %vm176, %v181, 0.0
  %v243 = vsel %vm176, %v184, 0.0
  %v244 = vsel %vm176, %v187, 0.0
  %v245 = vsel %vm176, %v190, 0.0
  %v246 = vsel %vm176, %v193, 0.0
  %v247 = vsel %vm176, %v196, 0.0
  %v248 = vsel %vm176, %v199, 0.0
  %v249 = vsel %vm176, %v202, 0.0
  %v250 = vsel %vm176, %v205, 0.0
  %v251 = vsel %vm176, %v208, 0.0
  %v252 = vsel %vm176, %v211, 0.0
  %v253 = vsel %vm176, %v214, 0.0
  %v254 = vsel %vm176, %v217, 0.0
  %v255 = vsel %vm176, %v220, 0.0
  %v256 = vsel %vm176, %v223, 0.0
  %257 = vrot.lane.b32.xlu0 %v15, 32
  %v258 = vpop.permute.xlu0 %257
  %259 = vrot.lane.b32.xlu0 %v16, 32
  %v260 = vpop.permute.xlu0 %259
  %261 = vrot.lane.b32.xlu0 %v17, 32
  %v262 = vpop.permute.xlu0 %261
  %263 = vrot.lane.b32.xlu0 %v18, 32
  %v264 = vpop.permute.xlu0 %263
  %265 = vrot.lane.b32.xlu0 %v19, 32
  %v266 = vpop.permute.xlu0 %265
  %267 = vrot.lane.b32.xlu0 %v20, 32
  %v268 = vpop.permute.xlu0 %267
  %269 = vrot.lane.b32.xlu0 %v21, 32
  %v270 = vpop.permute.xlu0 %269
  %271 = vrot.lane.b32.xlu0 %v22, 32
  %v272 = vpop.permute.xlu0 %271
  %273 = vrot.lane.b32.xlu0 %v23, 32
  %v274 = vpop.permute.xlu0 %273
  %275 = vrot.lane.b32.xlu0 %v24, 32
  %v276 = vpop.permute.xlu0 %275
  %277 = vrot.lane.b32.xlu0 %v25, 32
  %v278 = vpop.permute.xlu0 %277
  %279 = vrot.lane.b32.xlu0 %v26, 32
  %v280 = vpop.permute.xlu0 %279
  %281 = vrot.lane.b32.xlu0 %v27, 32
  %v282 = vpop.permute.xlu0 %281
  %283 = vrot.lane.b32.xlu0 %v28, 32
  %v284 = vpop.permute.xlu0 %283
  %285 = vrot.lane.b32.xlu0 %v29, 32
  %v286 = vpop.permute.xlu0 %285
  %287 = vrot.lane.b32.xlu0 %v30, 32
  %v288 = vpop.permute.xlu0 %287
  %289 = vrot.lane.b32.xlu0 %v31, 32
  %v290 = vpop.permute.xlu0 %289
  %291 = vrot.lane.b32.xlu0 %v32, 32
  %v292 = vpop.permute.xlu0 %291
  %293 = vrot.lane.b32.xlu0 %v33, 32
  %v294 = vpop.permute.xlu0 %293
  %295 = vrot.lane.b32.xlu0 %v34, 32
  %v296 = vpop.permute.xlu0 %295
  %297 = vrot.lane.b32.xlu0 %v35, 32
  %v298 = vpop.permute.xlu0 %297
  %299 = vrot.lane.b32.xlu0 %v36, 32
  %v300 = vpop.permute.xlu0 %299
  %301 = vrot.lane.b32.xlu0 %v37, 32
  %v302 = vpop.permute.xlu0 %301
  %303 = vrot.lane.b32.xlu0 %v38, 32
  %v304 = vpop.permute.xlu0 %303
  %305 = vrot.lane.b32.xlu0 %v39, 32
  %v306 = vpop.permute.xlu0 %305
  %307 = vrot.lane.b32.xlu0 %v40, 32
  %v308 = vpop.permute.xlu0 %307
  %309 = vrot.lane.b32.xlu0 %v41, 32
  %v310 = vpop.permute.xlu0 %309
  %311 = vrot.lane.b32.xlu0 %v42, 32
  %v312 = vpop.permute.xlu0 %311
  %313 = vrot.lane.b32.xlu0 %v43, 32
  %v314 = vpop.permute.xlu0 %313
  %315 = vrot.lane.b32.xlu0 %v44, 32
  %v316 = vpop.permute.xlu0 %315
  %317 = vrot.lane.b32.xlu0 %v45, 32
  %v318 = vpop.permute.xlu0 %317
  %319 = vrot.lane.b32.xlu0 %v46, 32
  %v320 = vpop.permute.xlu0 %319
  %369 = vrot.lane.b32.xlu0 %v179, 64
  %v370 = vpop.permute.xlu0 %369
  %371 = vrot.lane.b32.xlu0 %v241, 64
  %v372 = vpop.permute.xlu0 %371
  %373 = vrot.lane.b32.xlu0 %v182, 64
  %v374 = vpop.permute.xlu0 %373
  %375 = vrot.lane.b32.xlu0 %v242, 64
  %v376 = vpop.permute.xlu0 %375
  %377 = vrot.lane.b32.xlu0 %v185, 64
  %v378 = vpop.permute.xlu0 %377
  %379 = vrot.lane.b32.xlu0 %v243, 64
  %v380 = vpop.permute.xlu0 %379
  %381 = vrot.lane.b32.xlu0 %v188, 64
  %v382 = vpop.permute.xlu0 %381
  %383 = vrot.lane.b32.xlu0 %v244, 64
  %v384 = vpop.permute.xlu0 %383
  %385 = vrot.lane.b32.xlu0 %v191, 64
  %v386 = vpop.permute.xlu0 %385
  %387 = vrot.lane.b32.xlu0 %v245, 64
  %v388 = vpop.permute.xlu0 %387
  %389 = vrot.lane.b32.xlu0 %v194, 64
  %v390 = vpop.permute.xlu0 %389
  %391 = vrot.lane.b32.xlu0 %v246, 64
  %v392 = vpop.permute.xlu0 %391
  %393 = vrot.lane.b32.xlu0 %v197, 64
  %v394 = vpop.permute.xlu0 %393
  %395 = vrot.lane.b32.xlu0 %v247, 64
  %v396 = vpop.permute.xlu0 %395
  %397 = vrot.lane.b32.xlu0 %v200, 64
  %v398 = vpop.permute.xlu0 %397
  %399 = vrot.lane.b32.xlu0 %v248, 64
  %v400 = vpop.permute.xlu0 %399
  %401 = vrot.lane.b32.xlu0 %v203, 64
  %v402 = vpop.permute.xlu0 %401
  %403 = vrot.lane.b32.xlu0 %v249, 64
  %v404 = vpop.permute.xlu0 %403
  %405 = vrot.lane.b32.xlu0 %v206, 64
  %v406 = vpop.permute.xlu0 %405
  %407 = vrot.lane.b32.xlu0 %v250, 64
  %v408 = vpop.permute.xlu0 %407
  %409 = vrot.lane.b32.xlu0 %v209, 64
  %v410 = vpop.permute.xlu0 %409
  %411 = vrot.lane.b32.xlu0 %v251, 64
  %v412 = vpop.permute.xlu0 %411
  %413 = vrot.lane.b32.xlu0 %v212, 64
  %v414 = vpop.permute.xlu0 %413
  %415 = vrot.lane.b32.xlu0 %v252, 64
  %v416 = vpop.permute.xlu0 %415
  %417 = vrot.lane.b32.xlu0 %v215, 64
  %v418 = vpop.permute.xlu0 %417
  %419 = vrot.lane.b32.xlu0 %v253, 64
  %v420 = vpop.permute.xlu0 %419
  %421 = vrot.lane.b32.xlu0 %v218, 64
  %v422 = vpop.permute.xlu0 %421
  %423 = vrot.lane.b32.xlu0 %v254, 64
  %v424 = vpop.permute.xlu0 %423
  %425 = vrot.lane.b32.xlu0 %v221, 64
  %v426 = vpop.permute.xlu0 %425
  %427 = vrot.lane.b32.xlu0 %v255, 64
  %v428 = vpop.permute.xlu0 %427
  %429 = vrot.lane.b32.xlu0 %v224, 64
  %v430 = vpop.permute.xlu0 %429
  %431 = vrot.lane.b32.xlu0 %v256, 64
  %v432 = vpop.permute.xlu0 %431
  %vm465 = vcmask 261120
  %v466 = vsel %vm465, %v160, %v258
  %v467 = vsel %vm465, %v82, %v260
  %v468 = vsel %vm465, %v161, %v262
  %v469 = vsel %vm465, %v85, %v264
  %v470 = vsel %vm465, %v162, %v266
  %v471 = vsel %vm465, %v88, %v268
  %v472 = vsel %vm465, %v163, %v270
  %v473 = vsel %vm465, %v91, %v272
  %v474 = vsel %vm465, %v164, %v274
  %v475 = vsel %vm465, %v94, %v276
  %v476 = vsel %vm465, %v165, %v278
  %v477 = vsel %vm465, %v97, %v280
  %v478 = vsel %vm465, %v166, %v282
  %v479 = vsel %vm465, %v100, %v284
  %v480 = vsel %vm465, %v167, %v286
  %v481 = vsel %vm465, %v103, %v288
  %v482 = vsel %vm465, %v168, %v290
  %v483 = vsel %vm465, %v106, %v292
  %v484 = vsel %vm465, %v169, %v294
  %v485 = vsel %vm465, %v109, %v296
  %v486 = vsel %vm465, %v170, %v298
  %v487 = vsel %vm465, %v112, %v300
  %v488 = vsel %vm465, %v171, %v302
  %v489 = vsel %vm465, %v115, %v304
  %v490 = vsel %vm465, %v172, %v306
  %v491 = vsel %vm465, %v118, %v308
  %v492 = vsel %vm465, %v173, %v310
  %v493 = vsel %vm465, %v121, %v312
  %v494 = vsel %vm465, %v174, %v314
  %v495 = vsel %vm465, %v124, %v316
  %v496 = vsel %vm465, %v175, %v318
  %v497 = vsel %vm465, %v127, %v320
  %vm498 = vcmask 523264
  %v499 = vsel %vm498, %v466, %v370
  %v500 = vsel %vm498, %v467, %v372
  %v501 = vsel %vm498, %v468, %v374
  %v502 = vsel %vm498, %v469, %v376
  %v503 = vsel %vm498, %v470, %v378
  %v504 = vsel %vm498, %v471, %v380
  %v505 = vsel %vm498, %v472, %v382
  %v506 = vsel %vm498, %v473, %v384
  %v507 = vsel %vm498, %v474, %v386
  %v508 = vsel %vm498, %v475, %v388
  %v509 = vsel %vm498, %v476, %v390
  %v510 = vsel %vm498, %v477, %v392
  %v511 = vsel %vm498, %v478, %v394
  %v512 = vsel %vm498, %v479, %v396
  %v513 = vsel %vm498, %v480, %v398
  %v514 = vsel %vm498, %v481, %v400
  %v515 = vsel %vm498, %v482, %v402
  %v516 = vsel %vm498, %v483, %v404
  %v517 = vsel %vm498, %v484, %v406
  %v518 = vsel %vm498, %v485, %v408
  %v519 = vsel %vm498, %v486, %v410
  %v520 = vsel %vm498, %v487, %v412
  %v521 = vsel %vm498, %v488, %v414
  %v522 = vsel %vm498, %v489, %v416
  %v523 = vsel %vm498, %v490, %v418
  %v524 = vsel %vm498, %v491, %v420
  %v525 = vsel %vm498, %v492, %v422
  %v526 = vsel %vm498, %v493, %v424
  %v527 = vsel %vm498, %v494, %v426
  %v528 = vsel %vm498, %v495, %v428
  %v529 = vsel %vm498, %v496, %v430
  %v530 = vsel %vm498, %v497, %v432
  %v531 = vpack.c.bf16 %v500, %v499
  %v532 = vpack.c.bf16 %v502, %v501
  %v533 = vpack.c.bf16 %v504, %v503
  %v534 = vpack.c.bf16 %v506, %v505
  %v535 = vpack.c.bf16 %v508, %v507
  %v536 = vpack.c.bf16 %v510, %v509
  %v537 = vpack.c.bf16 %v512, %v511
  %v538 = vpack.c.bf16 %v514, %v513
  %v539 = vpack.c.bf16 %v516, %v515
  %v540 = vpack.c.bf16 %v518, %v517
  %v541 = vpack.c.bf16 %v520, %v519
  %v542 = vpack.c.bf16 %v522, %v521
  %v543 = vpack.c.bf16 %v524, %v523
  %v544 = vpack.c.bf16 %v526, %v525
  %v545 = vpack.c.bf16 %v528, %v527
  %v546 = vpack.c.bf16 %v530, %v529
  %v547 = vld [vmem:[%s1] sm:$0xff]
  %v548 = vld [vmem:[%s1 + $0x8] sm:$0xff]
  %v549 = vld [vmem:[%s1 + $0x10] sm:$0xff]
  %v550 = vld [vmem:[%s1 + $0x18] sm:$0xff]
  %v551 = vld [vmem:[%s1 + $0x20] sm:$0xff]
  %v552 = vld [vmem:[%s1 + $0x28] sm:$0xff]
  %v553 = vld [vmem:[%s1 + $0x30] sm:$0xff]
  %v554 = vld [vmem:[%s1 + $0x38] sm:$0xff]
  %v555 = vld [vmem:[%s1 + $0x40] sm:$0xff]
  %v556 = vld [vmem:[%s1 + $0x48] sm:$0xff]
  %v557 = vld [vmem:[%s1 + $0x50] sm:$0xff]
  %v558 = vld [vmem:[%s1 + $0x58] sm:$0xff]
  %v559 = vpack.c.bf16 %v548, %v547
  %v560 = vpack.c.bf16 %v550, %v549
  %v561 = vpack.c.bf16 %v552, %v551
  %v562 = vpack.c.bf16 %v554, %v553
  %v563 = vpack.c.bf16 %v556, %v555
  %v564 = vpack.c.bf16 %v558, %v557
  %vm565 = vcmask 785408
  %v567 = vsel %vm565, %v531, 0
  %v570 = vsel %vm565, %v532, 0
  %v573 = vsel %vm565, %v533, 0
  %v576 = vsel %vm565, %v534, 0
  %v579 = vsel %vm565, %v535, 0
  %v582 = vsel %vm565, %v536, 0
  %v585 = vsel %vm565, %v537, 0
  %v588 = vsel %vm565, %v538, 0
  %v591 = vsel %vm565, %v539, 0
  %v594 = vsel %vm565, %v540, 0
  %v597 = vsel %vm565, %v541, 0
  %v600 = vsel %vm565, %v542, 0
  %v603 = vsel %vm565, %v543, 0
  %v606 = vsel %vm565, %v544, 0
  %v609 = vsel %vm565, %v545, 0
  %v612 = vsel %vm565, %v546, 0
  %614 = vmatprep.subr.bf16.mxu0 0
  %615 = vmatpush1.bf16.msra.mxu0 %v559
  %616 = vmatprep.subr.bf16.mxu0 0
  %617 = vmatpush1.bf16.msra.mxu0 %v560
  %618 = vmatprep.subr.bf16.mxu0 0
  %619 = vmatpush1.bf16.msra.mxu0 %v561
  %620 = vmatprep.subr.bf16.mxu0 0
  %621 = vmatpush1.bf16.msra.mxu0 %v562
  %622 = vmatprep.subr.bf16.mxu0 0
  %623 = vmatpush1.bf16.msra.mxu0 %v563
  %624 = vmatprep.subr.bf16.mxu0 0
  %625 = vmatpush1.bf16.msra.mxu0 %v564
  %626 = vmatprep.subr.bf16.mxu0 0
  %627 = vmatpush1.bf16.msra.mxu0 0
  %628 = vmatprep.subr.bf16.mxu0 0
  %629 = vmatpush1.bf16.msra.mxu0 0
  %630 = vmatprep.subr.bf16.mxu0 0
  %631 = vmatpush1.bf16.msra.mxu0 0
  %632 = vmatprep.subr.bf16.mxu0 0
  %633 = vmatpush1.bf16.msra.mxu0 0
  %634 = vmatprep.subr.bf16.mxu0 0
  %635 = vmatpush1.bf16.msra.mxu0 0
  %636 = vmatprep.subr.bf16.mxu0 0
  %637 = vmatpush1.bf16.msra.mxu0 0
  %638 = vmatprep.subr.bf16.mxu0 0
  %639 = vmatpush1.bf16.msra.mxu0 0
  %640 = vmatprep.subr.bf16.mxu0 0
  %641 = vmatpush1.bf16.msra.mxu0 0
  %642 = vmatprep.subr.bf16.mxu0 0
  %643 = vmatpush1.bf16.msra.mxu0 0
  %644 = vmatprep.subr.bf16.mxu0 0
  %645 = vmatpush1.bf16.msra.mxu0 0
  %646 = vmatprep.mubr.bf16.mxu0 0
  %647 = vmatmul.mubr.bf16.gmra.mrb[0].mxu0 %v567
  %v648 = vpop.f32.mrb[0].mxu0
  %v649 = vadd.f32 0.0, %v648
  %v650 = vpop.f32.mrb[0].mxu0
  %v651 = vpop.f32.mrb[0].mxu0
  %v652 = vadd.f32 0.0, %v651
  %v653 = vpop.f32.mrb[0].mxu0
  %654 = vmatprep.mubr.bf16.mxu0 0
  %655 = vmatmul.mubr.bf16.gmra.mrb[0].mxu0 %v570
  %v656 = vpop.f32.mrb[0].mxu0
  %v657 = vadd.f32 0.0, %v656
  %v658 = vpop.f32.mrb[0].mxu0
  %v659 = vpop.f32.mrb[0].mxu0
  %v660 = vadd.f32 0.0, %v659
  %v661 = vpop.f32.mrb[0].mxu0
  %662 = vmatprep.mubr.bf16.mxu0 0
  %663 = vmatmul.mubr.bf16.gmra.mrb[0].mxu0 %v573
  %v664 = vpop.f32.mrb[0].mxu0
  %v665 = vadd.f32 0.0, %v664
  %v666 = vpop.f32.mrb[0].mxu0
  %v667 = vpop.f32.mrb[0].mxu0
  %v668 = vadd.f32 0.0, %v667
  %v669 = vpop.f32.mrb[0].mxu0
  %670 = vmatprep.mubr.bf16.mxu0 0
  %671 = vmatmul.mubr.bf16.gmra.mrb[0].mxu0 %v576
  %v672 = vpop.f32.mrb[0].mxu0
  %v673 = vadd.f32 0.0, %v672
  %v674 = vpop.f32.mrb[0].mxu0
  %v675 = vpop.f32.mrb[0].mxu0
  %v676 = vadd.f32 0.0, %v675
  %v677 = vpop.f32.mrb[0].mxu0
  %678 = vmatprep.mubr.bf16.mxu0 0
  %679 = vmatmul.mubr.bf16.gmra.mrb[0].mxu0 %v579
  %v680 = vpop.f32.mrb[0].mxu0
  %v681 = vadd.f32 0.0, %v680
  %v682 = vpop.f32.mrb[0].mxu0
  %v683 = vpop.f32.mrb[0].mxu0
  %v684 = vadd.f32 0.0, %v683
  %v685 = vpop.f32.mrb[0].mxu0
  %686 = vmatprep.mubr.bf16.mxu0 0
  %687 = vmatmul.mubr.bf16.gmra.mrb[0].mxu0 %v582
  %v688 = vpop.f32.mrb[0].mxu0
  %v689 = vadd.f32 0.0, %v688
  %v690 = vpop.f32.mrb[0].mxu0
  %v691 = vpop.f32.mrb[0].mxu0
  %v692 = vadd.f32 0.0, %v691
  %v693 = vpop.f32.mrb[0].mxu0
  %694 = vmatprep.mubr.bf16.mxu0 0
  %695 = vmatmul.mubr.bf16.gmra.mrb[0].mxu0 %v585
  %v696 = vpop.f32.mrb[0].mxu0
  %v697 = vadd.f32 0.0, %v696
  %v698 = vpop.f32.mrb[0].mxu0
  %v699 = vpop.f32.mrb[0].mxu0
  %v700 = vadd.f32 0.0, %v699
  %v701 = vpop.f32.mrb[0].mxu0
  %702 = vmatprep.mubr.bf16.mxu0 0
  %703 = vmatmul.mubr.bf16.gmra.mrb[0].mxu0 %v588
  %v704 = vpop.f32.mrb[0].mxu0
  %v705 = vadd.f32 0.0, %v704
  %v706 = vpop.f32.mrb[0].mxu0
  %v707 = vpop.f32.mrb[0].mxu0
  %v708 = vadd.f32 0.0, %v707
  %v709 = vpop.f32.mrb[0].mxu0
  %710 = vmatprep.mubr.bf16.mxu0 0
  %711 = vmatmul.mubr.bf16.gmra.mrb[0].mxu0 %v591
  %v712 = vpop.f32.mrb[0].mxu0
  %v713 = vadd.f32 0.0, %v712
  %v714 = vpop.f32.mrb[0].mxu0
  %v715 = vpop.f32.mrb[0].mxu0
  %v716 = vadd.f32 0.0, %v715
  %v717 = vpop.f32.mrb[0].mxu0
  %718 = vmatprep.mubr.bf16.mxu0 0
  %719 = vmatmul.mubr.bf16.gmra.mrb[0].mxu0 %v594
  %v720 = vpop.f32.mrb[0].mxu0
  %v721 = vadd.f32 0.0, %v720
  %v722 = vpop.f32.mrb[0].mxu0
  %v723 = vpop.f32.mrb[0].mxu0
  %v724 = vadd.f32 0.0, %v723
  %v725 = vpop.f32.mrb[0].mxu0
  %726 = vmatprep.mubr.bf16.mxu0 0
  %727 = vmatmul.mubr.bf16.gmra.mrb[0].mxu0 %v597
  %v728 = vpop.f32.mrb[0].mxu0
  %v729 = vadd.f32 0.0, %v728
  %v730 = vpop.f32.mrb[0].mxu0
  %v731 = vpop.f32.mrb[0].mxu0
  %v732 = vadd.f32 0.0, %v731
  %v733 = vpop.f32.mrb[0].mxu0
  %734 = vmatprep.mubr.bf16.mxu0 0
  %735 = vmatmul.mubr.bf16.gmra.mrb[0].mxu0 %v600
  %v736 = vpop.f32.mrb[0].mxu0
  %v737 = vadd.f32 0.0, %v736
  %v738 = vpop.f32.mrb[0].mxu0
  %v739 = vpop.f32.mrb[0].mxu0
  %v740 = vadd.f32 0.0, %v739
  %v741 = vpop.f32.mrb[0].mxu0
  %742 = vmatprep.mubr.bf16.mxu0 0
  %743 = vmatmul.mubr.bf16.gmra.mrb[0].mxu0 %v603
  %v744 = vpop.f32.mrb[0].mxu0
  %v745 = vadd.f32 0.0, %v744
  %v746 = vpop.f32.mrb[0].mxu0
  %v747 = vpop.f32.mrb[0].mxu0
  %v748 = vadd.f32 0.0, %v747
  %v749 = vpop.f32.mrb[0].mxu0
  %750 = vmatprep.mubr.bf16.mxu0 0
  %751 = vmatmul.mubr.bf16.gmra.mrb[0].mxu0 %v606
  %v752 = vpop.f32.mrb[0].mxu0
  %v753 = vadd.f32 0.0, %v752
  %v754 = vpop.f32.mrb[0].mxu0
  %v755 = vpop.f32.mrb[0].mxu0
  %v756 = vadd.f32 0.0, %v755
  %v757 = vpop.f32.mrb[0].mxu0
  %758 = vmatprep.mubr.bf16.mxu0 0
  %759 = vmatmul.mubr.bf16.gmra.mrb[0].mxu0 %v609
  %v760 = vpop.f32.mrb[0].mxu0
  %v761 = vadd.f32 0.0, %v760
  %v762 = vpop.f32.mrb[0].mxu0
  %v763 = vpop.f32.mrb[0].mxu0
  %v764 = vadd.f32 0.0, %v763
  %v765 = vpop.f32.mrb[0].mxu0
  %766 = vmatprep.mubr.bf16.mxu0 0
  %767 = vmatmul.mubr.bf16.gmra.mrb[0].mxu0 %v612
  %v768 = vpop.f32.mrb[0].mxu0
  %v769 = vadd.f32 0.0, %v768
  %v770 = vpop.f32.mrb[0].mxu0
  %v771 = vpop.f32.mrb[0].mxu0
  %v772 = vadd.f32 0.0, %v771
  %v773 = vpop.f32.mrb[0].mxu0
  %774 = vdwg.mxu0
  %v775 = vld [vmem:[%s2] sm:$0x1]
  %v777 = vlaneseq
  %v778 = vshrl.u32 %v777, 7
  %v779 = vsub.s32 0, %v778
  %v780 = vrot.slane %v775, %v779
  %v782 = vadd.f32 %v649, %v780
  %v783 = vadd.f32 %v652, %v780
  %v784 = vadd.f32 %v657, %v780
  %v785 = vadd.f32 %v660, %v780
  %v786 = vadd.f32 %v665, %v780
  %v787 = vadd.f32 %v668, %v780
  %v788 = vadd.f32 %v673, %v780
  %v789 = vadd.f32 %v676, %v780
  %v790 = vadd.f32 %v681, %v780
  %v791 = vadd.f32 %v684, %v780
  %v792 = vadd.f32 %v689, %v780
  %v793 = vadd.f32 %v692, %v780
  %v794 = vadd.f32 %v697, %v780
  %v795 = vadd.f32 %v700, %v780
  %v796 = vadd.f32 %v705, %v780
  %v797 = vadd.f32 %v708, %v780
  %v798 = vadd.f32 %v713, %v780
  %v799 = vadd.f32 %v716, %v780
  %v800 = vadd.f32 %v721, %v780
  %v801 = vadd.f32 %v724, %v780
  %v802 = vadd.f32 %v729, %v780
  %v803 = vadd.f32 %v732, %v780
  %v804 = vadd.f32 %v737, %v780
  %v805 = vadd.f32 %v740, %v780
  %v806 = vadd.f32 %v745, %v780
  %v807 = vadd.f32 %v748, %v780
  %v808 = vadd.f32 %v753, %v780
  %v809 = vadd.f32 %v756, %v780
  %v810 = vadd.f32 %v761, %v780
  %v811 = vadd.f32 %v764, %v780
  %v812 = vadd.f32 %v769, %v780
  %v813 = vadd.f32 %v772, %v780
  %vm814 = vcmp.ge.f32.partialorder %v782, 0.0
  %vm815 = vcmp.ge.f32.partialorder %v783, 0.0
  %vm816 = vcmp.ge.f32.partialorder %v784, 0.0
  %vm817 = vcmp.ge.f32.partialorder %v785, 0.0
  %vm818 = vcmp.ge.f32.partialorder %v786, 0.0
  %vm819 = vcmp.ge.f32.partialorder %v787, 0.0
  %vm820 = vcmp.ge.f32.partialorder %v788, 0.0
  %vm821 = vcmp.ge.f32.partialorder %v789, 0.0
  %vm822 = vcmp.ge.f32.partialorder %v790, 0.0
  %vm823 = vcmp.ge.f32.partialorder %v791, 0.0
  %vm824 = vcmp.ge.f32.partialorder %v792, 0.0
  %vm825 = vcmp.ge.f32.partialorder %v793, 0.0
  %vm826 = vcmp.ge.f32.partialorder %v794, 0.0
  %vm827 = vcmp.ge.f32.partialorder %v795, 0.0
  %vm828 = vcmp.ge.f32.partialorder %v796, 0.0
  %vm829 = vcmp.ge.f32.partialorder %v797, 0.0
  %vm830 = vcmp.ge.f32.partialorder %v798, 0.0
  %vm831 = vcmp.ge.f32.partialorder %v799, 0.0
  %vm832 = vcmp.ge.f32.partialorder %v800, 0.0
  %vm833 = vcmp.ge.f32.partialorder %v801, 0.0
  %vm834 = vcmp.ge.f32.partialorder %v802, 0.0
  %vm835 = vcmp.ge.f32.partialorder %v803, 0.0
  %vm836 = vcmp.ge.f32.partialorder %v804, 0.0
  %vm837 = vcmp.ge.f32.partialorder %v805, 0.0
  %vm838 = vcmp.ge.f32.partialorder %v806, 0.0
  %vm839 = vcmp.ge.f32.partialorder %v807, 0.0
  %vm840 = vcmp.ge.f32.partialorder %v808, 0.0
  %vm841 = vcmp.ge.f32.partialorder %v809, 0.0
  %vm842 = vcmp.ge.f32.partialorder %v810, 0.0
  %vm843 = vcmp.ge.f32.partialorder %v811, 0.0
  %vm844 = vcmp.ge.f32.partialorder %v812, 0.0
  %vm845 = vcmp.ge.f32.partialorder %v813, 0.0
  %v846 = vmul.f32 %v782, 0.01
  %v847 = vmul.f32 %v783, 0.01
  %v848 = vmul.f32 %v784, 0.01
  %v849 = vmul.f32 %v785, 0.01
  %v850 = vmul.f32 %v786, 0.01
  %v851 = vmul.f32 %v787, 0.01
  %v852 = vmul.f32 %v788, 0.01
  %v853 = vmul.f32 %v789, 0.01
  %v854 = vmul.f32 %v790, 0.01
  %v855 = vmul.f32 %v791, 0.01
  %v856 = vmul.f32 %v792, 0.01
  %v857 = vmul.f32 %v793, 0.01
  %v858 = vmul.f32 %v794, 0.01
  %v859 = vmul.f32 %v795, 0.01
  %v860 = vmul.f32 %v796, 0.01
  %v861 = vmul.f32 %v797, 0.01
  %v862 = vmul.f32 %v798, 0.01
  %v863 = vmul.f32 %v799, 0.01
  %v864 = vmul.f32 %v800, 0.01
  %v865 = vmul.f32 %v801, 0.01
  %v866 = vmul.f32 %v802, 0.01
  %v867 = vmul.f32 %v803, 0.01
  %v868 = vmul.f32 %v804, 0.01
  %v869 = vmul.f32 %v805, 0.01
  %v870 = vmul.f32 %v806, 0.01
  %v871 = vmul.f32 %v807, 0.01
  %v872 = vmul.f32 %v808, 0.01
  %v873 = vmul.f32 %v809, 0.01
  %v874 = vmul.f32 %v810, 0.01
  %v875 = vmul.f32 %v811, 0.01
  %v876 = vmul.f32 %v812, 0.01
  %v877 = vmul.f32 %v813, 0.01
  %v878 = vsel %vm814, %v782, %v846
  %v879 = vsel %vm815, %v783, %v847
  %v880 = vsel %vm816, %v784, %v848
  %v881 = vsel %vm817, %v785, %v849
  %v882 = vsel %vm818, %v786, %v850
  %v883 = vsel %vm819, %v787, %v851
  %v884 = vsel %vm820, %v788, %v852
  %v885 = vsel %vm821, %v789, %v853
  %v886 = vsel %vm822, %v790, %v854
  %v887 = vsel %vm823, %v791, %v855
  %v888 = vsel %vm824, %v792, %v856
  %v889 = vsel %vm825, %v793, %v857
  %v890 = vsel %vm826, %v794, %v858
  %v891 = vsel %vm827, %v795, %v859
  %v892 = vsel %vm828, %v796, %v860
  %v893 = vsel %vm829, %v797, %v861
  %v894 = vsel %vm830, %v798, %v862
  %v895 = vsel %vm831, %v799, %v863
  %v896 = vsel %vm832, %v800, %v864
  %v897 = vsel %vm833, %v801, %v865
  %v898 = vsel %vm834, %v802, %v866
  %v899 = vsel %vm835, %v803, %v867
  %v900 = vsel %vm836, %v804, %v868
  %v901 = vsel %vm837, %v805, %v869
  %v902 = vsel %vm838, %v806, %v870
  %v903 = vsel %vm839, %v807, %v871
  %v904 = vsel %vm840, %v808, %v872
  %v905 = vsel %vm841, %v809, %v873
  %v906 = vsel %vm842, %v810, %v874
  %v907 = vsel %vm843, %v811, %v875
  %v908 = vsel %vm844, %v812, %v876
  %v909 = vsel %vm845, %v813, %v877
  %v910 = vadd.f32 %v15, %v878
  %v911 = vadd.f32 %v16, %v879
  %v912 = vadd.f32 %v17, %v880
  %v913 = vadd.f32 %v18, %v881
  %v914 = vadd.f32 %v19, %v882
  %v915 = vadd.f32 %v20, %v883
  %v916 = vadd.f32 %v21, %v884
  %v917 = vadd.f32 %v22, %v885
  %v918 = vadd.f32 %v23, %v886
  %v919 = vadd.f32 %v24, %v887
  %v920 = vadd.f32 %v25, %v888
  %v921 = vadd.f32 %v26, %v889
  %v922 = vadd.f32 %v27, %v890
  %v923 = vadd.f32 %v28, %v891
  %v924 = vadd.f32 %v29, %v892
  %v925 = vadd.f32 %v30, %v893
  %v926 = vadd.f32 %v31, %v894
  %v927 = vadd.f32 %v32, %v895
  %v928 = vadd.f32 %v33, %v896
  %v929 = vadd.f32 %v34, %v897
  %v930 = vadd.f32 %v35, %v898
  %v931 = vadd.f32 %v36, %v899
  %v932 = vadd.f32 %v37, %v900
  %v933 = vadd.f32 %v38, %v901
  %v934 = vadd.f32 %v39, %v902
  %v935 = vadd.f32 %v40, %v903
  %v936 = vadd.f32 %v41, %v904
  %v937 = vadd.f32 %v42, %v905
  %v938 = vadd.f32 %v43, %v906
  %v939 = vadd.f32 %v44, %v907
  %v940 = vadd.f32 %v45, %v908
  %v941 = vadd.f32 %v46, %v909
  %v942 = vsel %vm465, %v910, -inf
  %v943 = vsel %vm465, %v911, -inf
  %v944 = vmax.f32 %v942, %v943
  %v945 = vrot.slane %v944, 4
  %v946 = vmax.f32 %v944, %v945
  %v947 = vrot.slane %v946, 2
  %v948 = vmax.f32 %v946, %v947
  %v949 = vrot.slane %v948, 1
  %v950 = vmax.f32 %v948, %v949
  %v951 = vsel %vm465, %v912, -inf
  %v952 = vsel %vm465, %v913, -inf
  %v953 = vmax.f32 %v951, %v952
  %v954 = vrot.slane %v953, 4
  %v955 = vmax.f32 %v953, %v954
  %v956 = vrot.slane %v955, 2
  %v957 = vmax.f32 %v955, %v956
  %v958 = vrot.slane %v957, 1
  %v959 = vmax.f32 %v957, %v958
  %v960 = vsel %vm465, %v914, -inf
  %v961 = vsel %vm465, %v915, -inf
  %v962 = vmax.f32 %v960, %v961
  %v963 = vrot.slane %v962, 4
  %v964 = vmax.f32 %v962, %v963
  %v965 = vrot.slane %v964, 2
  %v966 = vmax.f32 %v964, %v965
  %v967 = vrot.slane %v966, 1
  %v968 = vmax.f32 %v966, %v967
  %v969 = vsel %vm465, %v916, -inf
  %v970 = vsel %vm465, %v917, -inf
  %v971 = vmax.f32 %v969, %v970
  %v972 = vrot.slane %v971, 4
  %v973 = vmax.f32 %v971, %v972
  %v974 = vrot.slane %v973, 2
  %v975 = vmax.f32 %v973, %v974
  %v976 = vrot.slane %v975, 1
  %v977 = vmax.f32 %v975, %v976
  %v978 = vsel %vm465, %v918, -inf
  %v979 = vsel %vm465, %v919, -inf
  %v980 = vmax.f32 %v978, %v979
  %v981 = vrot.slane %v980, 4
  %v982 = vmax.f32 %v980, %v981
  %v983 = vrot.slane %v982, 2
  %v984 = vmax.f32 %v982, %v983
  %v985 = vrot.slane %v984, 1
  %v986 = vmax.f32 %v984, %v985
  %v987 = vsel %vm465, %v920, -inf
  %v988 = vsel %vm465, %v921, -inf
  %v989 = vmax.f32 %v987, %v988
  %v990 = vrot.slane %v989, 4
  %v991 = vmax.f32 %v989, %v990
  %v992 = vrot.slane %v991, 2
  %v993 = vmax.f32 %v991, %v992
  %v994 = vrot.slane %v993, 1
  %v995 = vmax.f32 %v993, %v994
  %v996 = vsel %vm465, %v922, -inf
  %v997 = vsel %vm465, %v923, -inf
  %v998 = vmax.f32 %v996, %v997
  %v999 = vrot.slane %v998, 4
  %v1000 = vmax.f32 %v998, %v999
  %v1001 = vrot.slane %v1000, 2
  %v1002 = vmax.f32 %v1000, %v1001
  %v1003 = vrot.slane %v1002, 1
  %v1004 = vmax.f32 %v1002, %v1003
  %v1005 = vsel %vm465, %v924, -inf
  %v1006 = vsel %vm465, %v925, -inf
  %v1007 = vmax.f32 %v1005, %v1006
  %v1008 = vrot.slane %v1007, 4
  %v1009 = vmax.f32 %v1007, %v1008
  %v1010 = vrot.slane %v1009, 2
  %v1011 = vmax.f32 %v1009, %v1010
  %v1012 = vrot.slane %v1011, 1
  %v1013 = vmax.f32 %v1011, %v1012
  %v1014 = vsel %vm465, %v926, -inf
  %v1015 = vsel %vm465, %v927, -inf
  %v1016 = vmax.f32 %v1014, %v1015
  %v1017 = vrot.slane %v1016, 4
  %v1018 = vmax.f32 %v1016, %v1017
  %v1019 = vrot.slane %v1018, 2
  %v1020 = vmax.f32 %v1018, %v1019
  %v1021 = vrot.slane %v1020, 1
  %v1022 = vmax.f32 %v1020, %v1021
  %v1023 = vsel %vm465, %v928, -inf
  %v1024 = vsel %vm465, %v929, -inf
  %v1025 = vmax.f32 %v1023, %v1024
  %v1026 = vrot.slane %v1025, 4
  %v1027 = vmax.f32 %v1025, %v1026
  %v1028 = vrot.slane %v1027, 2
  %v1029 = vmax.f32 %v1027, %v1028
  %v1030 = vrot.slane %v1029, 1
  %v1031 = vmax.f32 %v1029, %v1030
  %v1032 = vsel %vm465, %v930, -inf
  %v1033 = vsel %vm465, %v931, -inf
  %v1034 = vmax.f32 %v1032, %v1033
  %v1035 = vrot.slane %v1034, 4
  %v1036 = vmax.f32 %v1034, %v1035
  %v1037 = vrot.slane %v1036, 2
  %v1038 = vmax.f32 %v1036, %v1037
  %v1039 = vrot.slane %v1038, 1
  %v1040 = vmax.f32 %v1038, %v1039
  %v1041 = vsel %vm465, %v932, -inf
  %v1042 = vsel %vm465, %v933, -inf
  %v1043 = vmax.f32 %v1041, %v1042
  %v1044 = vrot.slane %v1043, 4
  %v1045 = vmax.f32 %v1043, %v1044
  %v1046 = vrot.slane %v1045, 2
  %v1047 = vmax.f32 %v1045, %v1046
  %v1048 = vrot.slane %v1047, 1
  %v1049 = vmax.f32 %v1047, %v1048
  %v1050 = vsel %vm465, %v934, -inf
  %v1051 = vsel %vm465, %v935, -inf
  %v1052 = vmax.f32 %v1050, %v1051
  %v1053 = vrot.slane %v1052, 4
  %v1054 = vmax.f32 %v1052, %v1053
  %v1055 = vrot.slane %v1054, 2
  %v1056 = vmax.f32 %v1054, %v1055
  %v1057 = vrot.slane %v1056, 1
  %v1058 = vmax.f32 %v1056, %v1057
  %v1059 = vsel %vm465, %v936, -inf
  %v1060 = vsel %vm465, %v937, -inf
  %v1061 = vmax.f32 %v1059, %v1060
  %v1062 = vrot.slane %v1061, 4
  %v1063 = vmax.f32 %v1061, %v1062
  %v1064 = vrot.slane %v1063, 2
  %v1065 = vmax.f32 %v1063, %v1064
  %v1066 = vrot.slane %v1065, 1
  %v1067 = vmax.f32 %v1065, %v1066
  %v1068 = vsel %vm465, %v938, -inf
  %v1069 = vsel %vm465, %v939, -inf
  %v1070 = vmax.f32 %v1068, %v1069
  %v1071 = vrot.slane %v1070, 4
  %v1072 = vmax.f32 %v1070, %v1071
  %v1073 = vrot.slane %v1072, 2
  %v1074 = vmax.f32 %v1072, %v1073
  %v1075 = vrot.slane %v1074, 1
  %v1076 = vmax.f32 %v1074, %v1075
  %v1077 = vsel %vm465, %v940, -inf
  %v1078 = vsel %vm465, %v941, -inf
  %v1079 = vmax.f32 %v1077, %v1078
  %v1080 = vrot.slane %v1079, 4
  %v1081 = vmax.f32 %v1079, %v1080
  %v1082 = vrot.slane %v1081, 2
  %v1083 = vmax.f32 %v1081, %v1082
  %v1084 = vrot.slane %v1083, 1
  %v1085 = vmax.f32 %v1083, %v1084
  %vm1102 = vcmask 1041409
  %v1103 = vsel %vm1102, %v959, %v950
  %vm1104 = vcmask 1042434
  %v1105 = vsel %vm1104, %v968, %v1103
  %vm1106 = vcmask 1043459
  %v1107 = vsel %vm1106, %v977, %v1105
  %vm1108 = vcmask 1044484
  %v1109 = vsel %vm1108, %v986, %v1107
  %vm1110 = vcmask 1045509
  %v1111 = vsel %vm1110, %v995, %v1109
  %vm1112 = vcmask 1046534
  %v1113 = vsel %vm1112, %v1004, %v1111
  %vm1114 = vcmask 1047559
  %v1115 = vsel %vm1114, %v1013, %v1113
  %v1116 = vsel %vm1102, %v1031, %v1022
  %v1117 = vsel %vm1104, %v1040, %v1116
  %v1118 = vsel %vm1106, %v1049, %v1117
  %v1119 = vsel %vm1108, %v1058, %v1118
  %v1120 = vsel %vm1110, %v1067, %v1119
  %v1121 = vsel %vm1112, %v1076, %v1120
  %v1122 = vsel %vm1114, %v1085, %v1121
  %1125 = vst.msk [vmem:[%s3] sm:$0xff] %vm465, %v1115
  %1126 = vst.msk [vmem:[%s3 + $0x8] sm:$0xff] %vm465, %v1122
  // Predicated region
  $region14: #{cnn_rnn_crf_forward.3} parent=0 // pred_check
    _
  $region15: #{cnn_rnn_crf_forward.3} parent=0 // pred_check_branch
    %1128 = sbr.rel (0) target = $region17
  $region16: #{cnn_rnn_crf_forward.3} parent=0 // pred_region
    _
  $region17: #{cnn_rnn_crf_forward.3} parent=0 // pred_fallthru
    _
  // Predicated region
  $region18: #{cnn_rnn_crf_forward.3} parent=0 // pred_check
    _
  $region19: #{cnn_rnn_crf_forward.3} parent=0 // pred_check_branch
    %1130 = sbr.rel (0) target = $region21
  $region20: #{cnn_rnn_crf_forward.3} parent=0 // pred_region
    _
  $region21: #{cnn_rnn_crf_forward.3} parent=0 // pred_fallthru
    _

// kernel: cnn_rnn_crf_forward.4
$region0: #{cnn_rnn_crf_forward.4}
  #allocation0 [shape = 'u32[]', space=smem, size = 0x4, offset = 0x4, fixed_abs, tag = 'smem constant byte address 0x4 - core index']
  #allocation1 [shape = 'u32[144,128]{1,0:T(1,128)}', space=vmem, size = 0x12000, scoped, tag = 'internal scratch']
  #allocation2 [shape = 'f32[2,8,384]{2,1,0:T(8,128)}', space=vmem, size = 0x6000, scoped, tag = 'scratch operand']
  #allocation3 [shape = 'f32[2,8,384]{2,1,0:T(8,128)}', space=vmem, size = 0x6000, scoped, tag = 'scratch operand']
  %s0 = inlined_call_operand.vmem [shape: f32[2,8,32], index: 0, kind: input, shape index: {}]
  %s1 = inlined_call_operand.vmem [shape: f32[32,384], index: 1, kind: input, shape index: {}]
  %s2 = inlined_call_operand.vmem [shape: f32[128,384], index: 2, kind: input, shape index: {}]
  %s3 = inlined_call_operand.vmem [shape: f32[1,384], index: 3, kind: input, shape index: {}]
  %s4 = inlined_call_operand.vmem [shape: f32[1,384], index: 4, kind: input, shape index: {}]
  %s5 = inlined_call_operand.vmem [shape: f32[32,384], index: 5, kind: input, shape index: {}]
  %s6 = inlined_call_operand.vmem [shape: f32[128,384], index: 6, kind: input, shape index: {}]
  %s7 = inlined_call_operand.vmem [shape: f32[1,384], index: 7, kind: input, shape index: {}]
  %s8 = inlined_call_operand.vmem [shape: f32[1,384], index: 8, kind: input, shape index: {}]
  %s9 = inlined_call_operand.vmem [shape: f32[2,8,256], index: 9, kind: output, shape index: {}]
  %s10 = sld [smem:[#allocation0]]
  $region53: #{cnn_rnn_crf_forward.4} parent=0
    _
  %s12 = ssub.s32 1, %s10
  %s13 = scalar_select 0, %s12, %s10
  // Predicated region
  $region2: #{cnn_rnn_crf_forward.4} parent=0 // pred_check
    _
  $region3: #{cnn_rnn_crf_forward.4} parent=0 // pred_check_branch
    %15 = sbr.rel (0) target = $region5
  $region4: #{cnn_rnn_crf_forward.4} parent=0 // pred_region
    _
  $region5: #{cnn_rnn_crf_forward.4} parent=0 // pred_fallthru
    _
  // Predicated region
  $region6: #{cnn_rnn_crf_forward.4} parent=0 // pred_check
    _
  $region7: #{cnn_rnn_crf_forward.4} parent=0 // pred_check_branch
    %17 = sbr.rel (0) target = $region9
  $region8: #{cnn_rnn_crf_forward.4} parent=0 // pred_region
    _
  $region9: #{cnn_rnn_crf_forward.4} parent=0 // pred_fallthru
    _
  // Predicated region
  $region10: #{cnn_rnn_crf_forward.4} parent=0 // pred_check
    _
  $region11: #{cnn_rnn_crf_forward.4} parent=0 // pred_check_branch
    %19 = sbr.rel (0) target = $region13
  $region12: #{cnn_rnn_crf_forward.4} parent=0 // pred_region
    _
  $region13: #{cnn_rnn_crf_forward.4} parent=0 // pred_fallthru
    _
  // Predicated region
  $region14: #{cnn_rnn_crf_forward.4} parent=0 // pred_check
    _
  $region15: #{cnn_rnn_crf_forward.4} parent=0 // pred_check_branch
    %21 = sbr.rel (0) target = $region17
  $region16: #{cnn_rnn_crf_forward.4} parent=0 // pred_region
    _
  $region17: #{cnn_rnn_crf_forward.4} parent=0 // pred_fallthru
    _
  // Predicated region
  $region18: #{cnn_rnn_crf_forward.4} parent=0 // pred_check
    _
  $region19: #{cnn_rnn_crf_forward.4} parent=0 // pred_check_branch
    %23 = sbr.rel (0) target = $region21
  $region20: #{cnn_rnn_crf_forward.4} parent=0 // pred_region
    _
  $region21: #{cnn_rnn_crf_forward.4} parent=0 // pred_fallthru
    _
  // Predicated region
  $region22: #{cnn_rnn_crf_forward.4} parent=0 // pred_check
    _
  $region23: #{cnn_rnn_crf_forward.4} parent=0 // pred_check_branch
    %25 = sbr.rel (0) target = $region25
  $region24: #{cnn_rnn_crf_forward.4} parent=0 // pred_region
    _
  $region25: #{cnn_rnn_crf_forward.4} parent=0 // pred_fallthru
    _
  // Predicated region
  $region26: #{cnn_rnn_crf_forward.4} parent=0 // pred_check
    _
  $region27: #{cnn_rnn_crf_forward.4} parent=0 // pred_check_branch
    %27 = sbr.rel (0) target = $region29
  $region28: #{cnn_rnn_crf_forward.4} parent=0 // pred_region
    _
  $region29: #{cnn_rnn_crf_forward.4} parent=0 // pred_fallthru
    _
  // Predicated region
  $region30: #{cnn_rnn_crf_forward.4} parent=0 // pred_check
    _
  $region31: #{cnn_rnn_crf_forward.4} parent=0 // pred_check_branch
    %29 = sbr.rel (0) target = $region33
  $region32: #{cnn_rnn_crf_forward.4} parent=0 // pred_region
    _
  $region33: #{cnn_rnn_crf_forward.4} parent=0 // pred_fallthru
    _
  // Predicated region
  $region34: #{cnn_rnn_crf_forward.4} parent=0 // pred_check
    _
  $region35: #{cnn_rnn_crf_forward.4} parent=0 // pred_check_branch
    %31 = sbr.rel (0) target = $region37
  $region36: #{cnn_rnn_crf_forward.4} parent=0 // pred_region
    _
  $region37: #{cnn_rnn_crf_forward.4} parent=0 // pred_fallthru
    _
  %v33 = vld [vmem:[%s0] sm:$0xff]
  %v34 = vld [vmem:[%s0 + $0x8] sm:$0xff]
  %v35 = vpack.c.bf16 %v34, %v33
  %v36 = vld [vmem:[%s1] sm:$0xff]
  %v37 = vld [vmem:[%s1 + $0x8] sm:$0xff]
  %v38 = vld [vmem:[%s1 + $0x10] sm:$0xff]
  %v39 = vld [vmem:[%s1 + $0x18] sm:$0xff]
  %v40 = vld [vmem:[%s1 + $0x20] sm:$0xff]
  %v41 = vld [vmem:[%s1 + $0x28] sm:$0xff]
  %v42 = vld [vmem:[%s1 + $0x30] sm:$0xff]
  %v43 = vld [vmem:[%s1 + $0x38] sm:$0xff]
  %v44 = vld [vmem:[%s1 + $0x40] sm:$0xff]
  %v45 = vld [vmem:[%s1 + $0x48] sm:$0xff]
  %v46 = vld [vmem:[%s1 + $0x50] sm:$0xff]
  %v47 = vld [vmem:[%s1 + $0x58] sm:$0xff]
  %v48 = vpack.c.bf16 %v39, %v36
  %v49 = vpack.c.bf16 %v40, %v37
  %v50 = vpack.c.bf16 %v41, %v38
  %v51 = vpack.c.bf16 %v45, %v42
  %v52 = vpack.c.bf16 %v46, %v43
  %v53 = vpack.c.bf16 %v47, %v44
  %v54 = vld [vmem:[%s3] sm:$0x7]
  %v56 = vlaneseq
  %v57 = vshrl.u32 %v56, 7
  %v58 = vsub.s32 0, %v57
  %v59 = vrot.slane %v54, %v58
  %v60 = vlaneseq
  %v61 = vshrl.u32 %v60, 7
  %v62 = vsub.s32 1, %v61
  %v63 = vrot.slane %v54, %v62
  %v64 = vlaneseq
  %v65 = vshrl.u32 %v64, 7
  %v66 = vsub.s32 2, %v65
  %v67 = vrot.slane %v54, %v66
  %vm71 = vcmask 261120
  %v73 = vsel %vm71, %v35, 0
  %75 = vmatprep.subr.bf16.mxu0 %v49
  %76 = vmatpush1.bf16.msra.mxu0 %v48
  %77 = vmatprep.subr.bf16.mxu0 %v52
  %78 = vmatpush1.bf16.msra.mxu0 %v51
  %79 = vmatprep.subr.bf16.mxu0 0
  %80 = vmatpush1.bf16.msra.mxu0 0
  %81 = vmatprep.subr.bf16.mxu0 0
  %82 = vmatpush1.bf16.msra.mxu0 0
  %83 = vmatprep.subr.bf16.mxu0 0
  %84 = vmatpush1.bf16.msra.mxu0 0
  %85 = vmatprep.subr.bf16.mxu0 0
  %86 = vmatpush1.bf16.msra.mxu0 0
  %87 = vmatprep.subr.bf16.mxu0 0
  %88 = vmatpush1.bf16.msra.mxu0 0
  %89 = vmatprep.subr.bf16.mxu0 0
  %90 = vmatpush1.bf16.msra.mxu0 0
  %91 = vmatprep.subr.bf16.mxu0 0
  %92 = vmatpush1.bf16.msra.mxu0 0
  %93 = vmatprep.subr.bf16.mxu0 0
  %94 = vmatpush1.bf16.msra.mxu0 0
  %95 = vmatprep.subr.bf16.mxu0 0
  %96 = vmatpush1.bf16.msra.mxu0 0
  %97 = vmatprep.subr.bf16.mxu0 0
  %98 = vmatpush1.bf16.msra.mxu0 0
  %99 = vmatprep.subr.bf16.mxu0 0
  %100 = vmatpush1.bf16.msra.mxu0 0
  %101 = vmatprep.subr.bf16.mxu0 0
  %102 = vmatpush1.bf16.msra.mxu0 0
  %103 = vmatprep.subr.bf16.mxu0 0
  %104 = vmatpush1.bf16.msra.mxu0 0
  %105 = vmatprep.subr.bf16.mxu0 0
  %106 = vmatpush1.bf16.msra.mxu0 0
  %107 = vmatprep.mubr.bf16.mxu0 0
  %108 = vmatmul.mubr.bf16.gmra.mrb[0].mxu0 %v73
  %v109 = vpop.f32.mrb[0].mxu0
  %v110 = vadd.f32 %v59, %v109
  %v111 = vpop.f32.mrb[0].mxu0
  %v112 = vadd.f32 %v63, %v111
  %v113 = vpop.f32.mrb[0].mxu0
  %v114 = vadd.f32 %v59, %v113
  %v115 = vpop.f32.mrb[0].mxu0
  %v116 = vadd.f32 %v63, %v115
  %117 = vdwg.mxu0
  %118 = vmatprep.subr.bf16.mxu0 0
  %119 = vmatpush1.bf16.msra.mxu0 %v50
  %120 = vmatprep.subr.bf16.mxu0 0
  %121 = vmatpush1.bf16.msra.mxu0 %v53
  %122 = vmatprep.subr.bf16.mxu0 0
  %123 = vmatpush1.bf16.msra.mxu0 0
  %124 = vmatprep.subr.bf16.mxu0 0
  %125 = vmatpush1.bf16.msra.mxu0 0
  %126 = vmatprep.subr.bf16.mxu0 0
  %127 = vmatpush1.bf16.msra.mxu0 0
  %128 = vmatprep.subr.bf16.mxu0 0
  %129 = vmatpush1.bf16.msra.mxu0 0
  %130 = vmatprep.subr.bf16.mxu0 0
  %131 = vmatpush1.bf16.msra.mxu0 0
  %132 = vmatprep.subr.bf16.mxu0 0
  %133 = vmatpush1.bf16.msra.mxu0 0
  %134 = vmatprep.subr.bf16.mxu0 0
  %135 = vmatpush1.bf16.msra.mxu0 0
  %136 = vmatprep.subr.bf16.mxu0 0
  %137 = vmatpush1.bf16.msra.mxu0 0
  %138 = vmatprep.subr.bf16.mxu0 0
  %139 = vmatpush1.bf16.msra.mxu0 0
  %140 = vmatprep.subr.bf16.mxu0 0
  %141 = vmatpush1.bf16.msra.mxu0 0
  %142 = vmatprep.subr.bf16.mxu0 0
  %143 = vmatpush1.bf16.msra.mxu0 0
  %144 = vmatprep.subr.bf16.mxu0 0
  %145 = vmatpush1.bf16.msra.mxu0 0
  %146 = vmatprep.subr.bf16.mxu0 0
  %147 = vmatpush1.bf16.msra.mxu0 0
  %148 = vmatprep.subr.bf16.mxu0 0
  %149 = vmatpush1.bf16.msra.mxu0 0
  %150 = vmatprep.mubr.bf16.mxu0 0
  %151 = vmatmul.mubr.bf16.gmra.mrb[0].mxu0 %v73
  %v152 = vpop.f32.mrb[0].mxu0
  %v153 = vadd.f32 %v67, %v152
  %v154 = vpop.f32.mrb[0].mxu0
  %v155 = vpop.f32.mrb[0].mxu0
  %v156 = vadd.f32 %v67, %v155
  %v157 = vpop.f32.mrb[0].mxu0
  %158 = vdwg.mxu0
  %159 = vst [vmem:[#allocation2] sm:$0xff] %v110
  %160 = vst [vmem:[#allocation2 + $0x8] sm:$0xff] %v112
  %161 = vst [vmem:[#allocation2 + $0x10] sm:$0xff] %v153
  %162 = vst [vmem:[#allocation2 + $0x18] sm:$0xff] %v114
  %163 = vst [vmem:[#allocation2 + $0x20] sm:$0xff] %v116
  %164 = vst [vmem:[#allocation2 + $0x28] sm:$0xff] %v156
  %v165 = vld [vmem:[%s5] sm:$0xff]
  %v166 = vld [vmem:[%s5 + $0x8] sm:$0xff]
  %v167 = vld [vmem:[%s5 + $0x10] sm:$0xff]
  %v168 = vld [vmem:[%s5 + $0x18] sm:$0xff]
  %v169 = vld [vmem:[%s5 + $0x20] sm:$0xff]
  %v170 = vld [vmem:[%s5 + $0x28] sm:$0xff]
  %v171 = vld [vmem:[%s5 + $0x30] sm:$0xff]
  %v172 = vld [vmem:[%s5 + $0x38] sm:$0xff]
  %v173 = vld [vmem:[%s5 + $0x40] sm:$0xff]
  %v174 = vld [vmem:[%s5 + $0x48] sm:$0xff]
  %v175 = vld [vmem:[%s5 + $0x50] sm:$0xff]
  %v176 = vld [vmem:[%s5 + $0x58] sm:$0xff]
  %v177 = vpack.c.bf16 %v168, %v165
  %v178 = vpack.c.bf16 %v169, %v166
  %v179 = vpack.c.bf16 %v170, %v167
  %v180 = vpack.c.bf16 %v174, %v171
  %v181 = vpack.c.bf16 %v175, %v172
  %v182 = vpack.c.bf16 %v176, %v173
  %v183 = vld [vmem:[%s7] sm:$0x7]
  %v185 = vlaneseq
  %v186 = vshrl.u32 %v185, 7
  %v187 = vsub.s32 0, %v186
  %v188 = vrot.slane %v183, %v187
  %v189 = vlaneseq
  %v190 = vshrl.u32 %v189, 7
  %v191 = vsub.s32 1, %v190
  %v192 = vrot.slane %v183, %v191
  %v193 = vlaneseq
  %v194 = vshrl.u32 %v193, 7
  %v195 = vsub.s32 2, %v194
  %v196 = vrot.slane %v183, %v195
  %200 = vmatprep.subr.bf16.mxu0 %v178
  %201 = vmatpush1.bf16.msra.mxu0 %v177
  %202 = vmatprep.subr.bf16.mxu0 %v181
  %203 = vmatpush1.bf16.msra.mxu0 %v180
  %204 = vmatprep.subr.bf16.mxu0 0
  %205 = vmatpush1.bf16.msra.mxu0 0
  %206 = vmatprep.subr.bf16.mxu0 0
  %207 = vmatpush1.bf16.msra.mxu0 0
  %208 = vmatprep.subr.bf16.mxu0 0
  %209 = vmatpush1.bf16.msra.mxu0 0
  %210 = vmatprep.subr.bf16.mxu0 0
  %211 = vmatpush1.bf16.msra.mxu0 0
  %212 = vmatprep.subr.bf16.mxu0 0
  %213 = vmatpush1.bf16.msra.mxu0 0
  %214 = vmatprep.subr.bf16.mxu0 0
  %215 = vmatpush1.bf16.msra.mxu0 0
  %216 = vmatprep.subr.bf16.mxu0 0
  %217 = vmatpush1.bf16.msra.mxu0 0
  %218 = vmatprep.subr.bf16.mxu0 0
  %219 = vmatpush1.bf16.msra.mxu0 0
  %220 = vmatprep.subr.bf16.mxu0 0
  %221 = vmatpush1.bf16.msra.mxu0 0
  %222 = vmatprep.subr.bf16.mxu0 0
  %223 = vmatpush1.bf16.msra.mxu0 0
  %224 = vmatprep.subr.bf16.mxu0 0
  %225 = vmatpush1.bf16.msra.mxu0 0
  %226 = vmatprep.subr.bf16.mxu0 0
  %227 = vmatpush1.bf16.msra.mxu0 0
  %228 = vmatprep.subr.bf16.mxu0 0
  %229 = vmatpush1.bf16.msra.mxu0 0
  %230 = vmatprep.subr.bf16.mxu0 0
  %231 = vmatpush1.bf16.msra.mxu0 0
  %232 = vmatprep.mubr.bf16.mxu0 0
  %233 = vmatmul.mubr.bf16.gmra.mrb[0].mxu0 %v73
  %v234 = vpop.f32.mrb[0].mxu0
  %v235 = vadd.f32 %v188, %v234
  %v236 = vpop.f32.mrb[0].mxu0
  %v237 = vadd.f32 %v192, %v236
  %v238 = vpop.f32.mrb[0].mxu0
  %v239 = vadd.f32 %v188, %v238
  %v240 = vpop.f32.mrb[0].mxu0
  %v241 = vadd.f32 %v192, %v240
  %242 = vdwg.mxu0
  %243 = vmatprep.subr.bf16.mxu0 0
  %244 = vmatpush1.bf16.msra.mxu0 %v179
  %245 = vmatprep.subr.bf16.mxu0 0
  %246 = vmatpush1.bf16.msra.mxu0 %v182
  %247 = vmatprep.subr.bf16.mxu0 0
  %248 = vmatpush1.bf16.msra.mxu0 0
  %249 = vmatprep.subr.bf16.mxu0 0
  %250 = vmatpush1.bf16.msra.mxu0 0
  %251 = vmatprep.subr.bf16.mxu0 0
  %252 = vmatpush1.bf16.msra.mxu0 0
  %253 = vmatprep.subr.bf16.mxu0 0
  %254 = vmatpush1.bf16.msra.mxu0 0
  %255 = vmatprep.subr.bf16.mxu0 0
  %256 = vmatpush1.bf16.msra.mxu0 0
  %257 = vmatprep.subr.bf16.mxu0 0
  %258 = vmatpush1.bf16.msra.mxu0 0
  %259 = vmatprep.subr.bf16.mxu0 0
  %260 = vmatpush1.bf16.msra.mxu0 0
  %261 = vmatprep.subr.bf16.mxu0 0
  %262 = vmatpush1.bf16.msra.mxu0 0
  %263 = vmatprep.subr.bf16.mxu0 0
  %264 = vmatpush1.bf16.msra.mxu0 0
  %265 = vmatprep.subr.bf16.mxu0 0
  %266 = vmatpush1.bf16.msra.mxu0 0
  %267 = vmatprep.subr.bf16.mxu0 0
  %268 = vmatpush1.bf16.msra.mxu0 0
  %269 = vmatprep.subr.bf16.mxu0 0
  %270 = vmatpush1.bf16.msra.mxu0 0
  %271 = vmatprep.subr.bf16.mxu0 0
  %272 = vmatpush1.bf16.msra.mxu0 0
  %273 = vmatprep.subr.bf16.mxu0 0
  %274 = vmatpush1.bf16.msra.mxu0 0
  %275 = vmatprep.mubr.bf16.mxu0 0
  %276 = vmatmul.mubr.bf16.gmra.mrb[0].mxu0 %v73
  %v277 = vpop.f32.mrb[0].mxu0
  %v278 = vadd.f32 %v196, %v277
  %v279 = vpop.f32.mrb[0].mxu0
  %v280 = vpop.f32.mrb[0].mxu0
  %v281 = vadd.f32 %v196, %v280
  %v282 = vpop.f32.mrb[0].mxu0
  %283 = vdwg.mxu0
  %284 = vst [vmem:[#allocation3] sm:$0xff] %v235
  %285 = vst [vmem:[#allocation3 + $0x8] sm:$0xff] %v237
  %286 = vst [vmem:[#allocation3 + $0x10] sm:$0xff] %v278
  %287 = vst [vmem:[#allocation3 + $0x18] sm:$0xff] %v239
  %288 = vst [vmem:[#allocation3 + $0x20] sm:$0xff] %v241
  %289 = vst [vmem:[#allocation3 + $0x28] sm:$0xff] %v281
  %v290 = vld [vmem:[%s2] sm:$0xff]
  %v291 = vld [vmem:[%s2 + $0x8] sm:$0xff]
  %v292 = vld [vmem:[%s2 + $0x10] sm:$0xff]
  %v293 = vld [vmem:[%s2 + $0x18] sm:$0xff]
  %v294 = vld [vmem:[%s2 + $0x20] sm:$0xff]
  %v295 = vld [vmem:[%s2 + $0x28] sm:$0xff]
  %v296 = vld [vmem:[%s2 + $0x30] sm:$0xff]
  %v297 = vld [vmem:[%s2 + $0x38] sm:$0xff]
  %v298 = vld [vmem:[%s2 + $0x40] sm:$0xff]
  %v299 = vld [vmem:[%s2 + $0x48] sm:$0xff]
  %v300 = vld [vmem:[%s2 + $0x50] sm:$0xff]
  %v301 = vld [vmem:[%s2 + $0x58] sm:$0xff]
  %v302 = vld [vmem:[%s2 + $0x60] sm:$0xff]
  %v303 = vld [vmem:[%s2 + $0x68] sm:$0xff]
  %v304 = vld [vmem:[%s2 + $0x70] sm:$0xff]
  %v305 = vld [vmem:[%s2 + $0x78] sm:$0xff]
  %v306 = vld [vmem:[%s2 + $0x80] sm:$0xff]
  %v307 = vld [vmem:[%s2 + $0x88] sm:$0xff]
  %v308 = vld [vmem:[%s2 + $0x90] sm:$0xff]
  %v309 = vld [vmem:[%s2 + $0x98] sm:$0xff]
  %v310 = vld [vmem:[%s2 + $0xa0] sm:$0xff]
  %v311 = vld [vmem:[%s2 + $0xa8] sm:$0xff]
  %v312 = vld [vmem:[%s2 + $0xb0] sm:$0xff]
  %v313 = vld [vmem:[%s2 + $0xb8] sm:$0xff]
  %v314 = vld [vmem:[%s2 + $0xc0] sm:$0xff]
  %v315 = vld [vmem:[%s2 + $0xc8] sm:$0xff]
  %v316 = vld [vmem:[%s2 + $0xd0] sm:$0xff]
  %v317 = vld [vmem:[%s2 + $0xd8] sm:$0xff]
  %v318 = vld [vmem:[%s2 + $0xe0] sm:$0xff]
  %v319 = vld [vmem:[%s2 + $0xe8] sm:$0xff]
  %v320 = vld [vmem:[%s2 + $0xf0] sm:$0xff]
  %v321 = vld [vmem:[%s2 + $0xf8] sm:$0xff]
  %v322 = vld [vmem:[%s2 + $0x100] sm:$0xff]
  %v323 = vld [vmem:[%s2 + $0x108] sm:$0xff]
  %v324 = vld [vmem:[%s2 + $0x110] sm:$0xff]
  %v325 = vld [vmem:[%s2 + $0x118] sm:$0xff]
  %v326 = vld [vmem:[%s2 + $0x120] sm:$0xff]
  %v327 = vld [vmem:[%s2 + $0x128] sm:$0xff]
  %v328 = vld [vmem:[%s2 + $0x130] sm:$0xff]
  %v329 = vld [vmem:[%s2 + $0x138] sm:$0xff]
  %v330 = vld [vmem:[%s2 + $0x140] sm:$0xff]
  %v331 = vld [vmem:[%s2 + $0x148] sm:$0xff]
  %v332 = vld [vmem:[%s2 + $0x150] sm:$0xff]
  %v333 = vld [vmem:[%s2 + $0x158] sm:$0xff]
  %v334 = vld [vmem:[%s2 + $0x160] sm:$0xff]
  %v335 = vld [vmem:[%s2 + $0x168] sm:$0xff]
  %v336 = vld [vmem:[%s2 + $0x170] sm:$0xff]
  %v337 = vld [vmem:[%s2 + $0x178] sm:$0xff]
  %v338 = vpack.c.bf16 %v293, %v290
  %v339 = vpack.c.bf16 %v294, %v291
  %v340 = vpack.c.bf16 %v295, %v292
  %v341 = vpack.c.bf16 %v299, %v296
  %v342 = vpack.c.bf16 %v300, %v297
  %v343 = vpack.c.bf16 %v301, %v298
  %v344 = vpack.c.bf16 %v305, %v302
  %v345 = vpack.c.bf16 %v306, %v303
  %v346 = vpack.c.bf16 %v307, %v304
  %v347 = vpack.c.bf16 %v311, %v308
  %v348 = vpack.c.bf16 %v312, %v309
  %v349 = vpack.c.bf16 %v313, %v310
  %v350 = vpack.c.bf16 %v317, %v314
  %v351 = vpack.c.bf16 %v318, %v315
  %v352 = vpack.c.bf16 %v319, %v316
  %v353 = vpack.c.bf16 %v323, %v320
  %v354 = vpack.c.bf16 %v324, %v321
  %v355 = vpack.c.bf16 %v325, %v322
  %v356 = vpack.c.bf16 %v329, %v326
  %v357 = vpack.c.bf16 %v330, %v327
  %v358 = vpack.c.bf16 %v331, %v328
  %v359 = vpack.c.bf16 %v335, %v332
  %v360 = vpack.c.bf16 %v336, %v333
  %v361 = vpack.c.bf16 %v337, %v334
  %v362 = vld [vmem:[%s6] sm:$0xff]
  %v363 = vld [vmem:[%s6 + $0x8] sm:$0xff]
  %v364 = vld [vmem:[%s6 + $0x10] sm:$0xff]
  %v365 = vld [vmem:[%s6 + $0x18] sm:$0xff]
  %v366 = vld [vmem:[%s6 + $0x20] sm:$0xff]
  %v367 = vld [vmem:[%s6 + $0x28] sm:$0xff]
  %v368 = vld [vmem:[%s6 + $0x30] sm:$0xff]
  %v369 = vld [vmem:[%s6 + $0x38] sm:$0xff]
  %v370 = vld [vmem:[%s6 + $0x40] sm:$0xff]
  %v371 = vld [vmem:[%s6 + $0x48] sm:$0xff]
  %v372 = vld [vmem:[%s6 + $0x50] sm:$0xff]
  %v373 = vld [vmem:[%s6 + $0x58] sm:$0xff]
  %v374 = vld [vmem:[%s6 + $0x60] sm:$0xff]
  %v375 = vld [vmem:[%s6 + $0x68] sm:$0xff]
  %v376 = vld [vmem:[%s6 + $0x70] sm:$0xff]
  %v377 = vld [vmem:[%s6 + $0x78] sm:$0xff]
  %v378 = vld [vmem:[%s6 + $0x80] sm:$0xff]
  %v379 = vld [vmem:[%s6 + $0x88] sm:$0xff]
  %v380 = vld [vmem:[%s6 + $0x90] sm:$0xff]
  %v381 = vld [vmem:[%s6 + $0x98] sm:$0xff]
  %v382 = vld [vmem:[%s6 + $0xa0] sm:$0xff]
  %v383 = vld [vmem:[%s6 + $0xa8] sm:$0xff]
  %v384 = vld [vmem:[%s6 + $0xb0] sm:$0xff]
  %v385 = vld [vmem:[%s6 + $0xb8] sm:$0xff]
  %v386 = vld [vmem:[%s6 + $0xc0] sm:$0xff]
  %v387 = vld [vmem:[%s6 + $0xc8] sm:$0xff]
  %v388 = vld [vmem:[%s6 + $0xd0] sm:$0xff]
  %v389 = vld [vmem:[%s6 + $0xd8] sm:$0xff]
  %v390 = vld [vmem:[%s6 + $0xe0] sm:$0xff]
  %v391 = vld [vmem:[%s6 + $0xe8] sm:$0xff]
  %v392 = vld [vmem:[%s6 + $0xf0] sm:$0xff]
  %v393 = vld [vmem:[%s6 + $0xf8] sm:$0xff]
  %v394 = vld [vmem:[%s6 + $0x100] sm:$0xff]
  %v395 = vld [vmem:[%s6 + $0x108] sm:$0xff]
  %v396 = vld [vmem:[%s6 + $0x110] sm:$0xff]
  %v397 = vld [vmem:[%s6 + $0x118] sm:$0xff]
  %v398 = vld [vmem:[%s6 + $0x120] sm:$0xff]
  %v399 = vld [vmem:[%s6 + $0x128] sm:$0xff]
  %v400 = vld [vmem:[%s6 + $0x130] sm:$0xff]
  %v401 = vld [vmem:[%s6 + $0x138] sm:$0xff]
  %v402 = vld [vmem:[%s6 + $0x140] sm:$0xff]
  %v403 = vld [vmem:[%s6 + $0x148] sm:$0xff]
  %v404 = vld [vmem:[%s6 + $0x150] sm:$0xff]
  %v405 = vld [vmem:[%s6 + $0x158] sm:$0xff]
  %v406 = vld [vmem:[%s6 + $0x160] sm:$0xff]
  %v407 = vld [vmem:[%s6 + $0x168] sm:$0xff]
  %v408 = vld [vmem:[%s6 + $0x170] sm:$0xff]
  %v409 = vld [vmem:[%s6 + $0x178] sm:$0xff]
  %v410 = vpack.c.bf16 %v365, %v362
  %v411 = vpack.c.bf16 %v366, %v363
  %v412 = vpack.c.bf16 %v367, %v364
  %v413 = vpack.c.bf16 %v371, %v368
  %v414 = vpack.c.bf16 %v372, %v369
  %v415 = vpack.c.bf16 %v373, %v370
  %v416 = vpack.c.bf16 %v377, %v374
  %v417 = vpack.c.bf16 %v378, %v375
  %v418 = vpack.c.bf16 %v379, %v376
  %v419 = vpack.c.bf16 %v383, %v380
  %v420 = vpack.c.bf16 %v384, %v381
  %v421 = vpack.c.bf16 %v385, %v382
  %v422 = vpack.c.bf16 %v389, %v386
  %v423 = vpack.c.bf16 %v390, %v387
  %v424 = vpack.c.bf16 %v391, %v388
  %v425 = vpack.c.bf16 %v395, %v392
  %v426 = vpack.c.bf16 %v396, %v393
  %v427 = vpack.c.bf16 %v397, %v394
  %v428 = vpack.c.bf16 %v401, %v398
  %v429 = vpack.c.bf16 %v402, %v399
  %v430 = vpack.c.bf16 %v403, %v400
  %v431 = vpack.c.bf16 %v407, %v404
  %v432 = vpack.c.bf16 %v408, %v405
  %v433 = vpack.c.bf16 %v409, %v406
  %v434 = vld [vmem:[%s4] sm:$0x7]
  %v436 = vlaneseq
  %v437 = vshrl.u32 %v436, 7
  %v438 = vsub.s32 0, %v437
  %v439 = vrot.slane %v434, %v438
  %v440 = vlaneseq
  %v441 = vshrl.u32 %v440, 7
  %v442 = vsub.s32 1, %v441
  %v443 = vrot.slane %v434, %v442
  %v444 = vlaneseq
  %v445 = vshrl.u32 %v444, 7
  %v446 = vsub.s32 2, %v445
  %v447 = vrot.slane %v434, %v446
  %v451 = vld [vmem:[%s8] sm:$0x7]
  %v453 = vlaneseq
  %v454 = vshrl.u32 %v453, 7
  %v455 = vsub.s32 0, %v454
  %v456 = vrot.slane %v451, %v455
  %v457 = vlaneseq
  %v458 = vshrl.u32 %v457, 7
  %v459 = vsub.s32 1, %v458
  %v460 = vrot.slane %v451, %v459
  %v461 = vlaneseq
  %v462 = vshrl.u32 %v461, 7
  %v463 = vsub.s32 2, %v462
  %v464 = vrot.slane %v451, %v463
  loop: start=0, step=1, limit=2
  $region38: #{cnn_rnn_crf_forward.4} parent=0 // loop_pre_header
    _
  $region39: #{cnn_rnn_crf_forward.4} parent=0 // loop_header
    %s469 = sphi 0, %s473
    %p470 = scmp.ge.s32.totalorder %s469, 2
    %v474 = vphi 0.0, %v585
    %v475 = vphi 0.0, %v694
  $region40: #{cnn_rnn_crf_forward.4} parent=0 // loop_header_branch
    %472 = sbr.rel (%p470) target = $region44
  $region41: #{cnn_rnn_crf_forward.4} parent=0 // loop_body
    %s476 = ssub.s32 1, %s469
    %s477 = smul.u32 %s469, 3
    %s478 = smul.addr %s477, 8
    %s479 = scalar_lea.vmem [#allocation2], %s478
    %v480 = vld [vmem:[%s479] sm:$0xff]
    %v481 = vld [vmem:[%s479 + $0x8] sm:$0xff]
    %v482 = vld [vmem:[%s479 + $0x10] sm:$0xff]
    %v483 = vpack.c.bf16 %v474, %v474
    %484 = vmatprep.subr.bf16.mxu0 %v339
    %485 = vmatpush1.bf16.msra.mxu0 %v338
    %486 = vmatprep.subr.bf16.mxu0 %v342
    %487 = vmatpush1.bf16.msra.mxu0 %v341
    %488 = vmatprep.subr.bf16.mxu0 %v345
    %489 = vmatpush1.bf16.msra.mxu0 %v344
    %490 = vmatprep.subr.bf16.mxu0 %v348
    %491 = vmatpush1.bf16.msra.mxu0 %v347
    %492 = vmatprep.subr.bf16.mxu0 %v351
    %493 = vmatpush1.bf16.msra.mxu0 %v350
    %494 = vmatprep.subr.bf16.mxu0 %v354
    %495 = vmatpush1.bf16.msra.mxu0 %v353
    %496 = vmatprep.subr.bf16.mxu0 %v357
    %497 = vmatpush1.bf16.msra.mxu0 %v356
    %498 = vmatprep.subr.bf16.mxu0 %v360
    %499 = vmatpush1.bf16.msra.mxu0 %v359
    %500 = vmatprep.subr.bf16.mxu0 0
    %501 = vmatpush1.bf16.msra.mxu0 0
    %502 = vmatprep.subr.bf16.mxu0 0
    %503 = vmatpush1.bf16.msra.mxu0 0
    %504 = vmatprep.subr.bf16.mxu0 0
    %505 = vmatpush1.bf16.msra.mxu0 0
    %506 = vmatprep.subr.bf16.mxu0 0
    %507 = vmatpush1.bf16.msra.mxu0 0
    %508 = vmatprep.subr.bf16.mxu0 0
    %509 = vmatpush1.bf16.msra.mxu0 0
    %510 = vmatprep.subr.bf16.mxu0 0
    %511 = vmatpush1.bf16.msra.mxu0 0
    %512 = vmatprep.subr.bf16.mxu0 0
    %513 = vmatpush1.bf16.msra.mxu0 0
    %514 = vmatprep.subr.bf16.mxu0 0
    %515 = vmatpush1.bf16.msra.mxu0 0
    %516 = vmatprep.mubr.bf16.mxu0 0
    %517 = vmatmul.mubr.bf16.gmra.mrb[0].mxu0 %v483
    %v518 = vpop.f32.mrb[0].mxu0
    %v519 = vadd.f32 %v439, %v518
    %v520 = vpop.f32.mrb[0].mxu0
    %v521 = vadd.f32 %v443, %v520
    %v522 = vpop.f32.mrb[0].mxu0
    %v523 = vpop.f32.mrb[0].mxu0
    %524 = vdwg.mxu0
    %525 = vmatprep.subr.bf16.mxu0 0
    %526 = vmatpush1.bf16.msra.mxu0 %v340
    %527 = vmatprep.subr.bf16.mxu0 0
    %528 = vmatpush1.bf16.msra.mxu0 %v343
    %529 = vmatprep.subr.bf16.mxu0 0
    %530 = vmatpush1.bf16.msra.mxu0 %v346
    %531 = vmatprep.subr.bf16.mxu0 0
    %532 = vmatpush1.bf16.msra.mxu0 %v349
    %533 = vmatprep.subr.bf16.mxu0 0
    %534 = vmatpush1.bf16.msra.mxu0 %v352
    %535 = vmatprep.subr.bf16.mxu0 0
    %536 = vmatpush1.bf16.msra.mxu0 %v355
    %537 = vmatprep.subr.bf16.mxu0 0
    %538 = vmatpush1.bf16.msra.mxu0 %v358
    %539 = vmatprep.subr.bf16.mxu0 0
    %540 = vmatpush1.bf16.msra.mxu0 %v361
    %541 = vmatprep.subr.bf16.mxu0 0
    %542 = vmatpush1.bf16.msra.mxu0 0
    %543 = vmatprep.subr.bf16.mxu0 0
    %544 = vmatpush1.bf16.msra.mxu0 0
    %545 = vmatprep.subr.bf16.mxu0 0
    %546 = vmatpush1.bf16.msra.mxu0 0
    %547 = vmatprep.subr.bf16.mxu0 0
    %548 = vmatpush1.bf16.msra.mxu0 0
    %549 = vmatprep.subr.bf16.mxu0 0
    %550 = vmatpush1.bf16.msra.mxu0 0
    %551 = vmatprep.subr.bf16.mxu0 0
    %552 = vmatpush1.bf16.msra.mxu0 0
    %553 = vmatprep.subr.bf16.mxu0 0
    %554 = vmatpush1.bf16.msra.mxu0 0
    %555 = vmatprep.subr.bf16.mxu0 0
    %556 = vmatpush1.bf16.msra.mxu0 0
    %557 = vmatprep.mubr.bf16.mxu0 0
    %558 = vmatmul.mubr.bf16.gmra.mrb[0].mxu0 %v483
    %v559 = vpop.f32.mrb[0].mxu0
    %v560 = vadd.f32 %v447, %v559
    %v561 = vpop.f32.mrb[0].mxu0
    %v562 = vpop.f32.mrb[0].mxu0
    %v563 = vpop.f32.mrb[0].mxu0
    %564 = vdwg.mxu0
    %v565 = vadd.f32 %v480, %v519
    %v566 = vxor.u32 %v565, 2147483648
    %v567 = vmul.f32 %v566, 1.442695
    %v568 = vpow.pop %v567
    %v569 = vadd.f32 %v568, 1.0
    %v570 = vrcp.pop %v569
    %v571 = vmul.f32 1.0, %v570
    %v572 = vadd.f32 %v481, %v521
    %v573 = vxor.u32 %v572, 2147483648
    %v574 = vmul.f32 %v573, 1.442695
    %v575 = vpow.pop %v574
    %v576 = vadd.f32 %v575, 1.0
    %v577 = vrcp.pop %v576
    %v578 = vmul.f32 1.0, %v577
    %v579 = vmul.f32 %v571, %v560
    %v580 = vadd.f32 %v482, %v579
    %v581 = vtanh.pop %v580
    %v582 = vsub.f32 1.0, %v578
    %v583 = vmul.f32 %v582, %v581
    %v584 = vmul.f32 %v578, %v474
    %v585 = vadd.f32 %v583, %v584
    %s586 = smul.u32 %s476, 3
    %s587 = smul.addr %s586, 8
    %s588 = scalar_lea.vmem [#allocation3], %s587
    %v589 = vld [vmem:[%s588] sm:$0xff]
    %v590 = vld [vmem:[%s588 + $0x8] sm:$0xff]
    %v591 = vld [vmem:[%s588 + $0x10] sm:$0xff]
    %v592 = vpack.c.bf16 %v475, %v475
    %593 = vmatprep.subr.bf16.mxu0 %v411
    %594 = vmatpush1.bf16.msra.mxu0 %v410
    %595 = vmatprep.subr.bf16.mxu0 %v414
    %596 = vmatpush1.bf16.msra.mxu0 %v413
    %597 = vmatprep.subr.bf16.mxu0 %v417
    %598 = vmatpush1.bf16.msra.mxu0 %v416
    %599 = vmatprep.subr.bf16.mxu0 %v420
    %600 = vmatpush1.bf16.msra.mxu0 %v419
    %601 = vmatprep.subr.bf16.mxu0 %v423
    %602 = vmatpush1.bf16.msra.mxu0 %v422
    %603 = vmatprep.subr.bf16.mxu0 %v426
    %604 = vmatpush1.bf16.msra.mxu0 %v425
    %605 = vmatprep.subr.bf16.mxu0 %v429
    %606 = vmatpush1.bf16.msra.mxu0 %v428
    %607 = vmatprep.subr.bf16.mxu0 %v432
    %608 = vmatpush1.bf16.msra.mxu0 %v431
    %609 = vmatprep.subr.bf16.mxu0 0
    %610 = vmatpush1.bf16.msra.mxu0 0
    %611 = vmatprep.subr.bf16.mxu0 0
    %612 = vmatpush1.bf16.msra.mxu0 0
    %613 = vmatprep.subr.bf16.mxu0 0
    %614 = vmatpush1.bf16.msra.mxu0 0
    %615 = vmatprep.subr.bf16.mxu0 0
    %616 = vmatpush1.bf16.msra.mxu0 0
    %617 = vmatprep.subr.bf16.mxu0 0
    %618 = vmatpush1.bf16.msra.mxu0 0
    %619 = vmatprep.subr.bf16.mxu0 0
    %620 = vmatpush1.bf16.msra.mxu0 0
    %621 = vmatprep.subr.bf16.mxu0 0
    %622 = vmatpush1.bf16.msra.mxu0 0
    %623 = vmatprep.subr.bf16.mxu0 0
    %624 = vmatpush1.bf16.msra.mxu0 0
    %625 = vmatprep.mubr.bf16.mxu0 0
    %626 = vmatmul.mubr.bf16.gmra.mrb[0].mxu0 %v592
    %v627 = vpop.f32.mrb[0].mxu0
    %v628 = vadd.f32 %v456, %v627
    %v629 = vpop.f32.mrb[0].mxu0
    %v630 = vadd.f32 %v460, %v629
    %v631 = vpop.f32.mrb[0].mxu0
    %v632 = vpop.f32.mrb[0].mxu0
    %633 = vdwg.mxu0
    %634 = vmatprep.subr.bf16.mxu0 0
    %635 = vmatpush1.bf16.msra.mxu0 %v412
    %636 = vmatprep.subr.bf16.mxu0 0
    %637 = vmatpush1.bf16.msra.mxu0 %v415
    %638 = vmatprep.subr.bf16.mxu0 0
    %639 = vmatpush1.bf16.msra.mxu0 %v418
    %640 = vmatprep.subr.bf16.mxu0 0
    %641 = vmatpush1.bf16.msra.mxu0 %v421
    %642 = vmatprep.subr.bf16.mxu0 0
    %643 = vmatpush1.bf16.msra.mxu0 %v424
    %644 = vmatprep.subr.bf16.mxu0 0
    %645 = vmatpush1.bf16.msra.mxu0 %v427
    %646 = vmatprep.subr.bf16.mxu0 0
    %647 = vmatpush1.bf16.msra.mxu0 %v430
    %648 = vmatprep.subr.bf16.mxu0 0
    %649 = vmatpush1.bf16.msra.mxu0 %v433
    %650 = vmatprep.subr.bf16.mxu0 0
    %651 = vmatpush1.bf16.msra.mxu0 0
    %652 = vmatprep.subr.bf16.mxu0 0
    %653 = vmatpush1.bf16.msra.mxu0 0
    %654 = vmatprep.subr.bf16.mxu0 0
    %655 = vmatpush1.bf16.msra.mxu0 0
    %656 = vmatprep.subr.bf16.mxu0 0
    %657 = vmatpush1.bf16.msra.mxu0 0
    %658 = vmatprep.subr.bf16.mxu0 0
    %659 = vmatpush1.bf16.msra.mxu0 0
    %660 = vmatprep.subr.bf16.mxu0 0
    %661 = vmatpush1.bf16.msra.mxu0 0
    %662 = vmatprep.subr.bf16.mxu0 0
    %663 = vmatpush1.bf16.msra.mxu0 0
    %664 = vmatprep.subr.bf16.mxu0 0
    %665 = vmatpush1.bf16.msra.mxu0 0
    %666 = vmatprep.mubr.bf16.mxu0 0
    %667 = vmatmul.mubr.bf16.gmra.mrb[0].mxu0 %v592
    %v668 = vpop.f32.mrb[0].mxu0
    %v669 = vadd.f32 %v464, %v668
    %v670 = vpop.f32.mrb[0].mxu0
    %v671 = vpop.f32.mrb[0].mxu0
    %v672 = vpop.f32.mrb[0].mxu0
    %673 = vdwg.mxu0
    %v674 = vadd.f32 %v589, %v628
    %v675 = vxor.u32 %v674, 2147483648
    %v676 = vmul.f32 %v675, 1.442695
    %v677 = vpow.pop %v676
    %v678 = vadd.f32 %v677, 1.0
    %v679 = vrcp.pop %v678
    %v680 = vmul.f32 1.0, %v679
    %v681 = vadd.f32 %v590, %v630
    %v682 = vxor.u32 %v681, 2147483648
    %v683 = vmul.f32 %v682, 1.442695
    %v684 = vpow.pop %v683
    %v685 = vadd.f32 %v684, 1.0
    %v686 = vrcp.pop %v685
    %v687 = vmul.f32 1.0, %v686
    %v688 = vmul.f32 %v680, %v669
    %v689 = vadd.f32 %v591, %v688
    %v690 = vtanh.pop %v689
    %v691 = vsub.f32 1.0, %v687
    %v692 = vmul.f32 %v691, %v690
    %v693 = vmul.f32 %v687, %v475
    %v694 = vadd.f32 %v692, %v693
    %s695 = smul.u32 %s469, 2
    %s696 = smul.addr %s695, 8
    %s697 = scalar_lea.vmem %s9, %s696
    %698 = vst [vmem:[%s697] sm:$0xff] %v585
    %s699 = smul.u32 %s476, 2
    %s700 = smul.addr %s699, 8
    %s701 = scalar_lea.vmem %s9, %s700
    %702 = vst [vmem:[%s701 + $0x8] sm:$0xff] %v694
  $region42: #{cnn_rnn_crf_forward.4} parent=0 // loop_footer
    %s473 = sadd.s32 1, %s469
  $region43: #{cnn_rnn_crf_forward.4} parent=0 // loop_footer_branch
    %468 = sbr.rel target = $region39
  $region44: #{cnn_rnn_crf_forward.4} parent=0 // loop_exit
    _
  // Predicated region
  $region45: #{cnn_rnn_crf_forward.4} parent=0 // pred_check
    _
  $region46: #{cnn_rnn_crf_forward.4} parent=0 // pred_check_branch
    %704 = sbr.rel (0) target = $region48
  $region47: #{cnn_rnn_crf_forward.4} parent=0 // pred_region
    _
  $region48: #{cnn_rnn_crf_forward.4} parent=0 // pred_fallthru
    _
  // Predicated region
  $region49: #{cnn_rnn_crf_forward.4} parent=0 // pred_check
    _
  $region50: #{cnn_rnn_crf_forward.4} parent=0 // pred_check_branch
    %706 = sbr.rel (0) target = $region52
  $region51: #{cnn_rnn_crf_forward.4} parent=0 // pred_region
    _
  $region52: #{cnn_rnn_crf_forward.4} parent=0 // pred_fallthru
    _

// kernel: cnn_rnn_crf_forward.5
$region0: #{cnn_rnn_crf_forward.5}
  #allocation0 [shape = 'u32[]', space=smem, size = 0x4, offset = 0x4, fixed_abs, tag = 'smem constant byte address 0x4 - core index']
  #allocation1 [shape = 'u32[144,128]{1,0:T(1,128)}', space=vmem, size = 0x12000, scoped, tag = 'internal scratch']
  #allocation2 [shape = 'f32[2,8,384]{2,1,0:T(8,128)}', space=vmem, size = 0x6000, scoped, tag = 'scratch operand']
  #allocation3 [shape = 'f32[2,8,384]{2,1,0:T(8,128)}', space=vmem, size = 0x6000, scoped, tag = 'scratch operand']
  #allocation4 [shape = 'f32[2,8,256]{2,1,0:T(8,128)}', space=vmem, size = 0x4000, scoped, tag = 'scratch operand']
  %s0 = inlined_call_operand.vmem [shape: f32[2,8,256], index: 0, kind: input, shape index: {}]
  %s1 = inlined_call_operand.vmem [shape: f32[256,384], index: 1, kind: input, shape index: {}]
  %s2 = inlined_call_operand.vmem [shape: f32[128,384], index: 2, kind: input, shape index: {}]
  %s3 = inlined_call_operand.vmem [shape: f32[1,384], index: 3, kind: input, shape index: {}]
  %s4 = inlined_call_operand.vmem [shape: f32[1,384], index: 4, kind: input, shape index: {}]
  %s5 = inlined_call_operand.vmem [shape: f32[256,384], index: 5, kind: input, shape index: {}]
  %s6 = inlined_call_operand.vmem [shape: f32[128,384], index: 6, kind: input, shape index: {}]
  %s7 = inlined_call_operand.vmem [shape: f32[1,384], index: 7, kind: input, shape index: {}]
  %s8 = inlined_call_operand.vmem [shape: f32[1,384], index: 8, kind: input, shape index: {}]
  %s9 = inlined_call_operand.vmem [shape: f32[256,128], index: 9, kind: input, shape index: {}]
  %s10 = inlined_call_operand.vmem [shape: f32[1,128], index: 10, kind: input, shape index: {}]
  %s11 = inlined_call_operand.vmem [shape: f32[2,8,128], index: 11, kind: output, shape index: {}]
  %s12 = sld [smem:[#allocation0]]
  $region61: #{cnn_rnn_crf_forward.5} parent=0
    _
  %s14 = ssub.s32 1, %s12
  %s15 = scalar_select 0, %s14, %s12
  // Predicated region
  $region2: #{cnn_rnn_crf_forward.5} parent=0 // pred_check
    _
  $region3: #{cnn_rnn_crf_forward.5} parent=0 // pred_check_branch
    %17 = sbr.rel (0) target = $region5
  $region4: #{cnn_rnn_crf_forward.5} parent=0 // pred_region
    _
  $region5: #{cnn_rnn_crf_forward.5} parent=0 // pred_fallthru
    _
  // Predicated region
  $region6: #{cnn_rnn_crf_forward.5} parent=0 // pred_check
    _
  $region7: #{cnn_rnn_crf_forward.5} parent=0 // pred_check_branch
    %19 = sbr.rel (0) target = $region9
  $region8: #{cnn_rnn_crf_forward.5} parent=0 // pred_region
    _
  $region9: #{cnn_rnn_crf_forward.5} parent=0 // pred_fallthru
    _
  // Predicated region
  $region10: #{cnn_rnn_crf_forward.5} parent=0 // pred_check
    _
  $region11: #{cnn_rnn_crf_forward.5} parent=0 // pred_check_branch
    %21 = sbr.rel (0) target = $region13
  $region12: #{cnn_rnn_crf_forward.5} parent=0 // pred_region
    _
  $region13: #{cnn_rnn_crf_forward.5} parent=0 // pred_fallthru
    _
  // Predicated region
  $region14: #{cnn_rnn_crf_forward.5} parent=0 // pred_check
    _
  $region15: #{cnn_rnn_crf_forward.5} parent=0 // pred_check_branch
    %23 = sbr.rel (0) target = $region17
  $region16: #{cnn_rnn_crf_forward.5} parent=0 // pred_region
    _
  $region17: #{cnn_rnn_crf_forward.5} parent=0 // pred_fallthru
    _
  // Predicated region
  $region18: #{cnn_rnn_crf_forward.5} parent=0 // pred_check
    _
  $region19: #{cnn_rnn_crf_forward.5} parent=0 // pred_check_branch
    %25 = sbr.rel (0) target = $region21
  $region20: #{cnn_rnn_crf_forward.5} parent=0 // pred_region
    _
  $region21: #{cnn_rnn_crf_forward.5} parent=0 // pred_fallthru
    _
  // Predicated region
  $region22: #{cnn_rnn_crf_forward.5} parent=0 // pred_check
    _
  $region23: #{cnn_rnn_crf_forward.5} parent=0 // pred_check_branch
    %27 = sbr.rel (0) target = $region25
  $region24: #{cnn_rnn_crf_forward.5} parent=0 // pred_region
    _
  $region25: #{cnn_rnn_crf_forward.5} parent=0 // pred_fallthru
    _
  // Predicated region
  $region26: #{cnn_rnn_crf_forward.5} parent=0 // pred_check
    _
  $region27: #{cnn_rnn_crf_forward.5} parent=0 // pred_check_branch
    %29 = sbr.rel (0) target = $region29
  $region28: #{cnn_rnn_crf_forward.5} parent=0 // pred_region
    _
  $region29: #{cnn_rnn_crf_forward.5} parent=0 // pred_fallthru
    _
  // Predicated region
  $region30: #{cnn_rnn_crf_forward.5} parent=0 // pred_check
    _
  $region31: #{cnn_rnn_crf_forward.5} parent=0 // pred_check_branch
    %31 = sbr.rel (0) target = $region33
  $region32: #{cnn_rnn_crf_forward.5} parent=0 // pred_region
    _
  $region33: #{cnn_rnn_crf_forward.5} parent=0 // pred_fallthru
    _
  // Predicated region
  $region34: #{cnn_rnn_crf_forward.5} parent=0 // pred_check
    _
  $region35: #{cnn_rnn_crf_forward.5} parent=0 // pred_check_branch
    %33 = sbr.rel (0) target = $region37
  $region36: #{cnn_rnn_crf_forward.5} parent=0 // pred_region
    _
  $region37: #{cnn_rnn_crf_forward.5} parent=0 // pred_fallthru
    _
  // Predicated region
  $region38: #{cnn_rnn_crf_forward.5} parent=0 // pred_check
    _
  $region39: #{cnn_rnn_crf_forward.5} parent=0 // pred_check_branch
    %35 = sbr.rel (0) target = $region41
  $region40: #{cnn_rnn_crf_forward.5} parent=0 // pred_region
    _
  $region41: #{cnn_rnn_crf_forward.5} parent=0 // pred_fallthru
    _
  // Predicated region
  $region42: #{cnn_rnn_crf_forward.5} parent=0 // pred_check
    _
  $region43: #{cnn_rnn_crf_forward.5} parent=0 // pred_check_branch
    %37 = sbr.rel (0) target = $region45
  $region44: #{cnn_rnn_crf_forward.5} parent=0 // pred_region
    _
  $region45: #{cnn_rnn_crf_forward.5} parent=0 // pred_fallthru
    _
  %v39 = vld [vmem:[%s0] sm:$0xff]
  %v40 = vld [vmem:[%s0 + $0x8] sm:$0xff]
  %v41 = vld [vmem:[%s0 + $0x10] sm:$0xff]
  %v42 = vld [vmem:[%s0 + $0x18] sm:$0xff]
  %v43 = vpack.c.bf16 %v41, %v39
  %v44 = vpack.c.bf16 %v42, %v40
  %v45 = vld [vmem:[%s1] sm:$0xff]
  %v46 = vld [vmem:[%s1 + $0x8] sm:$0xff]
  %v47 = vld [vmem:[%s1 + $0x10] sm:$0xff]
  %v48 = vld [vmem:[%s1 + $0x18] sm:$0xff]
  %v49 = vld [vmem:[%s1 + $0x20] sm:$0xff]
  %v50 = vld [vmem:[%s1 + $0x28] sm:$0xff]
  %v51 = vld [vmem:[%s1 + $0x30] sm:$0xff]
  %v52 = vld [vmem:[%s1 + $0x38] sm:$0xff]
  %v53 = vld [vmem:[%s1 + $0x40] sm:$0xff]
  %v54 = vld [vmem:[%s1 + $0x48] sm:$0xff]
  %v55 = vld [vmem:[%s1 + $0x50] sm:$0xff]
  %v56 = vld [vmem:[%s1 + $0x58] sm:$0xff]
  %v57 = vld [vmem:[%s1 + $0x60] sm:$0xff]
  %v58 = vld [vmem:[%s1 + $0x68] sm:$0xff]
  %v59 = vld [vmem:[%s1 + $0x70] sm:$0xff]
  %v60 = vld [vmem:[%s1 + $0x78] sm:$0xff]
  %v61 = vld [vmem:[%s1 + $0x80] sm:$0xff]
  %v62 = vld [vmem:[%s1 + $0x88] sm:$0xff]
  %v63 = vld [vmem:[%s1 + $0x90] sm:$0xff]
  %v64 = vld [vmem:[%s1 + $0x98] sm:$0xff]
  %v65 = vld [vmem:[%s1 + $0xa0] sm:$0xff]
  %v66 = vld [vmem:[%s1 + $0xa8] sm:$0xff]
  %v67 = vld [vmem:[%s1 + $0xb0] sm:$0xff]
  %v68 = vld [vmem:[%s1 + $0xb8] sm:$0xff]
  %v69 = vld [vmem:[%s1 + $0xc0] sm:$0xff]
  %v70 = vld [vmem:[%s1 + $0xc8] sm:$0xff]
  %v71 = vld [vmem:[%s1 + $0xd0] sm:$0xff]
  %v72 = vld [vmem:[%s1 + $0xd8] sm:$0xff]
  %v73 = vld [vmem:[%s1 + $0xe0] sm:$0xff]
  %v74 = vld [vmem:[%s1 + $0xe8] sm:$0xff]
  %v75 = vld [vmem:[%s1 + $0xf0] sm:$0xff]
  %v76 = vld [vmem:[%s1 + $0xf8] sm:$0xff]
  %v77 = vld [vmem:[%s1 + $0x100] sm:$0xff]
  %v78 = vld [vmem:[%s1 + $0x108] sm:$0xff]
  %v79 = vld [vmem:[%s1 + $0x110] sm:$0xff]
  %v80 = vld [vmem:[%s1 + $0x118] sm:$0xff]
  %v81 = vld [vmem:[%s1 + $0x120] sm:$0xff]
  %v82 = vld [vmem:[%s1 + $0x128] sm:$0xff]
  %v83 = vld [vmem:[%s1 + $0x130] sm:$0xff]
  %v84 = vld [vmem:[%s1 + $0x138] sm:$0xff]
  %v85 = vld [vmem:[%s1 + $0x140] sm:$0xff]
  %v86 = vld [vmem:[%s1 + $0x148] sm:$0xff]
  %v87 = vld [vmem:[%s1 + $0x150] sm:$0xff]
  %v88 = vld [vmem:[%s1 + $0x158] sm:$0xff]
  %v89 = vld [vmem:[%s1 + $0x160] sm:$0xff]
  %v90 = vld [vmem:[%s1 + $0x168] sm:$0xff]
  %v91 = vld [vmem:[%s1 + $0x170] sm:$0xff]
  %v92 = vld [vmem:[%s1 + $0x178] sm:$0xff]
  %v93 = vld [vmem:[%s1 + $0x180] sm:$0xff]
  %v94 = vld [vmem:[%s1 + $0x188] sm:$0xff]
  %v95 = vld [vmem:[%s1 + $0x190] sm:$0xff]
  %v96 = vld [vmem:[%s1 + $0x198] sm:$0xff]
  %v97 = vld [vmem:[%s1 + $0x1a0] sm:$0xff]
  %v98 = vld [vmem:[%s1 + $0x1a8] sm:$0xff]
  %v99 = vld [vmem:[%s1 + $0x1b0] sm:$0xff]
  %v100 = vld [vmem:[%s1 + $0x1b8] sm:$0xff]
  %v101 = vld [vmem:[%s1 + $0x1c0] sm:$0xff]
  %v102 = vld [vmem:[%s1 + $0x1c8] sm:$0xff]
  %v103 = vld [vmem:[%s1 + $0x1d0] sm:$0xff]
  %v104 = vld [vmem:[%s1 + $0x1d8] sm:$0xff]
  %v105 = vld [vmem:[%s1 + $0x1e0] sm:$0xff]
  %v106 = vld [vmem:[%s1 + $0x1e8] sm:$0xff]
  %v107 = vld [vmem:[%s1 + $0x1f0] sm:$0xff]
  %v108 = vld [vmem:[%s1 + $0x1f8] sm:$0xff]
  %v109 = vld [vmem:[%s1 + $0x200] sm:$0xff]
  %v110 = vld [vmem:[%s1 + $0x208] sm:$0xff]
  %v111 = vld [vmem:[%s1 + $0x210] sm:$0xff]
  %v112 = vld [vmem:[%s1 + $0x218] sm:$0xff]
  %v113 = vld [vmem:[%s1 + $0x220] sm:$0xff]
  %v114 = vld [vmem:[%s1 + $0x228] sm:$0xff]
  %v115 = vld [vmem:[%s1 + $0x230] sm:$0xff]
  %v116 = vld [vmem:[%s1 + $0x238] sm:$0xff]
  %v117 = vld [vmem:[%s1 + $0x240] sm:$0xff]
  %v118 = vld [vmem:[%s1 + $0x248] sm:$0xff]
  %v119 = vld [vmem:[%s1 + $0x250] sm:$0xff]
  %v120 = vld [vmem:[%s1 + $0x258] sm:$0xff]
  %v121 = vld [vmem:[%s1 + $0x260] sm:$0xff]
  %v122 = vld [vmem:[%s1 + $0x268] sm:$0xff]
  %v123 = vld [vmem:[%s1 + $0x270] sm:$0xff]
  %v124 = vld [vmem:[%s1 + $0x278] sm:$0xff]
  %v125 = vld [vmem:[%s1 + $0x280] sm:$0xff]
  %v126 = vld [vmem:[%s1 + $0x288] sm:$0xff]
  %v127 = vld [vmem:[%s1 + $0x290] sm:$0xff]
  %v128 = vld [vmem:[%s1 + $0x298] sm:$0xff]
  %v129 = vld [vmem:[%s1 + $0x2a0] sm:$0xff]
  %v130 = vld [vmem:[%s1 + $0x2a8] sm:$0xff]
  %v131 = vld [vmem:[%s1 + $0x2b0] sm:$0xff]
  %v132 = vld [vmem:[%s1 + $0x2b8] sm:$0xff]
  %v133 = vld [vmem:[%s1 + $0x2c0] sm:$0xff]
  %v134 = vld [vmem:[%s1 + $0x2c8] sm:$0xff]
  %v135 = vld [vmem:[%s1 + $0x2d0] sm:$0xff]
  %v136 = vld [vmem:[%s1 + $0x2d8] sm:$0xff]
  %v137 = vld [vmem:[%s1 + $0x2e0] sm:$0xff]
  %v138 = vld [vmem:[%s1 + $0x2e8] sm:$0xff]
  %v139 = vld [vmem:[%s1 + $0x2f0] sm:$0xff]
  %v140 = vld [vmem:[%s1 + $0x2f8] sm:$0xff]
  %v141 = vpack.c.bf16 %v48, %v45
  %v142 = vpack.c.bf16 %v49, %v46
  %v143 = vpack.c.bf16 %v50, %v47
  %v144 = vpack.c.bf16 %v54, %v51
  %v145 = vpack.c.bf16 %v55, %v52
  %v146 = vpack.c.bf16 %v56, %v53
  %v147 = vpack.c.bf16 %v60, %v57
  %v148 = vpack.c.bf16 %v61, %v58
  %v149 = vpack.c.bf16 %v62, %v59
  %v150 = vpack.c.bf16 %v66, %v63
  %v151 = vpack.c.bf16 %v67, %v64
  %v152 = vpack.c.bf16 %v68, %v65
  %v153 = vpack.c.bf16 %v72, %v69
  %v154 = vpack.c.bf16 %v73, %v70
  %v155 = vpack.c.bf16 %v74, %v71
  %v156 = vpack.c.bf16 %v78, %v75
  %v157 = vpack.c.bf16 %v79, %v76
  %v158 = vpack.c.bf16 %v80, %v77
  %v159 = vpack.c.bf16 %v84, %v81
  %v160 = vpack.c.bf16 %v85, %v82
  %v161 = vpack.c.bf16 %v86, %v83
  %v162 = vpack.c.bf16 %v90, %v87
  %v163 = vpack.c.bf16 %v91, %v88
  %v164 = vpack.c.bf16 %v92, %v89
  %v165 = vpack.c.bf16 %v96, %v93
  %v166 = vpack.c.bf16 %v97, %v94
  %v167 = vpack.c.bf16 %v98, %v95
  %v168 = vpack.c.bf16 %v102, %v99
  %v169 = vpack.c.bf16 %v103, %v100
  %v170 = vpack.c.bf16 %v104, %v101
  %v171 = vpack.c.bf16 %v108, %v105
  %v172 = vpack.c.bf16 %v109, %v106
  %v173 = vpack.c.bf16 %v110, %v107
  %v174 = vpack.c.bf16 %v114, %v111
  %v175 = vpack.c.bf16 %v115, %v112
  %v176 = vpack.c.bf16 %v116, %v113
  %v177 = vpack.c.bf16 %v120, %v117
  %v178 = vpack.c.bf16 %v121, %v118
  %v179 = vpack.c.bf16 %v122, %v119
  %v180 = vpack.c.bf16 %v126, %v123
  %v181 = vpack.c.bf16 %v127, %v124
  %v182 = vpack.c.bf16 %v128, %v125
  %v183 = vpack.c.bf16 %v132, %v129
  %v184 = vpack.c.bf16 %v133, %v130
  %v185 = vpack.c.bf16 %v134, %v131
  %v186 = vpack.c.bf16 %v138, %v135
  %v187 = vpack.c.bf16 %v139, %v136
  %v188 = vpack.c.bf16 %v140, %v137
  %v189 = vld [vmem:[%s3] sm:$0x7]
  %v191 = vlaneseq
  %v192 = vshrl.u32 %v191, 7
  %v193 = vsub.s32 0, %v192
  %v194 = vrot.slane %v189, %v193
  %v195 = vlaneseq
  %v196 = vshrl.u32 %v195, 7
  %v197 = vsub.s32 1, %v196
  %v198 = vrot.slane %v189, %v197
  %v199 = vlaneseq
  %v200 = vshrl.u32 %v199, 7
  %v201 = vsub.s32 2, %v200
  %v202 = vrot.slane %v189, %v201
  %206 = vmatprep.subr.bf16.mxu0 %v142
  %207 = vmatpush1.bf16.msra.mxu0 %v141
  %208 = vmatprep.subr.bf16.mxu0 %v145
  %209 = vmatpush1.bf16.msra.mxu0 %v144
  %210 = vmatprep.subr.bf16.mxu0 %v148
  %211 = vmatpush1.bf16.msra.mxu0 %v147
  %212 = vmatprep.subr.bf16.mxu0 %v151
  %213 = vmatpush1.bf16.msra.mxu0 %v150
  %214 = vmatprep.subr.bf16.mxu0 %v154
  %215 = vmatpush1.bf16.msra.mxu0 %v153
  %216 = vmatprep.subr.bf16.mxu0 %v157
  %217 = vmatpush1.bf16.msra.mxu0 %v156
  %218 = vmatprep.subr.bf16.mxu0 %v160
  %219 = vmatpush1.bf16.msra.mxu0 %v159
  %220 = vmatprep.subr.bf16.mxu0 %v163
  %221 = vmatpush1.bf16.msra.mxu0 %v162
  %222 = vmatprep.subr.bf16.mxu0 %v166
  %223 = vmatpush1.bf16.msra.mxu0 %v165
  %224 = vmatprep.subr.bf16.mxu0 %v169
  %225 = vmatpush1.bf16.msra.mxu0 %v168
  %226 = vmatprep.subr.bf16.mxu0 %v172
  %227 = vmatpush1.bf16.msra.mxu0 %v171
  %228 = vmatprep.subr.bf16.mxu0 %v175
  %229 = vmatpush1.bf16.msra.mxu0 %v174
  %230 = vmatprep.subr.bf16.mxu0 %v178
  %231 = vmatpush1.bf16.msra.mxu0 %v177
  %232 = vmatprep.subr.bf16.mxu0 %v181
  %233 = vmatpush1.bf16.msra.mxu0 %v180
  %234 = vmatprep.subr.bf16.mxu0 %v184
  %235 = vmatpush1.bf16.msra.mxu0 %v183
  %236 = vmatprep.subr.bf16.mxu0 %v187
  %237 = vmatpush1.bf16.msra.mxu0 %v186
  %238 = vmatprep.mubr.bf16.mxu0 %v44
  %239 = vmatmul.mubr.bf16.gmra.mrb[0].mxu0 %v43
  %v240 = vpop.f32.mrb[0].mxu0
  %v241 = vadd.f32 %v194, %v240
  %v242 = vpop.f32.mrb[0].mxu0
  %v243 = vadd.f32 %v198, %v242
  %v244 = vpop.f32.mrb[0].mxu0
  %v245 = vadd.f32 %v194, %v244
  %v246 = vpop.f32.mrb[0].mxu0
  %v247 = vadd.f32 %v198, %v246
  %248 = vdwg.mxu0
  %249 = vmatprep.subr.bf16.mxu0 0
  %250 = vmatpush1.bf16.msra.mxu0 %v143
  %251 = vmatprep.subr.bf16.mxu0 0
  %252 = vmatpush1.bf16.msra.mxu0 %v146
  %253 = vmatprep.subr.bf16.mxu0 0
  %254 = vmatpush1.bf16.msra.mxu0 %v149
  %255 = vmatprep.subr.bf16.mxu0 0
  %256 = vmatpush1.bf16.msra.mxu0 %v152
  %257 = vmatprep.subr.bf16.mxu0 0
  %258 = vmatpush1.bf16.msra.mxu0 %v155
  %259 = vmatprep.subr.bf16.mxu0 0
  %260 = vmatpush1.bf16.msra.mxu0 %v158
  %261 = vmatprep.subr.bf16.mxu0 0
  %262 = vmatpush1.bf16.msra.mxu0 %v161
  %263 = vmatprep.subr.bf16.mxu0 0
  %264 = vmatpush1.bf16.msra.mxu0 %v164
  %265 = vmatprep.subr.bf16.mxu0 0
  %266 = vmatpush1.bf16.msra.mxu0 %v167
  %267 = vmatprep.subr.bf16.mxu0 0
  %268 = vmatpush1.bf16.msra.mxu0 %v170
  %269 = vmatprep.subr.bf16.mxu0 0
  %270 = vmatpush1.bf16.msra.mxu0 %v173
  %271 = vmatprep.subr.bf16.mxu0 0
  %272 = vmatpush1.bf16.msra.mxu0 %v176
  %273 = vmatprep.subr.bf16.mxu0 0
  %274 = vmatpush1.bf16.msra.mxu0 %v179
  %275 = vmatprep.subr.bf16.mxu0 0
  %276 = vmatpush1.bf16.msra.mxu0 %v182
  %277 = vmatprep.subr.bf16.mxu0 0
  %278 = vmatpush1.bf16.msra.mxu0 %v185
  %279 = vmatprep.subr.bf16.mxu0 0
  %280 = vmatpush1.bf16.msra.mxu0 %v188
  %281 = vmatprep.mubr.bf16.mxu0 %v44
  %282 = vmatmul.mubr.bf16.gmra.mrb[0].mxu0 %v43
  %v283 = vpop.f32.mrb[0].mxu0
  %v284 = vadd.f32 %v202, %v283
  %v285 = vpop.f32.mrb[0].mxu0
  %v286 = vpop.f32.mrb[0].mxu0
  %v287 = vadd.f32 %v202, %v286
  %v288 = vpop.f32.mrb[0].mxu0
  %289 = vdwg.mxu0
  %290 = vst [vmem:[#allocation2] sm:$0xff] %v241
  %291 = vst [vmem:[#allocation2 + $0x8] sm:$0xff] %v243
  %292 = vst [vmem:[#allocation2 + $0x10] sm:$0xff] %v284
  %293 = vst [vmem:[#allocation2 + $0x18] sm:$0xff] %v245
  %294 = vst [vmem:[#allocation2 + $0x20] sm:$0xff] %v247
  %295 = vst [vmem:[#allocation2 + $0x28] sm:$0xff] %v287
  %v296 = vld [vmem:[%s5] sm:$0xff]
  %v297 = vld [vmem:[%s5 + $0x8] sm:$0xff]
  %v298 = vld [vmem:[%s5 + $0x10] sm:$0xff]
  %v299 = vld [vmem:[%s5 + $0x18] sm:$0xff]
  %v300 = vld [vmem:[%s5 + $0x20] sm:$0xff]
  %v301 = vld [vmem:[%s5 + $0x28] sm:$0xff]
  %v302 = vld [vmem:[%s5 + $0x30] sm:$0xff]
  %v303 = vld [vmem:[%s5 + $0x38] sm:$0xff]
  %v304 = vld [vmem:[%s5 + $0x40] sm:$0xff]
  %v305 = vld [vmem:[%s5 + $0x48] sm:$0xff]
  %v306 = vld [vmem:[%s5 + $0x50] sm:$0xff]
  %v307 = vld [vmem:[%s5 + $0x58] sm:$0xff]
  %v308 = vld [vmem:[%s5 + $0x60] sm:$0xff]
  %v309 = vld [vmem:[%s5 + $0x68] sm:$0xff]
  %v310 = vld [vmem:[%s5 + $0x70] sm:$0xff]
  %v311 = vld [vmem:[%s5 + $0x78] sm:$0xff]
  %v312 = vld [vmem:[%s5 + $0x80] sm:$0xff]
  %v313 = vld [vmem:[%s5 + $0x88] sm:$0xff]
  %v314 = vld [vmem:[%s5 + $0x90] sm:$0xff]
  %v315 = vld [vmem:[%s5 + $0x98] sm:$0xff]
  %v316 = vld [vmem:[%s5 + $0xa0] sm:$0xff]
  %v317 = vld [vmem:[%s5 + $0xa8] sm:$0xff]
  %v318 = vld [vmem:[%s5 + $0xb0] sm:$0xff]
  %v319 = vld [vmem:[%s5 + $0xb8] sm:$0xff]
  %v320 = vld [vmem:[%s5 + $0xc0] sm:$0xff]
  %v321 = vld [vmem:[%s5 + $0xc8] sm:$0xff]
  %v322 = vld [vmem:[%s5 + $0xd0] sm:$0xff]
  %v323 = vld [vmem:[%s5 + $0xd8] sm:$0xff]
  %v324 = vld [vmem:[%s5 + $0xe0] sm:$0xff]
  %v325 = vld [vmem:[%s5 + $0xe8] sm:$0xff]
  %v326 = vld [vmem:[%s5 + $0xf0] sm:$0xff]
  %v327 = vld [vmem:[%s5 + $0xf8] sm:$0xff]
  %v328 = vld [vmem:[%s5 + $0x100] sm:$0xff]
  %v329 = vld [vmem:[%s5 + $0x108] sm:$0xff]
  %v330 = vld [vmem:[%s5 + $0x110] sm:$0xff]
  %v331 = vld [vmem:[%s5 + $0x118] sm:$0xff]
  %v332 = vld [vmem:[%s5 + $0x120] sm:$0xff]
  %v333 = vld [vmem:[%s5 + $0x128] sm:$0xff]
  %v334 = vld [vmem:[%s5 + $0x130] sm:$0xff]
  %v335 = vld [vmem:[%s5 + $0x138] sm:$0xff]
  %v336 = vld [vmem:[%s5 + $0x140] sm:$0xff]
  %v337 = vld [vmem:[%s5 + $0x148] sm:$0xff]
  %v338 = vld [vmem:[%s5 + $0x150] sm:$0xff]
  %v339 = vld [vmem:[%s5 + $0x158] sm:$0xff]
  %v340 = vld [vmem:[%s5 + $0x160] sm:$0xff]
  %v341 = vld [vmem:[%s5 + $0x168] sm:$0xff]
  %v342 = vld [vmem:[%s5 + $0x170] sm:$0xff]
  %v343 = vld [vmem:[%s5 + $0x178] sm:$0xff]
  %v344 = vld [vmem:[%s5 + $0x180] sm:$0xff]
  %v345 = vld [vmem:[%s5 + $0x188] sm:$0xff]
  %v346 = vld [vmem:[%s5 + $0x190] sm:$0xff]
  %v347 = vld [vmem:[%s5 + $0x198] sm:$0xff]
  %v348 = vld [vmem:[%s5 + $0x1a0] sm:$0xff]
  %v349 = vld [vmem:[%s5 + $0x1a8] sm:$0xff]
  %v350 = vld [vmem:[%s5 + $0x1b0] sm:$0xff]
  %v351 = vld [vmem:[%s5 + $0x1b8] sm:$0xff]
  %v352 = vld [vmem:[%s5 + $0x1c0] sm:$0xff]
  %v353 = vld [vmem:[%s5 + $0x1c8] sm:$0xff]
  %v354 = vld [vmem:[%s5 + $0x1d0] sm:$0xff]
  %v355 = vld [vmem:[%s5 + $0x1d8] sm:$0xff]
  %v356 = vld [vmem:[%s5 + $0x1e0] sm:$0xff]
  %v357 = vld [vmem:[%s5 + $0x1e8] sm:$0xff]
  %v358 = vld [vmem:[%s5 + $0x1f0] sm:$0xff]
  %v359 = vld [vmem:[%s5 + $0x1f8] sm:$0xff]
  %v360 = vld [vmem:[%s5 + $0x200] sm:$0xff]
  %v361 = vld [vmem:[%s5 + $0x208] sm:$0xff]
  %v362 = vld [vmem:[%s5 + $0x210] sm:$0xff]
  %v363 = vld [vmem:[%s5 + $0x218] sm:$0xff]
  %v364 = vld [vmem:[%s5 + $0x220] sm:$0xff]
  %v365 = vld [vmem:[%s5 + $0x228] sm:$0xff]
  %v366 = vld [vmem:[%s5 + $0x230] sm:$0xff]
  %v367 = vld [vmem:[%s5 + $0x238] sm:$0xff]
  %v368 = vld [vmem:[%s5 + $0x240] sm:$0xff]
  %v369 = vld [vmem:[%s5 + $0x248] sm:$0xff]
  %v370 = vld [vmem:[%s5 + $0x250] sm:$0xff]
  %v371 = vld [vmem:[%s5 + $0x258] sm:$0xff]
  %v372 = vld [vmem:[%s5 + $0x260] sm:$0xff]
  %v373 = vld [vmem:[%s5 + $0x268] sm:$0xff]
  %v374 = vld [vmem:[%s5 + $0x270] sm:$0xff]
  %v375 = vld [vmem:[%s5 + $0x278] sm:$0xff]
  %v376 = vld [vmem:[%s5 + $0x280] sm:$0xff]
  %v377 = vld [vmem:[%s5 + $0x288] sm:$0xff]
  %v378 = vld [vmem:[%s5 + $0x290] sm:$0xff]
  %v379 = vld [vmem:[%s5 + $0x298] sm:$0xff]
  %v380 = vld [vmem:[%s5 + $0x2a0] sm:$0xff]
  %v381 = vld [vmem:[%s5 + $0x2a8] sm:$0xff]
  %v382 = vld [vmem:[%s5 + $0x2b0] sm:$0xff]
  %v383 = vld [vmem:[%s5 + $0x2b8] sm:$0xff]
  %v384 = vld [vmem:[%s5 + $0x2c0] sm:$0xff]
  %v385 = vld [vmem:[%s5 + $0x2c8] sm:$0xff]
  %v386 = vld [vmem:[%s5 + $0x2d0] sm:$0xff]
  %v387 = vld [vmem:[%s5 + $0x2d8] sm:$0xff]
  %v388 = vld [vmem:[%s5 + $0x2e0] sm:$0xff]
  %v389 = vld [vmem:[%s5 + $0x2e8] sm:$0xff]
  %v390 = vld [vmem:[%s5 + $0x2f0] sm:$0xff]
  %v391 = vld [vmem:[%s5 + $0x2f8] sm:$0xff]
  %v392 = vpack.c.bf16 %v299, %v296
  %v393 = vpack.c.bf16 %v300, %v297
  %v394 = vpack.c.bf16 %v301, %v298
  %v395 = vpack.c.bf16 %v305, %v302
  %v396 = vpack.c.bf16 %v306, %v303
  %v397 = vpack.c.bf16 %v307, %v304
  %v398 = vpack.c.bf16 %v311, %v308
  %v399 = vpack.c.bf16 %v312, %v309
  %v400 = vpack.c.bf16 %v313, %v310
  %v401 = vpack.c.bf16 %v317, %v314
  %v402 = vpack.c.bf16 %v318, %v315
  %v403 = vpack.c.bf16 %v319, %v316
  %v404 = vpack.c.bf16 %v323, %v320
  %v405 = vpack.c.bf16 %v324, %v321
  %v406 = vpack.c.bf16 %v325, %v322
  %v407 = vpack.c.bf16 %v329, %v326
  %v408 = vpack.c.bf16 %v330, %v327
  %v409 = vpack.c.bf16 %v331, %v328
  %v410 = vpack.c.bf16 %v335, %v332
  %v411 = vpack.c.bf16 %v336, %v333
  %v412 = vpack.c.bf16 %v337, %v334
  %v413 = vpack.c.bf16 %v341, %v338
  %v414 = vpack.c.bf16 %v342, %v339
  %v415 = vpack.c.bf16 %v343, %v340
  %v416 = vpack.c.bf16 %v347, %v344
  %v417 = vpack.c.bf16 %v348, %v345
  %v418 = vpack.c.bf16 %v349, %v346
  %v419 = vpack.c.bf16 %v353, %v350
  %v420 = vpack.c.bf16 %v354, %v351
  %v421 = vpack.c.bf16 %v355, %v352
  %v422 = vpack.c.bf16 %v359, %v356
  %v423 = vpack.c.bf16 %v360, %v357
  %v424 = vpack.c.bf16 %v361, %v358
  %v425 = vpack.c.bf16 %v365, %v362
  %v426 = vpack.c.bf16 %v366, %v363
  %v427 = vpack.c.bf16 %v367, %v364
  %v428 = vpack.c.bf16 %v371, %v368
  %v429 = vpack.c.bf16 %v372, %v369
  %v430 = vpack.c.bf16 %v373, %v370
  %v431 = vpack.c.bf16 %v377, %v374
  %v432 = vpack.c.bf16 %v378, %v375
  %v433 = vpack.c.bf16 %v379, %v376
  %v434 = vpack.c.bf16 %v383, %v380
  %v435 = vpack.c.bf16 %v384, %v381
  %v436 = vpack.c.bf16 %v385, %v382
  %v437 = vpack.c.bf16 %v389, %v386
  %v438 = vpack.c.bf16 %v390, %v387
  %v439 = vpack.c.bf16 %v391, %v388
  %v440 = vld [vmem:[%s7] sm:$0x7]
  %v442 = vlaneseq
  %v443 = vshrl.u32 %v442, 7
  %v444 = vsub.s32 0, %v443
  %v445 = vrot.slane %v440, %v444
  %v446 = vlaneseq
  %v447 = vshrl.u32 %v446, 7
  %v448 = vsub.s32 1, %v447
  %v449 = vrot.slane %v440, %v448
  %v450 = vlaneseq
  %v451 = vshrl.u32 %v450, 7
  %v452 = vsub.s32 2, %v451
  %v453 = vrot.slane %v440, %v452
  %457 = vmatprep.subr.bf16.mxu0 %v393
  %458 = vmatpush1.bf16.msra.mxu0 %v392
  %459 = vmatprep.subr.bf16.mxu0 %v396
  %460 = vmatpush1.bf16.msra.mxu0 %v395
  %461 = vmatprep.subr.bf16.mxu0 %v399
  %462 = vmatpush1.bf16.msra.mxu0 %v398
  %463 = vmatprep.subr.bf16.mxu0 %v402
  %464 = vmatpush1.bf16.msra.mxu0 %v401
  %465 = vmatprep.subr.bf16.mxu0 %v405
  %466 = vmatpush1.bf16.msra.mxu0 %v404
  %467 = vmatprep.subr.bf16.mxu0 %v408
  %468 = vmatpush1.bf16.msra.mxu0 %v407
  %469 = vmatprep.subr.bf16.mxu0 %v411
  %470 = vmatpush1.bf16.msra.mxu0 %v410
  %471 = vmatprep.subr.bf16.mxu0 %v414
  %472 = vmatpush1.bf16.msra.mxu0 %v413
  %473 = vmatprep.subr.bf16.mxu0 %v417
  %474 = vmatpush1.bf16.msra.mxu0 %v416
  %475 = vmatprep.subr.bf16.mxu0 %v420
  %476 = vmatpush1.bf16.msra.mxu0 %v419
  %477 = vmatprep.subr.bf16.mxu0 %v423
  %478 = vmatpush1.bf16.msra.mxu0 %v422
  %479 = vmatprep.subr.bf16.mxu0 %v426
  %480 = vmatpush1.bf16.msra.mxu0 %v425
  %481 = vmatprep.subr.bf16.mxu0 %v429
  %482 = vmatpush1.bf16.msra.mxu0 %v428
  %483 = vmatprep.subr.bf16.mxu0 %v432
  %484 = vmatpush1.bf16.msra.mxu0 %v431
  %485 = vmatprep.subr.bf16.mxu0 %v435
  %486 = vmatpush1.bf16.msra.mxu0 %v434
  %487 = vmatprep.subr.bf16.mxu0 %v438
  %488 = vmatpush1.bf16.msra.mxu0 %v437
  %489 = vmatprep.mubr.bf16.mxu0 %v44
  %490 = vmatmul.mubr.bf16.gmra.mrb[0].mxu0 %v43
  %v491 = vpop.f32.mrb[0].mxu0
  %v492 = vadd.f32 %v445, %v491
  %v493 = vpop.f32.mrb[0].mxu0
  %v494 = vadd.f32 %v449, %v493
  %v495 = vpop.f32.mrb[0].mxu0
  %v496 = vadd.f32 %v445, %v495
  %v497 = vpop.f32.mrb[0].mxu0
  %v498 = vadd.f32 %v449, %v497
  %499 = vdwg.mxu0
  %500 = vmatprep.subr.bf16.mxu0 0
  %501 = vmatpush1.bf16.msra.mxu0 %v394
  %502 = vmatprep.subr.bf16.mxu0 0
  %503 = vmatpush1.bf16.msra.mxu0 %v397
  %504 = vmatprep.subr.bf16.mxu0 0
  %505 = vmatpush1.bf16.msra.mxu0 %v400
  %506 = vmatprep.subr.bf16.mxu0 0
  %507 = vmatpush1.bf16.msra.mxu0 %v403
  %508 = vmatprep.subr.bf16.mxu0 0
  %509 = vmatpush1.bf16.msra.mxu0 %v406
  %510 = vmatprep.subr.bf16.mxu0 0
  %511 = vmatpush1.bf16.msra.mxu0 %v409
  %512 = vmatprep.subr.bf16.mxu0 0
  %513 = vmatpush1.bf16.msra.mxu0 %v412
  %514 = vmatprep.subr.bf16.mxu0 0
  %515 = vmatpush1.bf16.msra.mxu0 %v415
  %516 = vmatprep.subr.bf16.mxu0 0
  %517 = vmatpush1.bf16.msra.mxu0 %v418
  %518 = vmatprep.subr.bf16.mxu0 0
  %519 = vmatpush1.bf16.msra.mxu0 %v421
  %520 = vmatprep.subr.bf16.mxu0 0
  %521 = vmatpush1.bf16.msra.mxu0 %v424
  %522 = vmatprep.subr.bf16.mxu0 0
  %523 = vmatpush1.bf16.msra.mxu0 %v427
  %524 = vmatprep.subr.bf16.mxu0 0
  %525 = vmatpush1.bf16.msra.mxu0 %v430
  %526 = vmatprep.subr.bf16.mxu0 0
  %527 = vmatpush1.bf16.msra.mxu0 %v433
  %528 = vmatprep.subr.bf16.mxu0 0
  %529 = vmatpush1.bf16.msra.mxu0 %v436
  %530 = vmatprep.subr.bf16.mxu0 0
  %531 = vmatpush1.bf16.msra.mxu0 %v439
  %532 = vmatprep.mubr.bf16.mxu0 %v44
  %533 = vmatmul.mubr.bf16.gmra.mrb[0].mxu0 %v43
  %v534 = vpop.f32.mrb[0].mxu0
  %v535 = vadd.f32 %v453, %v534
  %v536 = vpop.f32.mrb[0].mxu0
  %v537 = vpop.f32.mrb[0].mxu0
  %v538 = vadd.f32 %v453, %v537
  %v539 = vpop.f32.mrb[0].mxu0
  %540 = vdwg.mxu0
  %541 = vst [vmem:[#allocation3] sm:$0xff] %v492
  %542 = vst [vmem:[#allocation3 + $0x8] sm:$0xff] %v494
  %543 = vst [vmem:[#allocation3 + $0x10] sm:$0xff] %v535
  %544 = vst [vmem:[#allocation3 + $0x18] sm:$0xff] %v496
  %545 = vst [vmem:[#allocation3 + $0x20] sm:$0xff] %v498
  %546 = vst [vmem:[#allocation3 + $0x28] sm:$0xff] %v538
  %v547 = vld [vmem:[%s2] sm:$0xff]
  %v548 = vld [vmem:[%s2 + $0x8] sm:$0xff]
  %v549 = vld [vmem:[%s2 + $0x10] sm:$0xff]
  %v550 = vld [vmem:[%s2 + $0x18] sm:$0xff]
  %v551 = vld [vmem:[%s2 + $0x20] sm:$0xff]
  %v552 = vld [vmem:[%s2 + $0x28] sm:$0xff]
  %v553 = vld [vmem:[%s2 + $0x30] sm:$0xff]
  %v554 = vld [vmem:[%s2 + $0x38] sm:$0xff]
  %v555 = vld [vmem:[%s2 + $0x40] sm:$0xff]
  %v556 = vld [vmem:[%s2 + $0x48] sm:$0xff]
  %v557 = vld [vmem:[%s2 + $0x50] sm:$0xff]
  %v558 = vld [vmem:[%s2 + $0x58] sm:$0xff]
  %v559 = vld [vmem:[%s2 + $0x60] sm:$0xff]
  %v560 = vld [vmem:[%s2 + $0x68] sm:$0xff]
  %v561 = vld [vmem:[%s2 + $0x70] sm:$0xff]
  %v562 = vld [vmem:[%s2 + $0x78] sm:$0xff]
  %v563 = vld [vmem:[%s2 + $0x80] sm:$0xff]
  %v564 = vld [vmem:[%s2 + $0x88] sm:$0xff]
  %v565 = vld [vmem:[%s2 + $0x90] sm:$0xff]
  %v566 = vld [vmem:[%s2 + $0x98] sm:$0xff]
  %v567 = vld [vmem:[%s2 + $0xa0] sm:$0xff]
  %v568 = vld [vmem:[%s2 + $0xa8] sm:$0xff]
  %v569 = vld [vmem:[%s2 + $0xb0] sm:$0xff]
  %v570 = vld [vmem:[%s2 + $0xb8] sm:$0xff]
  %v571 = vld [vmem:[%s2 + $0xc0] sm:$0xff]
  %v572 = vld [vmem:[%s2 + $0xc8] sm:$0xff]
  %v573 = vld [vmem:[%s2 + $0xd0] sm:$0xff]
  %v574 = vld [vmem:[%s2 + $0xd8] sm:$0xff]
  %v575 = vld [vmem:[%s2 + $0xe0] sm:$0xff]
  %v576 = vld [vmem:[%s2 + $0xe8] sm:$0xff]
  %v577 = vld [vmem:[%s2 + $0xf0] sm:$0xff]
  %v578 = vld [vmem:[%s2 + $0xf8] sm:$0xff]
  %v579 = vld [vmem:[%s2 + $0x100] sm:$0xff]
  %v580 = vld [vmem:[%s2 + $0x108] sm:$0xff]
  %v581 = vld [vmem:[%s2 + $0x110] sm:$0xff]
  %v582 = vld [vmem:[%s2 + $0x118] sm:$0xff]
  %v583 = vld [vmem:[%s2 + $0x120] sm:$0xff]
  %v584 = vld [vmem:[%s2 + $0x128] sm:$0xff]
  %v585 = vld [vmem:[%s2 + $0x130] sm:$0xff]
  %v586 = vld [vmem:[%s2 + $0x138] sm:$0xff]
  %v587 = vld [vmem:[%s2 + $0x140] sm:$0xff]
  %v588 = vld [vmem:[%s2 + $0x148] sm:$0xff]
  %v589 = vld [vmem:[%s2 + $0x150] sm:$0xff]
  %v590 = vld [vmem:[%s2 + $0x158] sm:$0xff]
  %v591 = vld [vmem:[%s2 + $0x160] sm:$0xff]
  %v592 = vld [vmem:[%s2 + $0x168] sm:$0xff]
  %v593 = vld [vmem:[%s2 + $0x170] sm:$0xff]
  %v594 = vld [vmem:[%s2 + $0x178] sm:$0xff]
  %v595 = vpack.c.bf16 %v550, %v547
  %v596 = vpack.c.bf16 %v551, %v548
  %v597 = vpack.c.bf16 %v552, %v549
  %v598 = vpack.c.bf16 %v556, %v553
  %v599 = vpack.c.bf16 %v557, %v554
  %v600 = vpack.c.bf16 %v558, %v555
  %v601 = vpack.c.bf16 %v562, %v559
  %v602 = vpack.c.bf16 %v563, %v560
  %v603 = vpack.c.bf16 %v564, %v561
  %v604 = vpack.c.bf16 %v568, %v565
  %v605 = vpack.c.bf16 %v569, %v566
  %v606 = vpack.c.bf16 %v570, %v567
  %v607 = vpack.c.bf16 %v574, %v571
  %v608 = vpack.c.bf16 %v575, %v572
  %v609 = vpack.c.bf16 %v576, %v573
  %v610 = vpack.c.bf16 %v580, %v577
  %v611 = vpack.c.bf16 %v581, %v578
  %v612 = vpack.c.bf16 %v582, %v579
  %v613 = vpack.c.bf16 %v586, %v583
  %v614 = vpack.c.bf16 %v587, %v584
  %v615 = vpack.c.bf16 %v588, %v585
  %v616 = vpack.c.bf16 %v592, %v589
  %v617 = vpack.c.bf16 %v593, %v590
  %v618 = vpack.c.bf16 %v594, %v591
  %v619 = vld [vmem:[%s6] sm:$0xff]
  %v620 = vld [vmem:[%s6 + $0x8] sm:$0xff]
  %v621 = vld [vmem:[%s6 + $0x10] sm:$0xff]
  %v622 = vld [vmem:[%s6 + $0x18] sm:$0xff]
  %v623 = vld [vmem:[%s6 + $0x20] sm:$0xff]
  %v624 = vld [vmem:[%s6 + $0x28] sm:$0xff]
  %v625 = vld [vmem:[%s6 + $0x30] sm:$0xff]
  %v626 = vld [vmem:[%s6 + $0x38] sm:$0xff]
  %v627 = vld [vmem:[%s6 + $0x40] sm:$0xff]
  %v628 = vld [vmem:[%s6 + $0x48] sm:$0xff]
  %v629 = vld [vmem:[%s6 + $0x50] sm:$0xff]
  %v630 = vld [vmem:[%s6 + $0x58] sm:$0xff]
  %v631 = vld [vmem:[%s6 + $0x60] sm:$0xff]
  %v632 = vld [vmem:[%s6 + $0x68] sm:$0xff]
  %v633 = vld [vmem:[%s6 + $0x70] sm:$0xff]
  %v634 = vld [vmem:[%s6 + $0x78] sm:$0xff]
  %v635 = vld [vmem:[%s6 + $0x80] sm:$0xff]
  %v636 = vld [vmem:[%s6 + $0x88] sm:$0xff]
  %v637 = vld [vmem:[%s6 + $0x90] sm:$0xff]
  %v638 = vld [vmem:[%s6 + $0x98] sm:$0xff]
  %v639 = vld [vmem:[%s6 + $0xa0] sm:$0xff]
  %v640 = vld [vmem:[%s6 + $0xa8] sm:$0xff]
  %v641 = vld [vmem:[%s6 + $0xb0] sm:$0xff]
  %v642 = vld [vmem:[%s6 + $0xb8] sm:$0xff]
  %v643 = vld [vmem:[%s6 + $0xc0] sm:$0xff]
  %v644 = vld [vmem:[%s6 + $0xc8] sm:$0xff]
  %v645 = vld [vmem:[%s6 + $0xd0] sm:$0xff]
  %v646 = vld [vmem:[%s6 + $0xd8] sm:$0xff]
  %v647 = vld [vmem:[%s6 + $0xe0] sm:$0xff]
  %v648 = vld [vmem:[%s6 + $0xe8] sm:$0xff]
  %v649 = vld [vmem:[%s6 + $0xf0] sm:$0xff]
  %v650 = vld [vmem:[%s6 + $0xf8] sm:$0xff]
  %v651 = vld [vmem:[%s6 + $0x100] sm:$0xff]
  %v652 = vld [vmem:[%s6 + $0x108] sm:$0xff]
  %v653 = vld [vmem:[%s6 + $0x110] sm:$0xff]
  %v654 = vld [vmem:[%s6 + $0x118] sm:$0xff]
  %v655 = vld [vmem:[%s6 + $0x120] sm:$0xff]
  %v656 = vld [vmem:[%s6 + $0x128] sm:$0xff]
  %v657 = vld [vmem:[%s6 + $0x130] sm:$0xff]
  %v658 = vld [vmem:[%s6 + $0x138] sm:$0xff]
  %v659 = vld [vmem:[%s6 + $0x140] sm:$0xff]
  %v660 = vld [vmem:[%s6 + $0x148] sm:$0xff]
  %v661 = vld [vmem:[%s6 + $0x150] sm:$0xff]
  %v662 = vld [vmem:[%s6 + $0x158] sm:$0xff]
  %v663 = vld [vmem:[%s6 + $0x160] sm:$0xff]
  %v664 = vld [vmem:[%s6 + $0x168] sm:$0xff]
  %v665 = vld [vmem:[%s6 + $0x170] sm:$0xff]
  %v666 = vld [vmem:[%s6 + $0x178] sm:$0xff]
  %v667 = vpack.c.bf16 %v622, %v619
  %v668 = vpack.c.bf16 %v623, %v620
  %v669 = vpack.c.bf16 %v624, %v621
  %v670 = vpack.c.bf16 %v628, %v625
  %v671 = vpack.c.bf16 %v629, %v626
  %v672 = vpack.c.bf16 %v630, %v627
  %v673 = vpack.c.bf16 %v634, %v631
  %v674 = vpack.c.bf16 %v635, %v632
  %v675 = vpack.c.bf16 %v636, %v633
  %v676 = vpack.c.bf16 %v640, %v637
  %v677 = vpack.c.bf16 %v641, %v638
  %v678 = vpack.c.bf16 %v642, %v639
  %v679 = vpack.c.bf16 %v646, %v643
  %v680 = vpack.c.bf16 %v647, %v644
  %v681 = vpack.c.bf16 %v648, %v645
  %v682 = vpack.c.bf16 %v652, %v649
  %v683 = vpack.c.bf16 %v653, %v650
  %v684 = vpack.c.bf16 %v654, %v651
  %v685 = vpack.c.bf16 %v658, %v655
  %v686 = vpack.c.bf16 %v659, %v656
  %v687 = vpack.c.bf16 %v660, %v657
  %v688 = vpack.c.bf16 %v664, %v661
  %v689 = vpack.c.bf16 %v665, %v662
  %v690 = vpack.c.bf16 %v666, %v663
  %v691 = vld [vmem:[%s4] sm:$0x7]
  %v693 = vlaneseq
  %v694 = vshrl.u32 %v693, 7
  %v695 = vsub.s32 0, %v694
  %v696 = vrot.slane %v691, %v695
  %v697 = vlaneseq
  %v698 = vshrl.u32 %v697, 7
  %v699 = vsub.s32 1, %v698
  %v700 = vrot.slane %v691, %v699
  %v701 = vlaneseq
  %v702 = vshrl.u32 %v701, 7
  %v703 = vsub.s32 2, %v702
  %v704 = vrot.slane %v691, %v703
  %v708 = vld [vmem:[%s8] sm:$0x7]
  %v710 = vlaneseq
  %v711 = vshrl.u32 %v710, 7
  %v712 = vsub.s32 0, %v711
  %v713 = vrot.slane %v708, %v712
  %v714 = vlaneseq
  %v715 = vshrl.u32 %v714, 7
  %v716 = vsub.s32 1, %v715
  %v717 = vrot.slane %v708, %v716
  %v718 = vlaneseq
  %v719 = vshrl.u32 %v718, 7
  %v720 = vsub.s32 2, %v719
  %v721 = vrot.slane %v708, %v720
  loop: start=0, step=1, limit=2
  $region46: #{cnn_rnn_crf_forward.5} parent=0 // loop_pre_header
    _
  $region47: #{cnn_rnn_crf_forward.5} parent=0 // loop_header
    %s726 = sphi 0, %s730
    %p727 = scmp.ge.s32.totalorder %s726, 2
    %v731 = vphi 0.0, %v842
    %v732 = vphi 0.0, %v951
  $region48: #{cnn_rnn_crf_forward.5} parent=0 // loop_header_branch
    %729 = sbr.rel (%p727) target = $region52
  $region49: #{cnn_rnn_crf_forward.5} parent=0 // loop_body
    %s733 = ssub.s32 1, %s726
    %s734 = smul.u32 %s726, 3
    %s735 = smul.addr %s734, 8
    %s736 = scalar_lea.vmem [#allocation2], %s735
    %v737 = vld [vmem:[%s736] sm:$0xff]
    %v738 = vld [vmem:[%s736 + $0x8] sm:$0xff]
    %v739 = vld [vmem:[%s736 + $0x10] sm:$0xff]
    %v740 = vpack.c.bf16 %v731, %v731
    %741 = vmatprep.subr.bf16.mxu0 %v596
    %742 = vmatpush1.bf16.msra.mxu0 %v595
    %743 = vmatprep.subr.bf16.mxu0 %v599
    %744 = vmatpush1.bf16.msra.mxu0 %v598
    %745 = vmatprep.subr.bf16.mxu0 %v602
    %746 = vmatpush1.bf16.msra.mxu0 %v601
    %747 = vmatprep.subr.bf16.mxu0 %v605
    %748 = vmatpush1.bf16.msra.mxu0 %v604
    %749 = vmatprep.subr.bf16.mxu0 %v608
    %750 = vmatpush1.bf16.msra.mxu0 %v607
    %751 = vmatprep.subr.bf16.mxu0 %v611
    %752 = vmatpush1.bf16.msra.mxu0 %v610
    %753 = vmatprep.subr.bf16.mxu0 %v614
    %754 = vmatpush1.bf16.msra.mxu0 %v613
    %755 = vmatprep.subr.bf16.mxu0 %v617
    %756 = vmatpush1.bf16.msra.mxu0 %v616
    %757 = vmatprep.subr.bf16.mxu0 0
    %758 = vmatpush1.bf16.msra.mxu0 0
    %759 = vmatprep.subr.bf16.mxu0 0
    %760 = vmatpush1.bf16.msra.mxu0 0
    %761 = vmatprep.subr.bf16.mxu0 0
    %762 = vmatpush1.bf16.msra.mxu0 0
    %763 = vmatprep.subr.bf16.mxu0 0
    %764 = vmatpush1.bf16.msra.mxu0 0
    %765 = vmatprep.subr.bf16.mxu0 0
    %766 = vmatpush1.bf16.msra.mxu0 0
    %767 = vmatprep.subr.bf16.mxu0 0
    %768 = vmatpush1.bf16.msra.mxu0 0
    %769 = vmatprep.subr.bf16.mxu0 0
    %770 = vmatpush1.bf16.msra.mxu0 0
    %771 = vmatprep.subr.bf16.mxu0 0
    %772 = vmatpush1.bf16.msra.mxu0 0
    %773 = vmatprep.mubr.bf16.mxu0 0
    %774 = vmatmul.mubr.bf16.gmra.mrb[0].mxu0 %v740
    %v775 = vpop.f32.mrb[0].mxu0
    %v776 = vadd.f32 %v696, %v775
    %v777 = vpop.f32.mrb[0].mxu0
    %v778 = vadd.f32 %v700, %v777
    %v779 = vpop.f32.mrb[0].mxu0
    %v780 = vpop.f32.mrb[0].mxu0
    %781 = vdwg.mxu0
    %782 = vmatprep.subr.bf16.mxu0 0
    %783 = vmatpush1.bf16.msra.mxu0 %v597
    %784 = vmatprep.subr.bf16.mxu0 0
    %785 = vmatpush1.bf16.msra.mxu0 %v600
    %786 = vmatprep.subr.bf16.mxu0 0
    %787 = vmatpush1.bf16.msra.mxu0 %v603
    %788 = vmatprep.subr.bf16.mxu0 0
    %789 = vmatpush1.bf16.msra.mxu0 %v606
    %790 = vmatprep.subr.bf16.mxu0 0
    %791 = vmatpush1.bf16.msra.mxu0 %v609
    %792 = vmatprep.subr.bf16.mxu0 0
    %793 = vmatpush1.bf16.msra.mxu0 %v612
    %794 = vmatprep.subr.bf16.mxu0 0
    %795 = vmatpush1.bf16.msra.mxu0 %v615
    %796 = vmatprep.subr.bf16.mxu0 0
    %797 = vmatpush1.bf16.msra.mxu0 %v618
    %798 = vmatprep.subr.bf16.mxu0 0
    %799 = vmatpush1.bf16.msra.mxu0 0
    %800 = vmatprep.subr.bf16.mxu0 0
    %801 = vmatpush1.bf16.msra.mxu0 0
    %802 = vmatprep.subr.bf16.mxu0 0
    %803 = vmatpush1.bf16.msra.mxu0 0
    %804 = vmatprep.subr.bf16.mxu0 0
    %805 = vmatpush1.bf16.msra.mxu0 0
    %806 = vmatprep.subr.bf16.mxu0 0
    %807 = vmatpush1.bf16.msra.mxu0 0
    %808 = vmatprep.subr.bf16.mxu0 0
    %809 = vmatpush1.bf16.msra.mxu0 0
    %810 = vmatprep.subr.bf16.mxu0 0
    %811 = vmatpush1.bf16.msra.mxu0 0
    %812 = vmatprep.subr.bf16.mxu0 0
    %813 = vmatpush1.bf16.msra.mxu0 0
    %814 = vmatprep.mubr.bf16.mxu0 0
    %815 = vmatmul.mubr.bf16.gmra.mrb[0].mxu0 %v740
    %v816 = vpop.f32.mrb[0].mxu0
    %v817 = vadd.f32 %v704, %v816
    %v818 = vpop.f32.mrb[0].mxu0
    %v819 = vpop.f32.mrb[0].mxu0
    %v820 = vpop.f32.mrb[0].mxu0
    %821 = vdwg.mxu0
    %v822 = vadd.f32 %v737, %v776
    %v823 = vxor.u32 %v822, 2147483648
    %v824 = vmul.f32 %v823, 1.442695
    %v825 = vpow.pop %v824
    %v826 = vadd.f32 %v825, 1.0
    %v827 = vrcp.pop %v826
    %v828 = vmul.f32 1.0, %v827
    %v829 = vadd.f32 %v738, %v778
    %v830 = vxor.u32 %v829, 2147483648
    %v831 = vmul.f32 %v830, 1.442695
    %v832 = vpow.pop %v831
    %v833 = vadd.f32 %v832, 1.0
    %v834 = vrcp.pop %v833
    %v835 = vmul.f32 1.0, %v834
    %v836 = vmul.f32 %v828, %v817
    %v837 = vadd.f32 %v739, %v836
    %v838 = vtanh.pop %v837
    %v839 = vsub.f32 1.0, %v835
    %v840 = vmul.f32 %v839, %v838
    %v841 = vmul.f32 %v835, %v731
    %v842 = vadd.f32 %v840, %v841
    %s843 = smul.u32 %s733, 3
    %s844 = smul.addr %s843, 8
    %s845 = scalar_lea.vmem [#allocation3], %s844
    %v846 = vld [vmem:[%s845] sm:$0xff]
    %v847 = vld [vmem:[%s845 + $0x8] sm:$0xff]
    %v848 = vld [vmem:[%s845 + $0x10] sm:$0xff]
    %v849 = vpack.c.bf16 %v732, %v732
    %850 = vmatprep.subr.bf16.mxu0 %v668
    %851 = vmatpush1.bf16.msra.mxu0 %v667
    %852 = vmatprep.subr.bf16.mxu0 %v671
    %853 = vmatpush1.bf16.msra.mxu0 %v670
    %854 = vmatprep.subr.bf16.mxu0 %v674
    %855 = vmatpush1.bf16.msra.mxu0 %v673
    %856 = vmatprep.subr.bf16.mxu0 %v677
    %857 = vmatpush1.bf16.msra.mxu0 %v676
    %858 = vmatprep.subr.bf16.mxu0 %v680
    %859 = vmatpush1.bf16.msra.mxu0 %v679
    %860 = vmatprep.subr.bf16.mxu0 %v683
    %861 = vmatpush1.bf16.msra.mxu0 %v682
    %862 = vmatprep.subr.bf16.mxu0 %v686
    %863 = vmatpush1.bf16.msra.mxu0 %v685
    %864 = vmatprep.subr.bf16.mxu0 %v689
    %865 = vmatpush1.bf16.msra.mxu0 %v688
    %866 = vmatprep.subr.bf16.mxu0 0
    %867 = vmatpush1.bf16.msra.mxu0 0
    %868 = vmatprep.subr.bf16.mxu0 0
    %869 = vmatpush1.bf16.msra.mxu0 0
    %870 = vmatprep.subr.bf16.mxu0 0
    %871 = vmatpush1.bf16.msra.mxu0 0
    %872 = vmatprep.subr.bf16.mxu0 0
    %873 = vmatpush1.bf16.msra.mxu0 0
    %874 = vmatprep.subr.bf16.mxu0 0
    %875 = vmatpush1.bf16.msra.mxu0 0
    %876 = vmatprep.subr.bf16.mxu0 0
    %877 = vmatpush1.bf16.msra.mxu0 0
    %878 = vmatprep.subr.bf16.mxu0 0
    %879 = vmatpush1.bf16.msra.mxu0 0
    %880 = vmatprep.subr.bf16.mxu0 0
    %881 = vmatpush1.bf16.msra.mxu0 0
    %882 = vmatprep.mubr.bf16.mxu0 0
    %883 = vmatmul.mubr.bf16.gmra.mrb[0].mxu0 %v849
    %v884 = vpop.f32.mrb[0].mxu0
    %v885 = vadd.f32 %v713, %v884
    %v886 = vpop.f32.mrb[0].mxu0
    %v887 = vadd.f32 %v717, %v886
    %v888 = vpop.f32.mrb[0].mxu0
    %v889 = vpop.f32.mrb[0].mxu0
    %890 = vdwg.mxu0
    %891 = vmatprep.subr.bf16.mxu0 0
    %892 = vmatpush1.bf16.msra.mxu0 %v669
    %893 = vmatprep.subr.bf16.mxu0 0
    %894 = vmatpush1.bf16.msra.mxu0 %v672
    %895 = vmatprep.subr.bf16.mxu0 0
    %896 = vmatpush1.bf16.msra.mxu0 %v675
    %897 = vmatprep.subr.bf16.mxu0 0
    %898 = vmatpush1.bf16.msra.mxu0 %v678
    %899 = vmatprep.subr.bf16.mxu0 0
    %900 = vmatpush1.bf16.msra.mxu0 %v681
    %901 = vmatprep.subr.bf16.mxu0 0
    %902 = vmatpush1.bf16.msra.mxu0 %v684
    %903 = vmatprep.subr.bf16.mxu0 0
    %904 = vmatpush1.bf16.msra.mxu0 %v687
    %905 = vmatprep.subr.bf16.mxu0 0
    %906 = vmatpush1.bf16.msra.mxu0 %v690
    %907 = vmatprep.subr.bf16.mxu0 0
    %908 = vmatpush1.bf16.msra.mxu0 0
    %909 = vmatprep.subr.bf16.mxu0 0
    %910 = vmatpush1.bf16.msra.mxu0 0
    %911 = vmatprep.subr.bf16.mxu0 0
    %912 = vmatpush1.bf16.msra.mxu0 0
    %913 = vmatprep.subr.bf16.mxu0 0
    %914 = vmatpush1.bf16.msra.mxu0 0
    %915 = vmatprep.subr.bf16.mxu0 0
    %916 = vmatpush1.bf16.msra.mxu0 0
    %917 = vmatprep.subr.bf16.mxu0 0
    %918 = vmatpush1.bf16.msra.mxu0 0
    %919 = vmatprep.subr.bf16.mxu0 0
    %920 = vmatpush1.bf16.msra.mxu0 0
    %921 = vmatprep.subr.bf16.mxu0 0
    %922 = vmatpush1.bf16.msra.mxu0 0
    %923 = vmatprep.mubr.bf16.mxu0 0
    %924 = vmatmul.mubr.bf16.gmra.mrb[0].mxu0 %v849
    %v925 = vpop.f32.mrb[0].mxu0
    %v926 = vadd.f32 %v721, %v925
    %v927 = vpop.f32.mrb[0].mxu0
    %v928 = vpop.f32.mrb[0].mxu0
    %v929 = vpop.f32.mrb[0].mxu0
    %930 = vdwg.mxu0
    %v931 = vadd.f32 %v846, %v885
    %v932 = vxor.u32 %v931, 2147483648
    %v933 = vmul.f32 %v932, 1.442695
    %v934 = vpow.pop %v933
    %v935 = vadd.f32 %v934, 1.0
    %v936 = vrcp.pop %v935
    %v937 = vmul.f32 1.0, %v936
    %v938 = vadd.f32 %v847, %v887
    %v939 = vxor.u32 %v938, 2147483648
    %v940 = vmul.f32 %v939, 1.442695
    %v941 = vpow.pop %v940
    %v942 = vadd.f32 %v941, 1.0
    %v943 = vrcp.pop %v942
    %v944 = vmul.f32 1.0, %v943
    %v945 = vmul.f32 %v937, %v926
    %v946 = vadd.f32 %v848, %v945
    %v947 = vtanh.pop %v946
    %v948 = vsub.f32 1.0, %v944
    %v949 = vmul.f32 %v948, %v947
    %v950 = vmul.f32 %v944, %v732
    %v951 = vadd.f32 %v949, %v950
    %s952 = smul.u32 %s726, 2
    %s953 = smul.addr %s952, 8
    %s954 = scalar_lea.vmem [#allocation4], %s953
    %955 = vst [vmem:[%s954] sm:$0xff] %v842
    %s956 = smul.u32 %s733, 2
    %s957 = smul.addr %s956, 8
    %s958 = scalar_lea.vmem [#allocation4], %s957
    %959 = vst [vmem:[%s958 + $0x8] sm:$0xff] %v951
  $region50: #{cnn_rnn_crf_forward.5} parent=0 // loop_footer
    %s730 = sadd.s32 1, %s726
  $region51: #{cnn_rnn_crf_forward.5} parent=0 // loop_footer_branch
    %725 = sbr.rel target = $region47
  $region52: #{cnn_rnn_crf_forward.5} parent=0 // loop_exit
    _
  %v960 = vld [vmem:[#allocation4] sm:$0xff]
  %v961 = vld [vmem:[#allocation4 + $0x8] sm:$0xff]
  %v962 = vld [vmem:[#allocation4 + $0x10] sm:$0xff]
  %v963 = vld [vmem:[#allocation4 + $0x18] sm:$0xff]
  %v964 = vpack.c.bf16 %v962, %v960
  %v965 = vpack.c.bf16 %v963, %v961
  %v966 = vld [vmem:[%s9] sm:$0xff]
  %v967 = vld [vmem:[%s9 + $0x8] sm:$0xff]
  %v968 = vld [vmem:[%s9 + $0x10] sm:$0xff]
  %v969 = vld [vmem:[%s9 + $0x18] sm:$0xff]
  %v970 = vld [vmem:[%s9 + $0x20] sm:$0xff]
  %v971 = vld [vmem:[%s9 + $0x28] sm:$0xff]
  %v972 = vld [vmem:[%s9 + $0x30] sm:$0xff]
  %v973 = vld [vmem:[%s9 + $0x38] sm:$0xff]
  %v974 = vld [vmem:[%s9 + $0x40] sm:$0xff]
  %v975 = vld [vmem:[%s9 + $0x48] sm:$0xff]
  %v976 = vld [vmem:[%s9 + $0x50] sm:$0xff]
  %v977 = vld [vmem:[%s9 + $0x58] sm:$0xff]
  %v978 = vld [vmem:[%s9 + $0x60] sm:$0xff]
  %v979 = vld [vmem:[%s9 + $0x68] sm:$0xff]
  %v980 = vld [vmem:[%s9 + $0x70] sm:$0xff]
  %v981 = vld [vmem:[%s9 + $0x78] sm:$0xff]
  %v982 = vld [vmem:[%s9 + $0x80] sm:$0xff]
  %v983 = vld [vmem:[%s9 + $0x88] sm:$0xff]
  %v984 = vld [vmem:[%s9 + $0x90] sm:$0xff]
  %v985 = vld [vmem:[%s9 + $0x98] sm:$0xff]
  %v986 = vld [vmem:[%s9 + $0xa0] sm:$0xff]
  %v987 = vld [vmem:[%s9 + $0xa8] sm:$0xff]
  %v988 = vld [vmem:[%s9 + $0xb0] sm:$0xff]
  %v989 = vld [vmem:[%s9 + $0xb8] sm:$0xff]
  %v990 = vld [vmem:[%s9 + $0xc0] sm:$0xff]
  %v991 = vld [vmem:[%s9 + $0xc8] sm:$0xff]
  %v992 = vld [vmem:[%s9 + $0xd0] sm:$0xff]
  %v993 = vld [vmem:[%s9 + $0xd8] sm:$0xff]
  %v994 = vld [vmem:[%s9 + $0xe0] sm:$0xff]
  %v995 = vld [vmem:[%s9 + $0xe8] sm:$0xff]
  %v996 = vld [vmem:[%s9 + $0xf0] sm:$0xff]
  %v997 = vld [vmem:[%s9 + $0xf8] sm:$0xff]
  %v998 = vpack.c.bf16 %v967, %v966
  %v999 = vpack.c.bf16 %v969, %v968
  %v1000 = vpack.c.bf16 %v971, %v970
  %v1001 = vpack.c.bf16 %v973, %v972
  %v1002 = vpack.c.bf16 %v975, %v974
  %v1003 = vpack.c.bf16 %v977, %v976
  %v1004 = vpack.c.bf16 %v979, %v978
  %v1005 = vpack.c.bf16 %v981, %v980
  %v1006 = vpack.c.bf16 %v983, %v982
  %v1007 = vpack.c.bf16 %v985, %v984
  %v1008 = vpack.c.bf16 %v987, %v986
  %v1009 = vpack.c.bf16 %v989, %v988
  %v1010 = vpack.c.bf16 %v991, %v990
  %v1011 = vpack.c.bf16 %v993, %v992
  %v1012 = vpack.c.bf16 %v995, %v994
  %v1013 = vpack.c.bf16 %v997, %v996
  %v1014 = vld [vmem:[%s10] sm:$0x1]
  %v1016 = vlaneseq
  %v1017 = vshrl.u32 %v1016, 7
  %v1018 = vsub.s32 0, %v1017
  %v1019 = vrot.slane %v1014, %v1018
  %1021 = vmatprep.subr.bf16.mxu0 0
  %1022 = vmatpush1.bf16.msra.mxu0 %v998
  %1023 = vmatprep.subr.bf16.mxu0 0
  %1024 = vmatpush1.bf16.msra.mxu0 %v999
  %1025 = vmatprep.subr.bf16.mxu0 0
  %1026 = vmatpush1.bf16.msra.mxu0 %v1000
  %1027 = vmatprep.subr.bf16.mxu0 0
  %1028 = vmatpush1.bf16.msra.mxu0 %v1001
  %1029 = vmatprep.subr.bf16.mxu0 0
  %1030 = vmatpush1.bf16.msra.mxu0 %v1002
  %1031 = vmatprep.subr.bf16.mxu0 0
  %1032 = vmatpush1.bf16.msra.mxu0 %v1003
  %1033 = vmatprep.subr.bf16.mxu0 0
  %1034 = vmatpush1.bf16.msra.mxu0 %v1004
  %1035 = vmatprep.subr.bf16.mxu0 0
  %1036 = vmatpush1.bf16.msra.mxu0 %v1005
  %1037 = vmatprep.subr.bf16.mxu0 0
  %1038 = vmatpush1.bf16.msra.mxu0 %v1006
  %1039 = vmatprep.subr.bf16.mxu0 0
  %1040 = vmatpush1.bf16.msra.mxu0 %v1007
  %1041 = vmatprep.subr.bf16.mxu0 0
  %1042 = vmatpush1.bf16.msra.mxu0 %v1008
  %1043 = vmatprep.subr.bf16.mxu0 0
  %1044 = vmatpush1.bf16.msra.mxu0 %v1009
  %1045 = vmatprep.subr.bf16.mxu0 0
  %1046 = vmatpush1.bf16.msra.mxu0 %v1010
  %1047 = vmatprep.subr.bf16.mxu0 0
  %1048 = vmatpush1.bf16.msra.mxu0 %v1011
  %1049 = vmatprep.subr.bf16.mxu0 0
  %1050 = vmatpush1.bf16.msra.mxu0 %v1012
  %1051 = vmatprep.subr.bf16.mxu0 0
  %1052 = vmatpush1.bf16.msra.mxu0 %v1013
  %1053 = vmatprep.mubr.bf16.mxu0 %v965
  %1054 = vmatmul.mubr.bf16.gmra.mrb[0].mxu0 %v964
  %v1055 = vpop.f32.mrb[0].mxu0
  %v1056 = vadd.f32 %v1019, %v1055
  %v1057 = vpop.f32.mrb[0].mxu0
  %v1058 = vpop.f32.mrb[0].mxu0
  %v1059 = vadd.f32 %v1019, %v1058
  %v1060 = vpop.f32.mrb[0].mxu0
  %1061 = vdwg.mxu0
  %1062 = vst [vmem:[%s11] sm:$0xff] %v1056
  %1063 = vst [vmem:[%s11 + $0x8] sm:$0xff] %v1059
  // Predicated region
  $region53: #{cnn_rnn_crf_forward.5} parent=0 // pred_check
    _
  $region54: #{cnn_rnn_crf_forward.5} parent=0 // pred_check_branch
    %1065 = sbr.rel (0) target = $region56
  $region55: #{cnn_rnn_crf_forward.5} parent=0 // pred_region
    _
  $region56: #{cnn_rnn_crf_forward.5} parent=0 // pred_fallthru
    _
  // Predicated region
  $region57: #{cnn_rnn_crf_forward.5} parent=0 // pred_check
    _
  $region58: #{cnn_rnn_crf_forward.5} parent=0 // pred_check_branch
    %1067 = sbr.rel (0) target = $region60
  $region59: #{cnn_rnn_crf_forward.5} parent=0 // pred_region
    _
  $region60: #{cnn_rnn_crf_forward.5} parent=0 // pred_fallthru
    _

</llo_original>
